<compile_context>
chip_gen: v7x
topology: tpu7x:2x2x1
jax: 0.10.0
libtpu: 0.0.40
codegen_flags: <defaults>
</compile_context>

<pallas_src>
import jax
import jax.numpy as jnp
from jax.experimental import pallas as pl
from jax.experimental.pallas import tpu as pltpu

LANE = 128


# ----------------------------- fused Pallas kernel ---------------------------

def make_fused_kernel(T, B, num_layers):
    """Kernel args: x (T,B,Din), (w_ih, w_hh, bias) * L, fc_w, fc_b, out."""

    def kernel(*args):
        x_ref = args[0]                                  # (T, B, Din)
        layer_refs = args[1:1 + 3 * num_layers]
        fcw_ref = args[1 + 3 * num_layers]               # (H, O_pad)
        fcb_ref = args[2 + 3 * num_layers]               # (1, O_pad)
        out_ref = args[3 + 3 * num_layers]               # (B, O_pad)

        # Load every weight ONCE (hoisted out of the unrolled recurrence) so
        # the scheduler can keep them resident across all T steps.
        weights = []
        for l in range(num_layers):
            weights.append((
                layer_refs[3 * l][...],          # (Din_l, 4H)
                layer_refs[3 * l + 1][...],      # (H, 4H)
                layer_refs[3 * l + 2][...],      # (1, 4H) = b_ih + b_hh
            ))
        H = weights[0][1].shape[0]

        def cell(l, x_in, h_prev, c_prev):
            wih, whh, bias = weights[l]
            # The input and recurrent matmuls are independent -> MXU pipelines.
            gates = (jnp.dot(x_in, wih, preferred_element_type=jnp.float32)
                     + jnp.dot(h_prev, whh, preferred_element_type=jnp.float32)
                     + bias)                                         # (B, 4H)
            # Whole 128-lane-tile nonlinearities (EUP slot), then gate slices.
            sig = jax.nn.sigmoid(gates)
            tnh = jnp.tanh(gates)
            i = sig[:, 0:H]
            f = sig[:, H:2 * H]
            g = tnh[:, 2 * H:3 * H]
            o = sig[:, 3 * H:4 * H]
            c_new = f * c_prev + i * g
            h_new = o * jnp.tanh(c_new)
            return h_new, c_new

        h = [jnp.zeros((B, H), jnp.float32) for _ in range(num_layers)]
        c = [jnp.zeros((B, H), jnp.float32) for _ in range(num_layers)]
        pending = [None] * num_layers   # pending[l]: register hand-off into layer l

        # Wavefront: at step s, layer l advances timestep t = s - l.  Chain
        # length T + L - 1 instead of T * L; no VMEM scratch, no sub-tile stores.
        for s in range(T + num_layers - 1):          # fully unrolled (static)
            for l in reversed(range(num_layers)):     # top layer first: it must
                t = s - l                             # read last step's pending[l]
                if 0 <= t < T:
                    x_in = x_ref[t] if l == 0 else pending[l]
                    h[l], c[l] = cell(l, x_in, h[l], c[l])
                    if l + 1 < num_layers:
                        pending[l + 1] = h[l]         # in-register hand-off

        # Final Linear on the last timestep, lane-dense (O padded to 128).
        out_ref[...] = (
            jnp.dot(h[num_layers - 1], fcw_ref[...],
                    preferred_element_type=jnp.float32) + fcb_ref[...]
        ).astype(out_ref.dtype)

    return kernel


# --------------------------------- wrappers ----------------------------------

def _vmem_spec():
    return pl.BlockSpec(memory_space=pltpu.MemorySpace.VMEM)


def fused_forward_call(T, B, o_pad, num_layers):
    n_inputs = 1 + 3 * num_layers + 2
    return pl.pallas_call(
        make_fused_kernel(T, B, num_layers),
        out_shape=jax.ShapeDtypeStruct((B, o_pad), jnp.float32),
        in_specs=[_vmem_spec() for _ in range(n_inputs)],
        out_specs=_vmem_spec(),
    )


def prepare_params(params, output_size):
    """One-time re-layout of PyTorch-style parameters for the fused kernel."""
    lstm = []
    for w_ih, w_hh, b_ih, b_hh in params["lstm"]:
        lstm.append((
            jnp.transpose(w_ih).astype(jnp.float32),            # (Din, 4H)
            jnp.transpose(w_hh).astype(jnp.float32),            # (H, 4H)
            (b_ih + b_hh).reshape(1, -1).astype(jnp.float32),   # (1, 4H)
        ))
    fc_w, fc_b = params["fc"]
    H = fc_w.shape[1]
    o_pad = ((output_size + LANE - 1) // LANE) * LANE           # lane-dense slab
    fc_w_pad = jnp.zeros((H, o_pad), jnp.float32).at[:, :output_size].set(
        jnp.transpose(fc_w))
    fc_b_pad = jnp.zeros((1, o_pad), jnp.float32).at[:, :output_size].set(
        fc_b.reshape(1, -1))
    return {"lstm": lstm, "fc_w": fc_w_pad, "fc_b": fc_b_pad,
            "hidden_size": H, "output_size": output_size, "o_pad": o_pad}


def lotto_lstm_forward(x, prepared):
    """x: (B, T, input_size) batch-first, like the PyTorch module."""
    B, T, _ = x.shape
    num_layers = len(prepared["lstm"])
    x_tbd = jnp.transpose(x, (1, 0, 2)).astype(jnp.float32)     # (T, B, Din)
    args = [x_tbd]
    for wih, whh, b in prepared["lstm"]:
        args.extend([wih, whh, b])
    args.extend([prepared["fc_w"], prepared["fc_b"]])
    out_pad = fused_forward_call(T, B, prepared["o_pad"], num_layers)(*args)
    return out_pad[:, :prepared["output_size"]]


# ------------------------ deterministic parameter init -----------------------

def init_params(key, input_size, hidden_size, output_size, num_layers):
    k_lstm = 1.0 / (hidden_size ** 0.5)
    lstm = []
    for layer in range(num_layers):
        d_in = input_size if layer == 0 else hidden_size
        key, k1, k2, k3, k4 = jax.random.split(key, 5)
        w_ih = jax.random.uniform(k1, (4 * hidden_size, d_in),
                                  minval=-k_lstm, maxval=k_lstm, dtype=jnp.float32)
        w_hh = jax.random.uniform(k2, (4 * hidden_size, hidden_size),
                                  minval=-k_lstm, maxval=k_lstm, dtype=jnp.float32)
        b_ih = jax.random.uniform(k3, (4 * hidden_size,),
                                  minval=-k_lstm, maxval=k_lstm, dtype=jnp.float32)
        b_hh = jax.random.uniform(k4, (4 * hidden_size,),
                                  minval=-k_lstm, maxval=k_lstm, dtype=jnp.float32)
        lstm.append((w_ih, w_hh, b_ih, b_hh))
    k_fc = 1.0 / (hidden_size ** 0.5)
    key, k5, k6 = jax.random.split(key, 3)
    fc_w = jax.random.uniform(k5, (output_size, hidden_size),
                              minval=-k_fc, maxval=k_fc, dtype=jnp.float32)
    fc_b = jax.random.uniform(k6, (output_size,),
                              minval=-k_fc, maxval=k_fc, dtype=jnp.float32)
    return {"lstm": lstm, "fc": (fc_w, fc_b)}


# ------------------------------ pure-JAX reference ----------------------------

def reference_forward(x, params):
    B, T, _ = x.shape
    h_in = x.astype(jnp.float32)
    for (w_ih, w_hh, b_ih, b_hh) in params["lstm"]:
        H = w_hh.shape[1]
        h = jnp.zeros((B, H), jnp.float32)
        c = jnp.zeros((B, H), jnp.float32)
        outs = []
        for t in range(T):
            gates = h_in[:, t, :] @ w_ih.T + b_ih + h @ w_hh.T + b_hh
            i = jax.nn.sigmoid(gates[:, 0:H])
            f = jax.nn.sigmoid(gates[:, H:2 * H])
            g = jnp.tanh(gates[:, 2 * H:3 * H])
            o = jax.nn.sigmoid(gates[:, 3 * H:4 * H])
            c = f * c + i * g
            h = o * jnp.tanh(c)
            outs.append(h)
        h_in = jnp.stack(outs, axis=1)
    fc_w, fc_b = params["fc"]
    return h_in[:, -1, :] @ fc_w.T + fc_b


# ----------------------------------- main -------------------------------------

if __name__ == "__main__":
    # Module hyperparameters (lotto: 6 output numbers).
    input_size, hidden_size, output_size, num_layers = 8, 32, 6, 2
    batch, seq = 2, 8

    key = jax.random.PRNGKey(0)
    key, kx, kp = jax.random.split(key, 3)
    x = jax.random.normal(kx, (batch, seq, input_size), dtype=jnp.float32)
    params = init_params(kp, input_size, hidden_size, output_size, num_layers)

    prepared = prepare_params(params, output_size)   # one-time weight re-layout
    out = lotto_lstm_forward(x, prepared)
    out = jax.block_until_ready(out)

    ref = reference_forward(x, params)
    assert out.shape == (batch, output_size)
    assert jnp.allclose(out, ref, atol=1e-4, rtol=1e-4), "mismatch vs JAX reference"

    print("KERNEL_OK")
</pallas_src>

<mosaic_0001>
module attributes {stable_mosaic.version = 11 : i64} {
  func.func @kernel(%arg0: memref<8x2x8xf32, #tpu.memory_space<vmem>>, %arg1: memref<8x128xf32, #tpu.memory_space<vmem>>, %arg2: memref<32x128xf32, #tpu.memory_space<vmem>>, %arg3: memref<1x128xf32, #tpu.memory_space<vmem>>, %arg4: memref<32x128xf32, #tpu.memory_space<vmem>>, %arg5: memref<32x128xf32, #tpu.memory_space<vmem>>, %arg6: memref<1x128xf32, #tpu.memory_space<vmem>>, %arg7: memref<32x128xf32, #tpu.memory_space<vmem>>, %arg8: memref<1x128xf32, #tpu.memory_space<vmem>>, %arg9: memref<2x128xf32, #tpu.memory_space<vmem>>) attributes {dimension_semantics = [], scalar_prefetch = 0 : i64, scratch_operands = 0 : i64, tpu.core_type = #tpu.core_type<tc>} {
    %c0 = arith.constant 0 : index
    %c0_0 = arith.constant 0 : index
    %0 = vector.load %arg1[%c0, %c0_0] : memref<8x128xf32, #tpu.memory_space<vmem>>, vector<8x128xf32>
    %c0_1 = arith.constant 0 : index
    %c0_2 = arith.constant 0 : index
    %1 = vector.load %arg2[%c0_1, %c0_2] : memref<32x128xf32, #tpu.memory_space<vmem>>, vector<32x128xf32>
    %c0_3 = arith.constant 0 : index
    %c0_4 = arith.constant 0 : index
    %2 = vector.load %arg3[%c0_3, %c0_4] : memref<1x128xf32, #tpu.memory_space<vmem>>, vector<1x128xf32>
    %c0_5 = arith.constant 0 : index
    %c0_6 = arith.constant 0 : index
    %3 = vector.load %arg4[%c0_5, %c0_6] : memref<32x128xf32, #tpu.memory_space<vmem>>, vector<32x128xf32>
    %c0_7 = arith.constant 0 : index
    %c0_8 = arith.constant 0 : index
    %4 = vector.load %arg5[%c0_7, %c0_8] : memref<32x128xf32, #tpu.memory_space<vmem>>, vector<32x128xf32>
    %c0_9 = arith.constant 0 : index
    %c0_10 = arith.constant 0 : index
    %5 = vector.load %arg6[%c0_9, %c0_10] : memref<1x128xf32, #tpu.memory_space<vmem>>, vector<1x128xf32>
    %cst = arith.constant 0.000000e+00 : f32
    %6 = vector.broadcast %cst : f32 to vector<2x32xf32>
    %cst_11 = arith.constant 0.000000e+00 : f32
    %7 = vector.broadcast %cst_11 : f32 to vector<2x32xf32>
    %cst_12 = arith.constant 0.000000e+00 : f32
    %8 = vector.broadcast %cst_12 : f32 to vector<2x32xf32>
    %cst_13 = arith.constant 0.000000e+00 : f32
    %9 = vector.broadcast %cst_13 : f32 to vector<2x32xf32>
    %c0_14 = arith.constant 0 : index
    %c0_15 = arith.constant 0 : index
    %c0_16 = arith.constant 0 : index
    %10 = vector.load %arg0[%c0_14, %c0_15, %c0_16] : memref<8x2x8xf32, #tpu.memory_space<vmem>>, vector<1x2x8xf32>
    %11 = vector.shape_cast %10 : vector<1x2x8xf32> to vector<2x8xf32>
    %cst_17 = arith.constant dense<0.000000e+00> : vector<2x128xf32>
    %12 = tpu.matmul %11, %0, %cst_17 {dimension_numbers = #tpu.dot_dimension_numbers<[1], [0], [0], [1], [0, 0, 1, 1], [], []>} : vector<2x8xf32>, vector<8x128xf32>, vector<2x128xf32> -> vector<2x128xf32>
    %cst_18 = arith.constant dense<0.000000e+00> : vector<2x128xf32>
    %13 = tpu.matmul %6, %1, %cst_18 {dimension_numbers = #tpu.dot_dimension_numbers<[1], [0], [0], [1], [0, 0, 1, 1], [], []>} : vector<2x32xf32>, vector<32x128xf32>, vector<2x128xf32> -> vector<2x128xf32>
    %14 = arith.addf %12, %13 : vector<2x128xf32>
    %15 = vector.broadcast %2 : vector<1x128xf32> to vector<2x128xf32>
    %16 = arith.addf %14, %15 : vector<2x128xf32>
    %17 = arith.negf %16 : vector<2x128xf32>
    %18 = math.exp %17 : vector<2x128xf32>
    %cst_19 = arith.constant 1.000000e+00 : f32
    %19 = vector.broadcast %cst_19 : f32 to vector<2x128xf32>
    %20 = arith.addf %19, %18 : vector<2x128xf32>
    %21 = arith.divf %19, %20 : vector<2x128xf32>
    %22 = math.tanh %16 : vector<2x128xf32>
    %23 = vector.extract_strided_slice %21 {offsets = [0, 0], sizes = [2, 32], strides = [1, 1]} : vector<2x128xf32> to vector<2x32xf32>
    %24 = vector.extract_strided_slice %21 {offsets = [0, 32], sizes = [2, 32], strides = [1, 1]} : vector<2x128xf32> to vector<2x32xf32>
    %25 = vector.extract_strided_slice %22 {offsets = [0, 64], sizes = [2, 32], strides = [1, 1]} : vector<2x128xf32> to vector<2x32xf32>
    %26 = vector.extract_strided_slice %21 {offsets = [0, 96], sizes = [2, 32], strides = [1, 1]} : vector<2x128xf32> to vector<2x32xf32>
    %27 = arith.mulf %24, %8 : vector<2x32xf32>
    %28 = arith.mulf %23, %25 : vector<2x32xf32>
    %29 = arith.addf %27, %28 : vector<2x32xf32>
    %30 = math.tanh %29 : vector<2x32xf32>
    %31 = arith.mulf %26, %30 : vector<2x32xf32>
    %cst_20 = arith.constant dense<0.000000e+00> : vector<2x128xf32>
    %32 = tpu.matmul %31, %3, %cst_20 {dimension_numbers = #tpu.dot_dimension_numbers<[1], [0], [0], [1], [0, 0, 1, 1], [], []>} : vector<2x32xf32>, vector<32x128xf32>, vector<2x128xf32> -> vector<2x128xf32>
    %cst_21 = arith.constant dense<0.000000e+00> : vector<2x128xf32>
    %33 = tpu.matmul %7, %4, %cst_21 {dimension_numbers = #tpu.dot_dimension_numbers<[1], [0], [0], [1], [0, 0, 1, 1], [], []>} : vector<2x32xf32>, vector<32x128xf32>, vector<2x128xf32> -> vector<2x128xf32>
    %34 = arith.addf %32, %33 : vector<2x128xf32>
    %35 = vector.broadcast %5 : vector<1x128xf32> to vector<2x128xf32>
    %36 = arith.addf %34, %35 : vector<2x128xf32>
    %37 = arith.negf %36 : vector<2x128xf32>
    %38 = math.exp %37 : vector<2x128xf32>
    %cst_22 = arith.constant 1.000000e+00 : f32
    %39 = vector.broadcast %cst_22 : f32 to vector<2x128xf32>
    %40 = arith.addf %39, %38 : vector<2x128xf32>
    %41 = arith.divf %39, %40 : vector<2x128xf32>
    %42 = math.tanh %36 : vector<2x128xf32>
    %43 = vector.extract_strided_slice %41 {offsets = [0, 0], sizes = [2, 32], strides = [1, 1]} : vector<2x128xf32> to vector<2x32xf32>
    %44 = vector.extract_strided_slice %41 {offsets = [0, 32], sizes = [2, 32], strides = [1, 1]} : vector<2x128xf32> to vector<2x32xf32>
    %45 = vector.extract_strided_slice %42 {offsets = [0, 64], sizes = [2, 32], strides = [1, 1]} : vector<2x128xf32> to vector<2x32xf32>
    %46 = vector.extract_strided_slice %41 {offsets = [0, 96], sizes = [2, 32], strides = [1, 1]} : vector<2x128xf32> to vector<2x32xf32>
    %47 = arith.mulf %44, %9 : vector<2x32xf32>
    %48 = arith.mulf %43, %45 : vector<2x32xf32>
    %49 = arith.addf %47, %48 : vector<2x32xf32>
    %50 = math.tanh %49 : vector<2x32xf32>
    %51 = arith.mulf %46, %50 : vector<2x32xf32>
    %c1 = arith.constant 1 : index
    %c0_23 = arith.constant 0 : index
    %c0_24 = arith.constant 0 : index
    %52 = vector.load %arg0[%c1, %c0_23, %c0_24] : memref<8x2x8xf32, #tpu.memory_space<vmem>>, vector<1x2x8xf32>
    %53 = vector.shape_cast %52 : vector<1x2x8xf32> to vector<2x8xf32>
    %cst_25 = arith.constant dense<0.000000e+00> : vector<2x128xf32>
    %54 = tpu.matmul %53, %0, %cst_25 {dimension_numbers = #tpu.dot_dimension_numbers<[1], [0], [0], [1], [0, 0, 1, 1], [], []>} : vector<2x8xf32>, vector<8x128xf32>, vector<2x128xf32> -> vector<2x128xf32>
    %cst_26 = arith.constant dense<0.000000e+00> : vector<2x128xf32>
    %55 = tpu.matmul %31, %1, %cst_26 {dimension_numbers = #tpu.dot_dimension_numbers<[1], [0], [0], [1], [0, 0, 1, 1], [], []>} : vector<2x32xf32>, vector<32x128xf32>, vector<2x128xf32> -> vector<2x128xf32>
    %56 = arith.addf %54, %55 : vector<2x128xf32>
    %57 = vector.broadcast %2 : vector<1x128xf32> to vector<2x128xf32>
    %58 = arith.addf %56, %57 : vector<2x128xf32>
    %59 = arith.negf %58 : vector<2x128xf32>
    %60 = math.exp %59 : vector<2x128xf32>
    %cst_27 = arith.constant 1.000000e+00 : f32
    %61 = vector.broadcast %cst_27 : f32 to vector<2x128xf32>
    %62 = arith.addf %61, %60 : vector<2x128xf32>
    %63 = arith.divf %61, %62 : vector<2x128xf32>
    %64 = math.tanh %58 : vector<2x128xf32>
    %65 = vector.extract_strided_slice %63 {offsets = [0, 0], sizes = [2, 32], strides = [1, 1]} : vector<2x128xf32> to vector<2x32xf32>
    %66 = vector.extract_strided_slice %63 {offsets = [0, 32], sizes = [2, 32], strides = [1, 1]} : vector<2x128xf32> to vector<2x32xf32>
    %67 = vector.extract_strided_slice %64 {offsets = [0, 64], sizes = [2, 32], strides = [1, 1]} : vector<2x128xf32> to vector<2x32xf32>
    %68 = vector.extract_strided_slice %63 {offsets = [0, 96], sizes = [2, 32], strides = [1, 1]} : vector<2x128xf32> to vector<2x32xf32>
    %69 = arith.mulf %66, %29 : vector<2x32xf32>
    %70 = arith.mulf %65, %67 : vector<2x32xf32>
    %71 = arith.addf %69, %70 : vector<2x32xf32>
    %72 = math.tanh %71 : vector<2x32xf32>
    %73 = arith.mulf %68, %72 : vector<2x32xf32>
    %cst_28 = arith.constant dense<0.000000e+00> : vector<2x128xf32>
    %74 = tpu.matmul %73, %3, %cst_28 {dimension_numbers = #tpu.dot_dimension_numbers<[1], [0], [0], [1], [0, 0, 1, 1], [], []>} : vector<2x32xf32>, vector<32x128xf32>, vector<2x128xf32> -> vector<2x128xf32>
    %cst_29 = arith.constant dense<0.000000e+00> : vector<2x128xf32>
    %75 = tpu.matmul %51, %4, %cst_29 {dimension_numbers = #tpu.dot_dimension_numbers<[1], [0], [0], [1], [0, 0, 1, 1], [], []>} : vector<2x32xf32>, vector<32x128xf32>, vector<2x128xf32> -> vector<2x128xf32>
    %76 = arith.addf %74, %75 : vector<2x128xf32>
    %77 = vector.broadcast %5 : vector<1x128xf32> to vector<2x128xf32>
    %78 = arith.addf %76, %77 : vector<2x128xf32>
    %79 = arith.negf %78 : vector<2x128xf32>
    %80 = math.exp %79 : vector<2x128xf32>
    %cst_30 = arith.constant 1.000000e+00 : f32
    %81 = vector.broadcast %cst_30 : f32 to vector<2x128xf32>
    %82 = arith.addf %81, %80 : vector<2x128xf32>
    %83 = arith.divf %81, %82 : vector<2x128xf32>
    %84 = math.tanh %78 : vector<2x128xf32>
    %85 = vector.extract_strided_slice %83 {offsets = [0, 0], sizes = [2, 32], strides = [1, 1]} : vector<2x128xf32> to vector<2x32xf32>
    %86 = vector.extract_strided_slice %83 {offsets = [0, 32], sizes = [2, 32], strides = [1, 1]} : vector<2x128xf32> to vector<2x32xf32>
    %87 = vector.extract_strided_slice %84 {offsets = [0, 64], sizes = [2, 32], strides = [1, 1]} : vector<2x128xf32> to vector<2x32xf32>
    %88 = vector.extract_strided_slice %83 {offsets = [0, 96], sizes = [2, 32], strides = [1, 1]} : vector<2x128xf32> to vector<2x32xf32>
    %89 = arith.mulf %86, %49 : vector<2x32xf32>
    %90 = arith.mulf %85, %87 : vector<2x32xf32>
    %91 = arith.addf %89, %90 : vector<2x32xf32>
    %92 = math.tanh %91 : vector<2x32xf32>
    %93 = arith.mulf %88, %92 : vector<2x32xf32>
    %c2 = arith.constant 2 : index
    %c0_31 = arith.constant 0 : index
    %c0_32 = arith.constant 0 : index
    %94 = vector.load %arg0[%c2, %c0_31, %c0_32] : memref<8x2x8xf32, #tpu.memory_space<vmem>>, vector<1x2x8xf32>
    %95 = vector.shape_cast %94 : vector<1x2x8xf32> to vector<2x8xf32>
    %cst_33 = arith.constant dense<0.000000e+00> : vector<2x128xf32>
    %96 = tpu.matmul %95, %0, %cst_33 {dimension_numbers = #tpu.dot_dimension_numbers<[1], [0], [0], [1], [0, 0, 1, 1], [], []>} : vector<2x8xf32>, vector<8x128xf32>, vector<2x128xf32> -> vector<2x128xf32>
    %cst_34 = arith.constant dense<0.000000e+00> : vector<2x128xf32>
    %97 = tpu.matmul %73, %1, %cst_34 {dimension_numbers = #tpu.dot_dimension_numbers<[1], [0], [0], [1], [0, 0, 1, 1], [], []>} : vector<2x32xf32>, vector<32x128xf32>, vector<2x128xf32> -> vector<2x128xf32>
    %98 = arith.addf %96, %97 : vector<2x128xf32>
    %99 = vector.broadcast %2 : vector<1x128xf32> to vector<2x128xf32>
    %100 = arith.addf %98, %99 : vector<2x128xf32>
    %101 = arith.negf %100 : vector<2x128xf32>
    %102 = math.exp %101 : vector<2x128xf32>
    %cst_35 = arith.constant 1.000000e+00 : f32
    %103 = vector.broadcast %cst_35 : f32 to vector<2x128xf32>
    %104 = arith.addf %103, %102 : vector<2x128xf32>
    %105 = arith.divf %103, %104 : vector<2x128xf32>
    %106 = math.tanh %100 : vector<2x128xf32>
    %107 = vector.extract_strided_slice %105 {offsets = [0, 0], sizes = [2, 32], strides = [1, 1]} : vector<2x128xf32> to vector<2x32xf32>
    %108 = vector.extract_strided_slice %105 {offsets = [0, 32], sizes = [2, 32], strides = [1, 1]} : vector<2x128xf32> to vector<2x32xf32>
    %109 = vector.extract_strided_slice %106 {offsets = [0, 64], sizes = [2, 32], strides = [1, 1]} : vector<2x128xf32> to vector<2x32xf32>
    %110 = vector.extract_strided_slice %105 {offsets = [0, 96], sizes = [2, 32], strides = [1, 1]} : vector<2x128xf32> to vector<2x32xf32>
    %111 = arith.mulf %108, %71 : vector<2x32xf32>
    %112 = arith.mulf %107, %109 : vector<2x32xf32>
    %113 = arith.addf %111, %112 : vector<2x32xf32>
    %114 = math.tanh %113 : vector<2x32xf32>
    %115 = arith.mulf %110, %114 : vector<2x32xf32>
    %cst_36 = arith.constant dense<0.000000e+00> : vector<2x128xf32>
    %116 = tpu.matmul %115, %3, %cst_36 {dimension_numbers = #tpu.dot_dimension_numbers<[1], [0], [0], [1], [0, 0, 1, 1], [], []>} : vector<2x32xf32>, vector<32x128xf32>, vector<2x128xf32> -> vector<2x128xf32>
    %cst_37 = arith.constant dense<0.000000e+00> : vector<2x128xf32>
    %117 = tpu.matmul %93, %4, %cst_37 {dimension_numbers = #tpu.dot_dimension_numbers<[1], [0], [0], [1], [0, 0, 1, 1], [], []>} : vector<2x32xf32>, vector<32x128xf32>, vector<2x128xf32> -> vector<2x128xf32>
    %118 = arith.addf %116, %117 : vector<2x128xf32>
    %119 = vector.broadcast %5 : vector<1x128xf32> to vector<2x128xf32>
    %120 = arith.addf %118, %119 : vector<2x128xf32>
    %121 = arith.negf %120 : vector<2x128xf32>
    %122 = math.exp %121 : vector<2x128xf32>
    %cst_38 = arith.constant 1.000000e+00 : f32
    %123 = vector.broadcast %cst_38 : f32 to vector<2x128xf32>
    %124 = arith.addf %123, %122 : vector<2x128xf32>
    %125 = arith.divf %123, %124 : vector<2x128xf32>
    %126 = math.tanh %120 : vector<2x128xf32>
    %127 = vector.extract_strided_slice %125 {offsets = [0, 0], sizes = [2, 32], strides = [1, 1]} : vector<2x128xf32> to vector<2x32xf32>
    %128 = vector.extract_strided_slice %125 {offsets = [0, 32], sizes = [2, 32], strides = [1, 1]} : vector<2x128xf32> to vector<2x32xf32>
    %129 = vector.extract_strided_slice %126 {offsets = [0, 64], sizes = [2, 32], strides = [1, 1]} : vector<2x128xf32> to vector<2x32xf32>
    %130 = vector.extract_strided_slice %125 {offsets = [0, 96], sizes = [2, 32], strides = [1, 1]} : vector<2x128xf32> to vector<2x32xf32>
    %131 = arith.mulf %128, %91 : vector<2x32xf32>
    %132 = arith.mulf %127, %129 : vector<2x32xf32>
    %133 = arith.addf %131, %132 : vector<2x32xf32>
    %134 = math.tanh %133 : vector<2x32xf32>
    %135 = arith.mulf %130, %134 : vector<2x32xf32>
    %c3 = arith.constant 3 : index
    %c0_39 = arith.constant 0 : index
    %c0_40 = arith.constant 0 : index
    %136 = vector.load %arg0[%c3, %c0_39, %c0_40] : memref<8x2x8xf32, #tpu.memory_space<vmem>>, vector<1x2x8xf32>
    %137 = vector.shape_cast %136 : vector<1x2x8xf32> to vector<2x8xf32>
    %cst_41 = arith.constant dense<0.000000e+00> : vector<2x128xf32>
    %138 = tpu.matmul %137, %0, %cst_41 {dimension_numbers = #tpu.dot_dimension_numbers<[1], [0], [0], [1], [0, 0, 1, 1], [], []>} : vector<2x8xf32>, vector<8x128xf32>, vector<2x128xf32> -> vector<2x128xf32>
    %cst_42 = arith.constant dense<0.000000e+00> : vector<2x128xf32>
    %139 = tpu.matmul %115, %1, %cst_42 {dimension_numbers = #tpu.dot_dimension_numbers<[1], [0], [0], [1], [0, 0, 1, 1], [], []>} : vector<2x32xf32>, vector<32x128xf32>, vector<2x128xf32> -> vector<2x128xf32>
    %140 = arith.addf %138, %139 : vector<2x128xf32>
    %141 = vector.broadcast %2 : vector<1x128xf32> to vector<2x128xf32>
    %142 = arith.addf %140, %141 : vector<2x128xf32>
    %143 = arith.negf %142 : vector<2x128xf32>
    %144 = math.exp %143 : vector<2x128xf32>
    %cst_43 = arith.constant 1.000000e+00 : f32
    %145 = vector.broadcast %cst_43 : f32 to vector<2x128xf32>
    %146 = arith.addf %145, %144 : vector<2x128xf32>
    %147 = arith.divf %145, %146 : vector<2x128xf32>
    %148 = math.tanh %142 : vector<2x128xf32>
    %149 = vector.extract_strided_slice %147 {offsets = [0, 0], sizes = [2, 32], strides = [1, 1]} : vector<2x128xf32> to vector<2x32xf32>
    %150 = vector.extract_strided_slice %147 {offsets = [0, 32], sizes = [2, 32], strides = [1, 1]} : vector<2x128xf32> to vector<2x32xf32>
    %151 = vector.extract_strided_slice %148 {offsets = [0, 64], sizes = [2, 32], strides = [1, 1]} : vector<2x128xf32> to vector<2x32xf32>
    %152 = vector.extract_strided_slice %147 {offsets = [0, 96], sizes = [2, 32], strides = [1, 1]} : vector<2x128xf32> to vector<2x32xf32>
    %153 = arith.mulf %150, %113 : vector<2x32xf32>
    %154 = arith.mulf %149, %151 : vector<2x32xf32>
    %155 = arith.addf %153, %154 : vector<2x32xf32>
    %156 = math.tanh %155 : vector<2x32xf32>
    %157 = arith.mulf %152, %156 : vector<2x32xf32>
    %cst_44 = arith.constant dense<0.000000e+00> : vector<2x128xf32>
    %158 = tpu.matmul %157, %3, %cst_44 {dimension_numbers = #tpu.dot_dimension_numbers<[1], [0], [0], [1], [0, 0, 1, 1], [], []>} : vector<2x32xf32>, vector<32x128xf32>, vector<2x128xf32> -> vector<2x128xf32>
    %cst_45 = arith.constant dense<0.000000e+00> : vector<2x128xf32>
    %159 = tpu.matmul %135, %4, %cst_45 {dimension_numbers = #tpu.dot_dimension_numbers<[1], [0], [0], [1], [0, 0, 1, 1], [], []>} : vector<2x32xf32>, vector<32x128xf32>, vector<2x128xf32> -> vector<2x128xf32>
    %160 = arith.addf %158, %159 : vector<2x128xf32>
    %161 = vector.broadcast %5 : vector<1x128xf32> to vector<2x128xf32>
    %162 = arith.addf %160, %161 : vector<2x128xf32>
    %163 = arith.negf %162 : vector<2x128xf32>
    %164 = math.exp %163 : vector<2x128xf32>
    %cst_46 = arith.constant 1.000000e+00 : f32
    %165 = vector.broadcast %cst_46 : f32 to vector<2x128xf32>
    %166 = arith.addf %165, %164 : vector<2x128xf32>
    %167 = arith.divf %165, %166 : vector<2x128xf32>
    %168 = math.tanh %162 : vector<2x128xf32>
    %169 = vector.extract_strided_slice %167 {offsets = [0, 0], sizes = [2, 32], strides = [1, 1]} : vector<2x128xf32> to vector<2x32xf32>
    %170 = vector.extract_strided_slice %167 {offsets = [0, 32], sizes = [2, 32], strides = [1, 1]} : vector<2x128xf32> to vector<2x32xf32>
    %171 = vector.extract_strided_slice %168 {offsets = [0, 64], sizes = [2, 32], strides = [1, 1]} : vector<2x128xf32> to vector<2x32xf32>
    %172 = vector.extract_strided_slice %167 {offsets = [0, 96], sizes = [2, 32], strides = [1, 1]} : vector<2x128xf32> to vector<2x32xf32>
    %173 = arith.mulf %170, %133 : vector<2x32xf32>
    %174 = arith.mulf %169, %171 : vector<2x32xf32>
    %175 = arith.addf %173, %174 : vector<2x32xf32>
    %176 = math.tanh %175 : vector<2x32xf32>
    %177 = arith.mulf %172, %176 : vector<2x32xf32>
    %c4 = arith.constant 4 : index
    %c0_47 = arith.constant 0 : index
    %c0_48 = arith.constant 0 : index
    %178 = vector.load %arg0[%c4, %c0_47, %c0_48] : memref<8x2x8xf32, #tpu.memory_space<vmem>>, vector<1x2x8xf32>
    %179 = vector.shape_cast %178 : vector<1x2x8xf32> to vector<2x8xf32>
    %cst_49 = arith.constant dense<0.000000e+00> : vector<2x128xf32>
    %180 = tpu.matmul %179, %0, %cst_49 {dimension_numbers = #tpu.dot_dimension_numbers<[1], [0], [0], [1], [0, 0, 1, 1], [], []>} : vector<2x8xf32>, vector<8x128xf32>, vector<2x128xf32> -> vector<2x128xf32>
    %cst_50 = arith.constant dense<0.000000e+00> : vector<2x128xf32>
    %181 = tpu.matmul %157, %1, %cst_50 {dimension_numbers = #tpu.dot_dimension_numbers<[1], [0], [0], [1], [0, 0, 1, 1], [], []>} : vector<2x32xf32>, vector<32x128xf32>, vector<2x128xf32> -> vector<2x128xf32>
    %182 = arith.addf %180, %181 : vector<2x128xf32>
    %183 = vector.broadcast %2 : vector<1x128xf32> to vector<2x128xf32>
    %184 = arith.addf %182, %183 : vector<2x128xf32>
    %185 = arith.negf %184 : vector<2x128xf32>
    %186 = math.exp %185 : vector<2x128xf32>
    %cst_51 = arith.constant 1.000000e+00 : f32
    %187 = vector.broadcast %cst_51 : f32 to vector<2x128xf32>
    %188 = arith.addf %187, %186 : vector<2x128xf32>
    %189 = arith.divf %187, %188 : vector<2x128xf32>
    %190 = math.tanh %184 : vector<2x128xf32>
    %191 = vector.extract_strided_slice %189 {offsets = [0, 0], sizes = [2, 32], strides = [1, 1]} : vector<2x128xf32> to vector<2x32xf32>
    %192 = vector.extract_strided_slice %189 {offsets = [0, 32], sizes = [2, 32], strides = [1, 1]} : vector<2x128xf32> to vector<2x32xf32>
    %193 = vector.extract_strided_slice %190 {offsets = [0, 64], sizes = [2, 32], strides = [1, 1]} : vector<2x128xf32> to vector<2x32xf32>
    %194 = vector.extract_strided_slice %189 {offsets = [0, 96], sizes = [2, 32], strides = [1, 1]} : vector<2x128xf32> to vector<2x32xf32>
    %195 = arith.mulf %192, %155 : vector<2x32xf32>
    %196 = arith.mulf %191, %193 : vector<2x32xf32>
    %197 = arith.addf %195, %196 : vector<2x32xf32>
    %198 = math.tanh %197 : vector<2x32xf32>
    %199 = arith.mulf %194, %198 : vector<2x32xf32>
    %cst_52 = arith.constant dense<0.000000e+00> : vector<2x128xf32>
    %200 = tpu.matmul %199, %3, %cst_52 {dimension_numbers = #tpu.dot_dimension_numbers<[1], [0], [0], [1], [0, 0, 1, 1], [], []>} : vector<2x32xf32>, vector<32x128xf32>, vector<2x128xf32> -> vector<2x128xf32>
    %cst_53 = arith.constant dense<0.000000e+00> : vector<2x128xf32>
    %201 = tpu.matmul %177, %4, %cst_53 {dimension_numbers = #tpu.dot_dimension_numbers<[1], [0], [0], [1], [0, 0, 1, 1], [], []>} : vector<2x32xf32>, vector<32x128xf32>, vector<2x128xf32> -> vector<2x128xf32>
    %202 = arith.addf %200, %201 : vector<2x128xf32>
    %203 = vector.broadcast %5 : vector<1x128xf32> to vector<2x128xf32>
    %204 = arith.addf %202, %203 : vector<2x128xf32>
    %205 = arith.negf %204 : vector<2x128xf32>
    %206 = math.exp %205 : vector<2x128xf32>
    %cst_54 = arith.constant 1.000000e+00 : f32
    %207 = vector.broadcast %cst_54 : f32 to vector<2x128xf32>
    %208 = arith.addf %207, %206 : vector<2x128xf32>
    %209 = arith.divf %207, %208 : vector<2x128xf32>
    %210 = math.tanh %204 : vector<2x128xf32>
    %211 = vector.extract_strided_slice %209 {offsets = [0, 0], sizes = [2, 32], strides = [1, 1]} : vector<2x128xf32> to vector<2x32xf32>
    %212 = vector.extract_strided_slice %209 {offsets = [0, 32], sizes = [2, 32], strides = [1, 1]} : vector<2x128xf32> to vector<2x32xf32>
    %213 = vector.extract_strided_slice %210 {offsets = [0, 64], sizes = [2, 32], strides = [1, 1]} : vector<2x128xf32> to vector<2x32xf32>
    %214 = vector.extract_strided_slice %209 {offsets = [0, 96], sizes = [2, 32], strides = [1, 1]} : vector<2x128xf32> to vector<2x32xf32>
    %215 = arith.mulf %212, %175 : vector<2x32xf32>
    %216 = arith.mulf %211, %213 : vector<2x32xf32>
    %217 = arith.addf %215, %216 : vector<2x32xf32>
    %218 = math.tanh %217 : vector<2x32xf32>
    %219 = arith.mulf %214, %218 : vector<2x32xf32>
    %c5 = arith.constant 5 : index
    %c0_55 = arith.constant 0 : index
    %c0_56 = arith.constant 0 : index
    %220 = vector.load %arg0[%c5, %c0_55, %c0_56] : memref<8x2x8xf32, #tpu.memory_space<vmem>>, vector<1x2x8xf32>
    %221 = vector.shape_cast %220 : vector<1x2x8xf32> to vector<2x8xf32>
    %cst_57 = arith.constant dense<0.000000e+00> : vector<2x128xf32>
    %222 = tpu.matmul %221, %0, %cst_57 {dimension_numbers = #tpu.dot_dimension_numbers<[1], [0], [0], [1], [0, 0, 1, 1], [], []>} : vector<2x8xf32>, vector<8x128xf32>, vector<2x128xf32> -> vector<2x128xf32>
    %cst_58 = arith.constant dense<0.000000e+00> : vector<2x128xf32>
    %223 = tpu.matmul %199, %1, %cst_58 {dimension_numbers = #tpu.dot_dimension_numbers<[1], [0], [0], [1], [0, 0, 1, 1], [], []>} : vector<2x32xf32>, vector<32x128xf32>, vector<2x128xf32> -> vector<2x128xf32>
    %224 = arith.addf %222, %223 : vector<2x128xf32>
    %225 = vector.broadcast %2 : vector<1x128xf32> to vector<2x128xf32>
    %226 = arith.addf %224, %225 : vector<2x128xf32>
    %227 = arith.negf %226 : vector<2x128xf32>
    %228 = math.exp %227 : vector<2x128xf32>
    %cst_59 = arith.constant 1.000000e+00 : f32
    %229 = vector.broadcast %cst_59 : f32 to vector<2x128xf32>
    %230 = arith.addf %229, %228 : vector<2x128xf32>
    %231 = arith.divf %229, %230 : vector<2x128xf32>
    %232 = math.tanh %226 : vector<2x128xf32>
    %233 = vector.extract_strided_slice %231 {offsets = [0, 0], sizes = [2, 32], strides = [1, 1]} : vector<2x128xf32> to vector<2x32xf32>
    %234 = vector.extract_strided_slice %231 {offsets = [0, 32], sizes = [2, 32], strides = [1, 1]} : vector<2x128xf32> to vector<2x32xf32>
    %235 = vector.extract_strided_slice %232 {offsets = [0, 64], sizes = [2, 32], strides = [1, 1]} : vector<2x128xf32> to vector<2x32xf32>
    %236 = vector.extract_strided_slice %231 {offsets = [0, 96], sizes = [2, 32], strides = [1, 1]} : vector<2x128xf32> to vector<2x32xf32>
    %237 = arith.mulf %234, %197 : vector<2x32xf32>
    %238 = arith.mulf %233, %235 : vector<2x32xf32>
    %239 = arith.addf %237, %238 : vector<2x32xf32>
    %240 = math.tanh %239 : vector<2x32xf32>
    %241 = arith.mulf %236, %240 : vector<2x32xf32>
    %cst_60 = arith.constant dense<0.000000e+00> : vector<2x128xf32>
    %242 = tpu.matmul %241, %3, %cst_60 {dimension_numbers = #tpu.dot_dimension_numbers<[1], [0], [0], [1], [0, 0, 1, 1], [], []>} : vector<2x32xf32>, vector<32x128xf32>, vector<2x128xf32> -> vector<2x128xf32>
    %cst_61 = arith.constant dense<0.000000e+00> : vector<2x128xf32>
    %243 = tpu.matmul %219, %4, %cst_61 {dimension_numbers = #tpu.dot_dimension_numbers<[1], [0], [0], [1], [0, 0, 1, 1], [], []>} : vector<2x32xf32>, vector<32x128xf32>, vector<2x128xf32> -> vector<2x128xf32>
    %244 = arith.addf %242, %243 : vector<2x128xf32>
    %245 = vector.broadcast %5 : vector<1x128xf32> to vector<2x128xf32>
    %246 = arith.addf %244, %245 : vector<2x128xf32>
    %247 = arith.negf %246 : vector<2x128xf32>
    %248 = math.exp %247 : vector<2x128xf32>
    %cst_62 = arith.constant 1.000000e+00 : f32
    %249 = vector.broadcast %cst_62 : f32 to vector<2x128xf32>
    %250 = arith.addf %249, %248 : vector<2x128xf32>
    %251 = arith.divf %249, %250 : vector<2x128xf32>
    %252 = math.tanh %246 : vector<2x128xf32>
    %253 = vector.extract_strided_slice %251 {offsets = [0, 0], sizes = [2, 32], strides = [1, 1]} : vector<2x128xf32> to vector<2x32xf32>
    %254 = vector.extract_strided_slice %251 {offsets = [0, 32], sizes = [2, 32], strides = [1, 1]} : vector<2x128xf32> to vector<2x32xf32>
    %255 = vector.extract_strided_slice %252 {offsets = [0, 64], sizes = [2, 32], strides = [1, 1]} : vector<2x128xf32> to vector<2x32xf32>
    %256 = vector.extract_strided_slice %251 {offsets = [0, 96], sizes = [2, 32], strides = [1, 1]} : vector<2x128xf32> to vector<2x32xf32>
    %257 = arith.mulf %254, %217 : vector<2x32xf32>
    %258 = arith.mulf %253, %255 : vector<2x32xf32>
    %259 = arith.addf %257, %258 : vector<2x32xf32>
    %260 = math.tanh %259 : vector<2x32xf32>
    %261 = arith.mulf %256, %260 : vector<2x32xf32>
    %c6 = arith.constant 6 : index
    %c0_63 = arith.constant 0 : index
    %c0_64 = arith.constant 0 : index
    %262 = vector.load %arg0[%c6, %c0_63, %c0_64] : memref<8x2x8xf32, #tpu.memory_space<vmem>>, vector<1x2x8xf32>
    %263 = vector.shape_cast %262 : vector<1x2x8xf32> to vector<2x8xf32>
    %cst_65 = arith.constant dense<0.000000e+00> : vector<2x128xf32>
    %264 = tpu.matmul %263, %0, %cst_65 {dimension_numbers = #tpu.dot_dimension_numbers<[1], [0], [0], [1], [0, 0, 1, 1], [], []>} : vector<2x8xf32>, vector<8x128xf32>, vector<2x128xf32> -> vector<2x128xf32>
    %cst_66 = arith.constant dense<0.000000e+00> : vector<2x128xf32>
    %265 = tpu.matmul %241, %1, %cst_66 {dimension_numbers = #tpu.dot_dimension_numbers<[1], [0], [0], [1], [0, 0, 1, 1], [], []>} : vector<2x32xf32>, vector<32x128xf32>, vector<2x128xf32> -> vector<2x128xf32>
    %266 = arith.addf %264, %265 : vector<2x128xf32>
    %267 = vector.broadcast %2 : vector<1x128xf32> to vector<2x128xf32>
    %268 = arith.addf %266, %267 : vector<2x128xf32>
    %269 = arith.negf %268 : vector<2x128xf32>
    %270 = math.exp %269 : vector<2x128xf32>
    %cst_67 = arith.constant 1.000000e+00 : f32
    %271 = vector.broadcast %cst_67 : f32 to vector<2x128xf32>
    %272 = arith.addf %271, %270 : vector<2x128xf32>
    %273 = arith.divf %271, %272 : vector<2x128xf32>
    %274 = math.tanh %268 : vector<2x128xf32>
    %275 = vector.extract_strided_slice %273 {offsets = [0, 0], sizes = [2, 32], strides = [1, 1]} : vector<2x128xf32> to vector<2x32xf32>
    %276 = vector.extract_strided_slice %273 {offsets = [0, 32], sizes = [2, 32], strides = [1, 1]} : vector<2x128xf32> to vector<2x32xf32>
    %277 = vector.extract_strided_slice %274 {offsets = [0, 64], sizes = [2, 32], strides = [1, 1]} : vector<2x128xf32> to vector<2x32xf32>
    %278 = vector.extract_strided_slice %273 {offsets = [0, 96], sizes = [2, 32], strides = [1, 1]} : vector<2x128xf32> to vector<2x32xf32>
    %279 = arith.mulf %276, %239 : vector<2x32xf32>
    %280 = arith.mulf %275, %277 : vector<2x32xf32>
    %281 = arith.addf %279, %280 : vector<2x32xf32>
    %282 = math.tanh %281 : vector<2x32xf32>
    %283 = arith.mulf %278, %282 : vector<2x32xf32>
    %cst_68 = arith.constant dense<0.000000e+00> : vector<2x128xf32>
    %284 = tpu.matmul %283, %3, %cst_68 {dimension_numbers = #tpu.dot_dimension_numbers<[1], [0], [0], [1], [0, 0, 1, 1], [], []>} : vector<2x32xf32>, vector<32x128xf32>, vector<2x128xf32> -> vector<2x128xf32>
    %cst_69 = arith.constant dense<0.000000e+00> : vector<2x128xf32>
    %285 = tpu.matmul %261, %4, %cst_69 {dimension_numbers = #tpu.dot_dimension_numbers<[1], [0], [0], [1], [0, 0, 1, 1], [], []>} : vector<2x32xf32>, vector<32x128xf32>, vector<2x128xf32> -> vector<2x128xf32>
    %286 = arith.addf %284, %285 : vector<2x128xf32>
    %287 = vector.broadcast %5 : vector<1x128xf32> to vector<2x128xf32>
    %288 = arith.addf %286, %287 : vector<2x128xf32>
    %289 = arith.negf %288 : vector<2x128xf32>
    %290 = math.exp %289 : vector<2x128xf32>
    %cst_70 = arith.constant 1.000000e+00 : f32
    %291 = vector.broadcast %cst_70 : f32 to vector<2x128xf32>
    %292 = arith.addf %291, %290 : vector<2x128xf32>
    %293 = arith.divf %291, %292 : vector<2x128xf32>
    %294 = math.tanh %288 : vector<2x128xf32>
    %295 = vector.extract_strided_slice %293 {offsets = [0, 0], sizes = [2, 32], strides = [1, 1]} : vector<2x128xf32> to vector<2x32xf32>
    %296 = vector.extract_strided_slice %293 {offsets = [0, 32], sizes = [2, 32], strides = [1, 1]} : vector<2x128xf32> to vector<2x32xf32>
    %297 = vector.extract_strided_slice %294 {offsets = [0, 64], sizes = [2, 32], strides = [1, 1]} : vector<2x128xf32> to vector<2x32xf32>
    %298 = vector.extract_strided_slice %293 {offsets = [0, 96], sizes = [2, 32], strides = [1, 1]} : vector<2x128xf32> to vector<2x32xf32>
    %299 = arith.mulf %296, %259 : vector<2x32xf32>
    %300 = arith.mulf %295, %297 : vector<2x32xf32>
    %301 = arith.addf %299, %300 : vector<2x32xf32>
    %302 = math.tanh %301 : vector<2x32xf32>
    %303 = arith.mulf %298, %302 : vector<2x32xf32>
    %c7 = arith.constant 7 : index
    %c0_71 = arith.constant 0 : index
    %c0_72 = arith.constant 0 : index
    %304 = vector.load %arg0[%c7, %c0_71, %c0_72] : memref<8x2x8xf32, #tpu.memory_space<vmem>>, vector<1x2x8xf32>
    %305 = vector.shape_cast %304 : vector<1x2x8xf32> to vector<2x8xf32>
    %cst_73 = arith.constant dense<0.000000e+00> : vector<2x128xf32>
    %306 = tpu.matmul %305, %0, %cst_73 {dimension_numbers = #tpu.dot_dimension_numbers<[1], [0], [0], [1], [0, 0, 1, 1], [], []>} : vector<2x8xf32>, vector<8x128xf32>, vector<2x128xf32> -> vector<2x128xf32>
    %cst_74 = arith.constant dense<0.000000e+00> : vector<2x128xf32>
    %307 = tpu.matmul %283, %1, %cst_74 {dimension_numbers = #tpu.dot_dimension_numbers<[1], [0], [0], [1], [0, 0, 1, 1], [], []>} : vector<2x32xf32>, vector<32x128xf32>, vector<2x128xf32> -> vector<2x128xf32>
    %308 = arith.addf %306, %307 : vector<2x128xf32>
    %309 = vector.broadcast %2 : vector<1x128xf32> to vector<2x128xf32>
    %310 = arith.addf %308, %309 : vector<2x128xf32>
    %311 = arith.negf %310 : vector<2x128xf32>
    %312 = math.exp %311 : vector<2x128xf32>
    %cst_75 = arith.constant 1.000000e+00 : f32
    %313 = vector.broadcast %cst_75 : f32 to vector<2x128xf32>
    %314 = arith.addf %313, %312 : vector<2x128xf32>
    %315 = arith.divf %313, %314 : vector<2x128xf32>
    %316 = math.tanh %310 : vector<2x128xf32>
    %317 = vector.extract_strided_slice %315 {offsets = [0, 0], sizes = [2, 32], strides = [1, 1]} : vector<2x128xf32> to vector<2x32xf32>
    %318 = vector.extract_strided_slice %315 {offsets = [0, 32], sizes = [2, 32], strides = [1, 1]} : vector<2x128xf32> to vector<2x32xf32>
    %319 = vector.extract_strided_slice %316 {offsets = [0, 64], sizes = [2, 32], strides = [1, 1]} : vector<2x128xf32> to vector<2x32xf32>
    %320 = vector.extract_strided_slice %315 {offsets = [0, 96], sizes = [2, 32], strides = [1, 1]} : vector<2x128xf32> to vector<2x32xf32>
    %321 = arith.mulf %318, %281 : vector<2x32xf32>
    %322 = arith.mulf %317, %319 : vector<2x32xf32>
    %323 = arith.addf %321, %322 : vector<2x32xf32>
    %324 = math.tanh %323 : vector<2x32xf32>
    %325 = arith.mulf %320, %324 : vector<2x32xf32>
    %cst_76 = arith.constant dense<0.000000e+00> : vector<2x128xf32>
    %326 = tpu.matmul %325, %3, %cst_76 {dimension_numbers = #tpu.dot_dimension_numbers<[1], [0], [0], [1], [0, 0, 1, 1], [], []>} : vector<2x32xf32>, vector<32x128xf32>, vector<2x128xf32> -> vector<2x128xf32>
    %cst_77 = arith.constant dense<0.000000e+00> : vector<2x128xf32>
    %327 = tpu.matmul %303, %4, %cst_77 {dimension_numbers = #tpu.dot_dimension_numbers<[1], [0], [0], [1], [0, 0, 1, 1], [], []>} : vector<2x32xf32>, vector<32x128xf32>, vector<2x128xf32> -> vector<2x128xf32>
    %328 = arith.addf %326, %327 : vector<2x128xf32>
    %329 = vector.broadcast %5 : vector<1x128xf32> to vector<2x128xf32>
    %330 = arith.addf %328, %329 : vector<2x128xf32>
    %331 = arith.negf %330 : vector<2x128xf32>
    %332 = math.exp %331 : vector<2x128xf32>
    %cst_78 = arith.constant 1.000000e+00 : f32
    %333 = vector.broadcast %cst_78 : f32 to vector<2x128xf32>
    %334 = arith.addf %333, %332 : vector<2x128xf32>
    %335 = arith.divf %333, %334 : vector<2x128xf32>
    %336 = math.tanh %330 : vector<2x128xf32>
    %337 = vector.extract_strided_slice %335 {offsets = [0, 0], sizes = [2, 32], strides = [1, 1]} : vector<2x128xf32> to vector<2x32xf32>
    %338 = vector.extract_strided_slice %335 {offsets = [0, 32], sizes = [2, 32], strides = [1, 1]} : vector<2x128xf32> to vector<2x32xf32>
    %339 = vector.extract_strided_slice %336 {offsets = [0, 64], sizes = [2, 32], strides = [1, 1]} : vector<2x128xf32> to vector<2x32xf32>
    %340 = vector.extract_strided_slice %335 {offsets = [0, 96], sizes = [2, 32], strides = [1, 1]} : vector<2x128xf32> to vector<2x32xf32>
    %341 = arith.mulf %338, %301 : vector<2x32xf32>
    %342 = arith.mulf %337, %339 : vector<2x32xf32>
    %343 = arith.addf %341, %342 : vector<2x32xf32>
    %344 = math.tanh %343 : vector<2x32xf32>
    %345 = arith.mulf %340, %344 : vector<2x32xf32>
    %c0_79 = arith.constant 0 : index
    %c0_80 = arith.constant 0 : index
    %346 = vector.load %arg7[%c0_79, %c0_80] : memref<32x128xf32, #tpu.memory_space<vmem>>, vector<32x128xf32>
    %cst_81 = arith.constant dense<0.000000e+00> : vector<2x128xf32>
    %347 = tpu.matmul %345, %346, %cst_81 {dimension_numbers = #tpu.dot_dimension_numbers<[1], [0], [0], [1], [0, 0, 1, 1], [], []>} : vector<2x32xf32>, vector<32x128xf32>, vector<2x128xf32> -> vector<2x128xf32>
    %c0_82 = arith.constant 0 : index
    %c0_83 = arith.constant 0 : index
    %348 = vector.load %arg8[%c0_82, %c0_83] : memref<1x128xf32, #tpu.memory_space<vmem>>, vector<1x128xf32>
    %349 = vector.broadcast %348 : vector<1x128xf32> to vector<2x128xf32>
    %350 = arith.addf %347, %349 : vector<2x128xf32>
    %c0_84 = arith.constant 0 : index
    %c0_85 = arith.constant 0 : index
    %351 = vector.load %arg9[%c0_84, %c0_85] : memref<2x128xf32, #tpu.memory_space<vmem>>, vector<2x128xf32>
    tpu.vector_store %arg9[%c0_84, %c0_85], %350 {strides = array<i32>} : memref<2x128xf32, #tpu.memory_space<vmem>>, vector<2x128xf32>,
    return
  }
}

</mosaic_0001>

<llo_original>
// kernel: tpu_custom_call.1
$region0: #{tpu_custom_call.1}
  #allocation0 [shape = 'u32[]', space=smem, size = 0x4, offset = 0x4, fixed_abs, tag = 'smem constant byte address 0x4 - core index']
  #allocation1 [shape = 'u32[144,128]{1,0:T(1,128)}', space=vmem, size = 0x12000, scoped, tag = 'internal scratch']
  %s0 = inlined_call_operand.hbm [shape: f32[8,2,8], index: 0, kind: input, shape index: {}]
  %s1 = inlined_call_operand.hbm [shape: f32[8,128], index: 1, kind: input, shape index: {}]
  %s2 = inlined_call_operand.hbm [shape: f32[32,128], index: 2, kind: input, shape index: {}]
  %s3 = inlined_call_operand.vmem [shape: f32[1,128], index: 3, kind: input, shape index: {}]
  %s4 = inlined_call_operand.hbm [shape: f32[32,128], index: 4, kind: input, shape index: {}]
  %s5 = inlined_call_operand.hbm [shape: f32[32,128], index: 5, kind: input, shape index: {}]
  %s6 = inlined_call_operand.vmem [shape: f32[1,128], index: 6, kind: input, shape index: {}]
  %s7 = inlined_call_operand.hbm [shape: f32[32,128], index: 7, kind: input, shape index: {}]
  %s8 = inlined_call_operand.vmem [shape: f32[1,128], index: 8, kind: input, shape index: {}]
  %s9 = inlined_call_operand.hbm [shape: f32[2,128], index: 9, kind: output, shape index: {}]
  %s10 = sld [smem:[#allocation0]]
  $region70: #{tpu_custom_call.1} parent=0
    _
  %s12 = ssub.s32 1, %s10
  %s13 = scalar_select 0, %s12, %s10
  $region1: #{tpu_custom_call.1} parent=0
    #allocation2 [shape = 'u8[8192]{0}', space=vmem, size = 0x2000, scoped, tag = 'input window, operand 0, single buffered']
    #allocation3 [shape = 's32[1]{0}', space=sflag, size = 0x4, scoped, tag = 'scoped memory for tpu_custom_call.1']
    #allocation4 [shape = 's32[1]{0}', space=sflag, size = 0x4, scoped, tag = 'scoped memory for tpu_custom_call.1']
    #allocation5 [shape = 'u8[4096]{0}', space=vmem, size = 0x1000, scoped, tag = 'input window, operand 1, single buffered']
    #allocation6 [shape = 's32[1]{0}', space=sflag, size = 0x4, scoped, tag = 'scoped memory for tpu_custom_call.1']
    #allocation7 [shape = 'u8[16384]{0}', space=vmem, size = 0x4000, scoped, tag = 'input window, operand 2, single buffered']
    #allocation8 [shape = 'u8[16384]{0}', space=vmem, size = 0x4000, scoped, tag = 'input window, operand 4, single buffered']
    #allocation9 [shape = 's32[1]{0}', space=sflag, size = 0x4, scoped, tag = 'scoped memory for tpu_custom_call.1']
    #allocation10 [shape = 'u8[16384]{0}', space=vmem, size = 0x4000, scoped, tag = 'input window, operand 5, single buffered']
    #allocation11 [shape = 'u8[16384]{0}', space=vmem, size = 0x4000, scoped, tag = 'input window, operand 7, single buffered']
    #allocation12 [shape = 's32[1]{0}', space=sflag, size = 0x4, scoped, tag = 'scoped memory for tpu_custom_call.1']
    #allocation13 [shape = 'u8[1024]{0}', space=vmem, size = 0x400, scoped, tag = 'output window, operand 0, single buffered']
    %14 = vsyncpa [#allocation3], 0
    %15 = vsyncpa [#allocation6], 0
    %16 = vsyncpa [#allocation9], 0
    %17 = vsyncpa [#allocation12], 0
    %18 = vsyncpa [#allocation4], 0
    // Predicated region
    $region2: #{tpu_custom_call.1} parent=1 // pred_check
      _
    $region3: #{tpu_custom_call.1} parent=1 // pred_check_branch
      %20 = sbr.rel (0) target = $region5
    $region4: #{tpu_custom_call.1} parent=1 // pred_region
      %s22 = ssub.s32 256, 256
      %23 = vsyncadd [#allocation3], %s22
      %s24 = sshll.u32 [#allocation2], 4
      %s25 = int_to_ptr.vmem [resolvable:$true] %s24
      %30 = dma.hbm_to_vmem [thread:$0]  %s0, 256, %s25, [#allocation3], 32, 32, 2
    $region5: #{tpu_custom_call.1} parent=1 // pred_fallthru
      _
    // Predicated region
    $region6: #{tpu_custom_call.1} parent=1 // pred_check
      _
    $region7: #{tpu_custom_call.1} parent=1 // pred_check_branch
      %32 = sbr.rel (0) target = $region9
    $region8: #{tpu_custom_call.1} parent=1 // pred_region
      %s34 = ssub.s32 128, 128
      %35 = vsyncadd [#allocation6], %s34
      %s37 = sshll.u32 [#allocation5], 4
      %s38 = int_to_ptr.vmem [resolvable:$true] %s37
      %40 = dma.hbm_to_vmem [thread:$0]  %s1, 128, %s38, [#allocation6]
    $region9: #{tpu_custom_call.1} parent=1 // pred_fallthru
      _
    // Predicated region
    $region10: #{tpu_custom_call.1} parent=1 // pred_check
      _
    $region11: #{tpu_custom_call.1} parent=1 // pred_check_branch
      %42 = sbr.rel (0) target = $region13
    $region12: #{tpu_custom_call.1} parent=1 // pred_region
      %s44 = ssub.s32 512, 512
      %45 = vsyncadd [#allocation6], %s44
      %s46 = sshll.u32 [#allocation7], 4
      %s47 = int_to_ptr.vmem [resolvable:$true] %s46
      %52 = dma.hbm_to_vmem [thread:$0]  %s2, 512, %s47, [#allocation6], 128, 128, 8
    $region13: #{tpu_custom_call.1} parent=1 // pred_fallthru
      _
    // Predicated region
    $region14: #{tpu_custom_call.1} parent=1 // pred_check
      _
    $region15: #{tpu_custom_call.1} parent=1 // pred_check_branch
      %54 = sbr.rel (0) target = $region17
    $region16: #{tpu_custom_call.1} parent=1 // pred_region
      _
    $region17: #{tpu_custom_call.1} parent=1 // pred_fallthru
      _
    // Predicated region
    $region18: #{tpu_custom_call.1} parent=1 // pred_check
      _
    $region19: #{tpu_custom_call.1} parent=1 // pred_check_branch
      %56 = sbr.rel (0) target = $region21
    $region20: #{tpu_custom_call.1} parent=1 // pred_region
      %s58 = ssub.s32 512, 512
      %59 = vsyncadd [#allocation9], %s58
      %s60 = sshll.u32 [#allocation8], 4
      %s61 = int_to_ptr.vmem [resolvable:$true] %s60
      %66 = dma.hbm_to_vmem [thread:$0]  %s4, 512, %s61, [#allocation9], 128, 128, 8
    $region21: #{tpu_custom_call.1} parent=1 // pred_fallthru
      _
    // Predicated region
    $region22: #{tpu_custom_call.1} parent=1 // pred_check
      _
    $region23: #{tpu_custom_call.1} parent=1 // pred_check_branch
      %68 = sbr.rel (0) target = $region25
    $region24: #{tpu_custom_call.1} parent=1 // pred_region
      %s70 = ssub.s32 512, 512
      %71 = vsyncadd [#allocation9], %s70
      %s72 = sshll.u32 [#allocation10], 4
      %s73 = int_to_ptr.vmem [resolvable:$true] %s72
      %78 = dma.hbm_to_vmem [thread:$0]  %s5, 512, %s73, [#allocation9], 128, 128, 8
    $region25: #{tpu_custom_call.1} parent=1 // pred_fallthru
      _
    // Predicated region
    $region26: #{tpu_custom_call.1} parent=1 // pred_check
      _
    $region27: #{tpu_custom_call.1} parent=1 // pred_check_branch
      %80 = sbr.rel (0) target = $region29
    $region28: #{tpu_custom_call.1} parent=1 // pred_region
      _
    $region29: #{tpu_custom_call.1} parent=1 // pred_fallthru
      _
    // Predicated region
    $region30: #{tpu_custom_call.1} parent=1 // pred_check
      _
    $region31: #{tpu_custom_call.1} parent=1 // pred_check_branch
      %82 = sbr.rel (0) target = $region33
    $region32: #{tpu_custom_call.1} parent=1 // pred_region
      %s84 = ssub.s32 512, 512
      %85 = vsyncadd [#allocation12], %s84
      %s86 = sshll.u32 [#allocation11], 4
      %s87 = int_to_ptr.vmem [resolvable:$true] %s86
      %92 = dma.hbm_to_vmem [thread:$0]  %s7, 512, %s87, [#allocation12], 128, 128, 8
    $region33: #{tpu_custom_call.1} parent=1 // pred_fallthru
      _
    // Predicated region
    $region34: #{tpu_custom_call.1} parent=1 // pred_check
      _
    $region35: #{tpu_custom_call.1} parent=1 // pred_check_branch
      %94 = sbr.rel (0) target = $region37
    $region36: #{tpu_custom_call.1} parent=1 // pred_region
      _
    $region37: #{tpu_custom_call.1} parent=1 // pred_fallthru
      _
    // Predicated region
    $region38: #{tpu_custom_call.1} parent=1 // pred_check
      _
    $region39: #{tpu_custom_call.1} parent=1 // pred_check_branch
      %96 = sbr.rel (0) target = $region41
    $region40: #{tpu_custom_call.1} parent=1 // pred_region
      %97 = dma.done [#allocation3], 256
    $region41: #{tpu_custom_call.1} parent=1 // pred_fallthru
      _
    // Predicated region
    $region42: #{tpu_custom_call.1} parent=1 // pred_check
      _
    $region43: #{tpu_custom_call.1} parent=1 // pred_check_branch
      %99 = sbr.rel (0) target = $region45
    $region44: #{tpu_custom_call.1} parent=1 // pred_region
      %100 = dma.done [#allocation6], 128
    $region45: #{tpu_custom_call.1} parent=1 // pred_fallthru
      _
    // Predicated region
    $region46: #{tpu_custom_call.1} parent=1 // pred_check
      _
    $region47: #{tpu_custom_call.1} parent=1 // pred_check_branch
      %102 = sbr.rel (0) target = $region49
    $region48: #{tpu_custom_call.1} parent=1 // pred_region
      %103 = dma.done [#allocation6], 512
    $region49: #{tpu_custom_call.1} parent=1 // pred_fallthru
      _
    // Predicated region
    $region50: #{tpu_custom_call.1} parent=1 // pred_check
      _
    $region51: #{tpu_custom_call.1} parent=1 // pred_check_branch
      %105 = sbr.rel (0) target = $region53
    $region52: #{tpu_custom_call.1} parent=1 // pred_region
      %106 = dma.done [#allocation9], 512
    $region53: #{tpu_custom_call.1} parent=1 // pred_fallthru
      _
    // Predicated region
    $region54: #{tpu_custom_call.1} parent=1 // pred_check
      _
    $region55: #{tpu_custom_call.1} parent=1 // pred_check_branch
      %108 = sbr.rel (0) target = $region57
    $region56: #{tpu_custom_call.1} parent=1 // pred_region
      %109 = dma.done [#allocation9], 512
    $region57: #{tpu_custom_call.1} parent=1 // pred_fallthru
      _
    // Predicated region
    $region58: #{tpu_custom_call.1} parent=1 // pred_check
      _
    $region59: #{tpu_custom_call.1} parent=1 // pred_check_branch
      %111 = sbr.rel (0) target = $region61
    $region60: #{tpu_custom_call.1} parent=1 // pred_region
      %112 = dma.done [#allocation12], 512
    $region61: #{tpu_custom_call.1} parent=1 // pred_fallthru
      _
    %v113 = vld [vmem:[#allocation5] sm:$0xff]
    %v114 = vld [vmem:[#allocation7] sm:$0xff]
    %v115 = vld [vmem:[#allocation7 + $0x8] sm:$0xff]
    %v116 = vld [vmem:[#allocation7 + $0x10] sm:$0xff]
    %v117 = vld [vmem:[#allocation7 + $0x18] sm:$0xff]
    %v118 = vld [vmem:[%s3] sm:$0x1]
    %v119 = vld [vmem:[#allocation8] sm:$0xff]
    %v120 = vld [vmem:[#allocation8 + $0x8] sm:$0xff]
    %v121 = vld [vmem:[#allocation8 + $0x10] sm:$0xff]
    %v122 = vld [vmem:[#allocation8 + $0x18] sm:$0xff]
    %v123 = vld [vmem:[#allocation10] sm:$0xff]
    %v124 = vld [vmem:[#allocation10 + $0x8] sm:$0xff]
    %v125 = vld [vmem:[#allocation10 + $0x10] sm:$0xff]
    %v126 = vld [vmem:[#allocation10 + $0x18] sm:$0xff]
    %v127 = vld [vmem:[%s6] sm:$0x1]
    %v128 = vld [vmem:[#allocation2] sm:$0x3]
    %vm129 = vcmask 261120
    %v131 = vsel %vm129, 0.0, 0
    %133 = vmatprep.subr.mxu0 0.0
    %134 = vmatpush1.msra.mxu0 %v114
    %135 = vmatprep.subr.mxu0 0.0
    %136 = vmatpush1.msra.mxu0 %v115
    %137 = vmatprep.subr.mxu0 0.0
    %138 = vmatpush1.msra.mxu0 %v116
    %139 = vmatprep.subr.mxu0 0.0
    %140 = vmatpush1.msra.mxu0 %v117
    %141 = vmatprep.subr.mxu0 0.0
    %142 = vmatpush1.msra.mxu0 0.0
    %143 = vmatprep.subr.mxu0 0.0
    %144 = vmatpush1.msra.mxu0 0.0
    %145 = vmatprep.subr.mxu0 0.0
    %146 = vmatpush1.msra.mxu0 0.0
    %147 = vmatprep.subr.mxu0 0.0
    %148 = vmatpush1.msra.mxu0 0.0
    %149 = vmatprep.subr.mxu0 0.0
    %150 = vmatpush1.msra.mxu0 0.0
    %151 = vmatprep.subr.mxu0 0.0
    %152 = vmatpush1.msra.mxu0 0.0
    %153 = vmatprep.subr.mxu0 0.0
    %154 = vmatpush1.msra.mxu0 0.0
    %155 = vmatprep.subr.mxu0 0.0
    %156 = vmatpush1.msra.mxu0 0.0
    %157 = vmatprep.subr.mxu0 0.0
    %158 = vmatpush1.msra.mxu0 0.0
    %159 = vmatprep.subr.mxu0 0.0
    %160 = vmatpush1.msra.mxu0 0.0
    %161 = vmatprep.subr.mxu0 0.0
    %162 = vmatpush1.msra.mxu0 0.0
    %163 = vmatprep.subr.mxu0 0.0
    %164 = vmatpush1.msra.mxu0 0.0
    %165 = vmatprep.subr.mxu0 0.0
    %166 = vmatpush1.msra.mxu0 0.0
    %167 = vmatprep.subr.mxu0 0.0
    %168 = vmatpush1.msra.mxu0 0.0
    %169 = vmatprep.subr.mxu0 0.0
    %170 = vmatpush1.msra.mxu0 0.0
    %171 = vmatprep.subr.mxu0 0.0
    %172 = vmatpush1.msra.mxu0 0.0
    %173 = vmatprep.subr.mxu0 0.0
    %174 = vmatpush1.msra.mxu0 0.0
    %175 = vmatprep.subr.mxu0 0.0
    %176 = vmatpush1.msra.mxu0 0.0
    %177 = vmatprep.subr.mxu0 0.0
    %178 = vmatpush1.msra.mxu0 0.0
    %179 = vmatprep.subr.mxu0 0.0
    %180 = vmatpush1.msra.mxu0 0.0
    %181 = vmatprep.subr.mxu0 0.0
    %182 = vmatpush1.msra.mxu0 0.0
    %183 = vmatprep.subr.mxu0 0.0
    %184 = vmatpush1.msra.mxu0 0.0
    %185 = vmatprep.subr.mxu0 0.0
    %186 = vmatpush1.msra.mxu0 0.0
    %187 = vmatprep.subr.mxu0 0.0
    %188 = vmatpush1.msra.mxu0 0.0
    %189 = vmatprep.subr.mxu0 0.0
    %190 = vmatpush1.msra.mxu0 0.0
    %191 = vmatprep.subr.mxu0 0.0
    %192 = vmatpush1.msra.mxu0 0.0
    %193 = vmatprep.subr.mxu0 0.0
    %194 = vmatpush1.msra.mxu0 0.0
    %195 = vmatprep.subr.mxu0 0.0
    %196 = vmatpush1.msra.mxu0 0.0
    %197 = vmatprep.mubr.f32.mxu0 0.0
    %198 = vmatmul.mubr.f32.gmra.mrb[0].mxu0 %v131
    %v199 = vpop.f32.mrb[0].mxu0
    %v200 = vadd.f32 0.0, %v199
    %v201 = vpop.f32.mrb[0].mxu0
    %202 = vdwg.mxu0
    %vm203 = vcmask 64512
    %v205 = vsel %vm203, %v128, 0
    %207 = vmatprep.subr.mxu0 0.0
    %208 = vmatpush1.msra.mxu0 %v113
    %209 = vmatprep.subr.mxu0 0.0
    %210 = vmatpush1.msra.mxu0 0.0
    %211 = vmatprep.subr.mxu0 0.0
    %212 = vmatpush1.msra.mxu0 0.0
    %213 = vmatprep.subr.mxu0 0.0
    %214 = vmatpush1.msra.mxu0 0.0
    %215 = vmatprep.subr.mxu0 0.0
    %216 = vmatpush1.msra.mxu0 0.0
    %217 = vmatprep.subr.mxu0 0.0
    %218 = vmatpush1.msra.mxu0 0.0
    %219 = vmatprep.subr.mxu0 0.0
    %220 = vmatpush1.msra.mxu0 0.0
    %221 = vmatprep.subr.mxu0 0.0
    %222 = vmatpush1.msra.mxu0 0.0
    %223 = vmatprep.subr.mxu0 0.0
    %224 = vmatpush1.msra.mxu0 0.0
    %225 = vmatprep.subr.mxu0 0.0
    %226 = vmatpush1.msra.mxu0 0.0
    %227 = vmatprep.subr.mxu0 0.0
    %228 = vmatpush1.msra.mxu0 0.0
    %229 = vmatprep.subr.mxu0 0.0
    %230 = vmatpush1.msra.mxu0 0.0
    %231 = vmatprep.subr.mxu0 0.0
    %232 = vmatpush1.msra.mxu0 0.0
    %233 = vmatprep.subr.mxu0 0.0
    %234 = vmatpush1.msra.mxu0 0.0
    %235 = vmatprep.subr.mxu0 0.0
    %236 = vmatpush1.msra.mxu0 0.0
    %237 = vmatprep.subr.mxu0 0.0
    %238 = vmatpush1.msra.mxu0 0.0
    %239 = vmatprep.subr.mxu0 0.0
    %240 = vmatpush1.msra.mxu0 0.0
    %241 = vmatprep.subr.mxu0 0.0
    %242 = vmatpush1.msra.mxu0 0.0
    %243 = vmatprep.subr.mxu0 0.0
    %244 = vmatpush1.msra.mxu0 0.0
    %245 = vmatprep.subr.mxu0 0.0
    %246 = vmatpush1.msra.mxu0 0.0
    %247 = vmatprep.subr.mxu0 0.0
    %248 = vmatpush1.msra.mxu0 0.0
    %249 = vmatprep.subr.mxu0 0.0
    %250 = vmatpush1.msra.mxu0 0.0
    %251 = vmatprep.subr.mxu0 0.0
    %252 = vmatpush1.msra.mxu0 0.0
    %253 = vmatprep.subr.mxu0 0.0
    %254 = vmatpush1.msra.mxu0 0.0
    %255 = vmatprep.subr.mxu0 0.0
    %256 = vmatpush1.msra.mxu0 0.0
    %257 = vmatprep.subr.mxu0 0.0
    %258 = vmatpush1.msra.mxu0 0.0
    %259 = vmatprep.subr.mxu0 0.0
    %260 = vmatpush1.msra.mxu0 0.0
    %261 = vmatprep.subr.mxu0 0.0
    %262 = vmatpush1.msra.mxu0 0.0
    %263 = vmatprep.subr.mxu0 0.0
    %264 = vmatpush1.msra.mxu0 0.0
    %265 = vmatprep.subr.mxu0 0.0
    %266 = vmatpush1.msra.mxu0 0.0
    %267 = vmatprep.subr.mxu0 0.0
    %268 = vmatpush1.msra.mxu0 0.0
    %269 = vmatprep.subr.mxu0 0.0
    %270 = vmatpush1.msra.mxu0 0.0
    %271 = vmatprep.mubr.f32.mxu0 0.0
    %272 = vmatmul.mubr.f32.gmra.mrb[0].mxu0 %v205
    %v273 = vpop.f32.mrb[0].mxu0
    %v274 = vadd.f32 %v200, %v273
    %v275 = vpop.f32.mrb[0].mxu0
    %276 = vdwg.mxu0
    %v278 = vlaneseq
    %v279 = vshrl.u32 %v278, 7
    %v280 = vsub.s32 0, %v279
    %v281 = vrot.slane %v118, %v280
    %v283 = vadd.f32 %v274, %v281
    %v284 = vxor.u32 %v283, 2147483648
    %v285 = vmul.f32 %v284, 1.442695
    %v286 = vpow.pop %v285
    %v287 = vadd.f32 %v286, 1.0
    %v288 = vrcp.pop %v287
    %v289 = vmul.f32 1.0, %v288
    %v290 = vtanh.pop %v283
    %v291 = vmul.f32 %v289, 0.0
    %293 = vrot.lane.b32.xlu0 %v290, 64
    %v294 = vpop.permute.xlu0 %293
    %v296 = vmul.f32 %v289, %v294
    %298 = vrot.lane.b32.xlu0 %v296, 32
    %v299 = vpop.permute.xlu0 %298
    %v301 = vadd.f32 %v291, %v299
    %v302 = vtanh.pop %v301
    %304 = vrot.lane.b32.xlu0 %v302, 64
    %v305 = vpop.permute.xlu0 %304
    %v307 = vmul.f32 %v289, %v305
    %308 = vmatprep.subr.mxu0 0.0
    %309 = vmatpush1.msra.mxu0 %v123
    %310 = vmatprep.subr.mxu0 0.0
    %311 = vmatpush1.msra.mxu0 %v124
    %312 = vmatprep.subr.mxu0 0.0
    %313 = vmatpush1.msra.mxu0 %v125
    %314 = vmatprep.subr.mxu0 0.0
    %315 = vmatpush1.msra.mxu0 %v126
    %316 = vmatprep.subr.mxu0 0.0
    %317 = vmatpush1.msra.mxu0 0.0
    %318 = vmatprep.subr.mxu0 0.0
    %319 = vmatpush1.msra.mxu0 0.0
    %320 = vmatprep.subr.mxu0 0.0
    %321 = vmatpush1.msra.mxu0 0.0
    %322 = vmatprep.subr.mxu0 0.0
    %323 = vmatpush1.msra.mxu0 0.0
    %324 = vmatprep.subr.mxu0 0.0
    %325 = vmatpush1.msra.mxu0 0.0
    %326 = vmatprep.subr.mxu0 0.0
    %327 = vmatpush1.msra.mxu0 0.0
    %328 = vmatprep.subr.mxu0 0.0
    %329 = vmatpush1.msra.mxu0 0.0
    %330 = vmatprep.subr.mxu0 0.0
    %331 = vmatpush1.msra.mxu0 0.0
    %332 = vmatprep.subr.mxu0 0.0
    %333 = vmatpush1.msra.mxu0 0.0
    %334 = vmatprep.subr.mxu0 0.0
    %335 = vmatpush1.msra.mxu0 0.0
    %336 = vmatprep.subr.mxu0 0.0
    %337 = vmatpush1.msra.mxu0 0.0
    %338 = vmatprep.subr.mxu0 0.0
    %339 = vmatpush1.msra.mxu0 0.0
    %340 = vmatprep.subr.mxu0 0.0
    %341 = vmatpush1.msra.mxu0 0.0
    %342 = vmatprep.subr.mxu0 0.0
    %343 = vmatpush1.msra.mxu0 0.0
    %344 = vmatprep.subr.mxu0 0.0
    %345 = vmatpush1.msra.mxu0 0.0
    %346 = vmatprep.subr.mxu0 0.0
    %347 = vmatpush1.msra.mxu0 0.0
    %348 = vmatprep.subr.mxu0 0.0
    %349 = vmatpush1.msra.mxu0 0.0
    %350 = vmatprep.subr.mxu0 0.0
    %351 = vmatpush1.msra.mxu0 0.0
    %352 = vmatprep.subr.mxu0 0.0
    %353 = vmatpush1.msra.mxu0 0.0
    %354 = vmatprep.subr.mxu0 0.0
    %355 = vmatpush1.msra.mxu0 0.0
    %356 = vmatprep.subr.mxu0 0.0
    %357 = vmatpush1.msra.mxu0 0.0
    %358 = vmatprep.subr.mxu0 0.0
    %359 = vmatpush1.msra.mxu0 0.0
    %360 = vmatprep.subr.mxu0 0.0
    %361 = vmatpush1.msra.mxu0 0.0
    %362 = vmatprep.subr.mxu0 0.0
    %363 = vmatpush1.msra.mxu0 0.0
    %364 = vmatprep.subr.mxu0 0.0
    %365 = vmatpush1.msra.mxu0 0.0
    %366 = vmatprep.subr.mxu0 0.0
    %367 = vmatpush1.msra.mxu0 0.0
    %368 = vmatprep.subr.mxu0 0.0
    %369 = vmatpush1.msra.mxu0 0.0
    %370 = vmatprep.subr.mxu0 0.0
    %371 = vmatpush1.msra.mxu0 0.0
    %372 = vmatprep.mubr.f32.mxu0 0.0
    %373 = vmatmul.mubr.f32.gmra.mrb[0].mxu0 %v131
    %v374 = vpop.f32.mrb[0].mxu0
    %v375 = vadd.f32 0.0, %v374
    %v376 = vpop.f32.mrb[0].mxu0
    %377 = vdwg.mxu0
    %379 = vrot.lane.b32.xlu0 %v307, 32
    %v380 = vpop.permute.xlu0 %379
    %v381 = vsel %vm129, %v380, 0
    %383 = vmatprep.subr.mxu0 0.0
    %384 = vmatpush1.msra.mxu0 %v119
    %385 = vmatprep.subr.mxu0 0.0
    %386 = vmatpush1.msra.mxu0 %v120
    %387 = vmatprep.subr.mxu0 0.0
    %388 = vmatpush1.msra.mxu0 %v121
    %389 = vmatprep.subr.mxu0 0.0
    %390 = vmatpush1.msra.mxu0 %v122
    %391 = vmatprep.subr.mxu0 0.0
    %392 = vmatpush1.msra.mxu0 0.0
    %393 = vmatprep.subr.mxu0 0.0
    %394 = vmatpush1.msra.mxu0 0.0
    %395 = vmatprep.subr.mxu0 0.0
    %396 = vmatpush1.msra.mxu0 0.0
    %397 = vmatprep.subr.mxu0 0.0
    %398 = vmatpush1.msra.mxu0 0.0
    %399 = vmatprep.subr.mxu0 0.0
    %400 = vmatpush1.msra.mxu0 0.0
    %401 = vmatprep.subr.mxu0 0.0
    %402 = vmatpush1.msra.mxu0 0.0
    %403 = vmatprep.subr.mxu0 0.0
    %404 = vmatpush1.msra.mxu0 0.0
    %405 = vmatprep.subr.mxu0 0.0
    %406 = vmatpush1.msra.mxu0 0.0
    %407 = vmatprep.subr.mxu0 0.0
    %408 = vmatpush1.msra.mxu0 0.0
    %409 = vmatprep.subr.mxu0 0.0
    %410 = vmatpush1.msra.mxu0 0.0
    %411 = vmatprep.subr.mxu0 0.0
    %412 = vmatpush1.msra.mxu0 0.0
    %413 = vmatprep.subr.mxu0 0.0
    %414 = vmatpush1.msra.mxu0 0.0
    %415 = vmatprep.subr.mxu0 0.0
    %416 = vmatpush1.msra.mxu0 0.0
    %417 = vmatprep.subr.mxu0 0.0
    %418 = vmatpush1.msra.mxu0 0.0
    %419 = vmatprep.subr.mxu0 0.0
    %420 = vmatpush1.msra.mxu0 0.0
    %421 = vmatprep.subr.mxu0 0.0
    %422 = vmatpush1.msra.mxu0 0.0
    %423 = vmatprep.subr.mxu0 0.0
    %424 = vmatpush1.msra.mxu0 0.0
    %425 = vmatprep.subr.mxu0 0.0
    %426 = vmatpush1.msra.mxu0 0.0
    %427 = vmatprep.subr.mxu0 0.0
    %428 = vmatpush1.msra.mxu0 0.0
    %429 = vmatprep.subr.mxu0 0.0
    %430 = vmatpush1.msra.mxu0 0.0
    %431 = vmatprep.subr.mxu0 0.0
    %432 = vmatpush1.msra.mxu0 0.0
    %433 = vmatprep.subr.mxu0 0.0
    %434 = vmatpush1.msra.mxu0 0.0
    %435 = vmatprep.subr.mxu0 0.0
    %436 = vmatpush1.msra.mxu0 0.0
    %437 = vmatprep.subr.mxu0 0.0
    %438 = vmatpush1.msra.mxu0 0.0
    %439 = vmatprep.subr.mxu0 0.0
    %440 = vmatpush1.msra.mxu0 0.0
    %441 = vmatprep.subr.mxu0 0.0
    %442 = vmatpush1.msra.mxu0 0.0
    %443 = vmatprep.subr.mxu0 0.0
    %444 = vmatpush1.msra.mxu0 0.0
    %445 = vmatprep.subr.mxu0 0.0
    %446 = vmatpush1.msra.mxu0 0.0
    %447 = vmatprep.mubr.f32.mxu0 0.0
    %448 = vmatmul.mubr.f32.gmra.mrb[0].mxu0 %v381
    %v449 = vpop.f32.mrb[0].mxu0
    %v450 = vadd.f32 %v375, %v449
    %v451 = vpop.f32.mrb[0].mxu0
    %452 = vdwg.mxu0
    %v454 = vlaneseq
    %v455 = vshrl.u32 %v454, 7
    %v456 = vsub.s32 0, %v455
    %v457 = vrot.slane %v127, %v456
    %v459 = vadd.f32 %v450, %v457
    %v460 = vxor.u32 %v459, 2147483648
    %v461 = vmul.f32 %v460, 1.442695
    %v462 = vpow.pop %v461
    %v463 = vadd.f32 %v462, 1.0
    %v464 = vrcp.pop %v463
    %v465 = vmul.f32 1.0, %v464
    %v466 = vtanh.pop %v459
    %v467 = vmul.f32 %v465, 0.0
    %469 = vrot.lane.b32.xlu0 %v466, 64
    %v470 = vpop.permute.xlu0 %469
    %v472 = vmul.f32 %v465, %v470
    %474 = vrot.lane.b32.xlu0 %v472, 32
    %v475 = vpop.permute.xlu0 %474
    %v477 = vadd.f32 %v467, %v475
    %v478 = vtanh.pop %v477
    %480 = vrot.lane.b32.xlu0 %v478, 64
    %v481 = vpop.permute.xlu0 %480
    %v483 = vmul.f32 %v465, %v481
    %s484 = scalar_lea.vmem [#allocation2], 2
    %v485 = vld [vmem:[%s484] sm:$0x3]
    %486 = vmatprep.subr.mxu0 0.0
    %487 = vmatpush1.msra.mxu0 %v114
    %488 = vmatprep.subr.mxu0 0.0
    %489 = vmatpush1.msra.mxu0 %v115
    %490 = vmatprep.subr.mxu0 0.0
    %491 = vmatpush1.msra.mxu0 %v116
    %492 = vmatprep.subr.mxu0 0.0
    %493 = vmatpush1.msra.mxu0 %v117
    %494 = vmatprep.subr.mxu0 0.0
    %495 = vmatpush1.msra.mxu0 0.0
    %496 = vmatprep.subr.mxu0 0.0
    %497 = vmatpush1.msra.mxu0 0.0
    %498 = vmatprep.subr.mxu0 0.0
    %499 = vmatpush1.msra.mxu0 0.0
    %500 = vmatprep.subr.mxu0 0.0
    %501 = vmatpush1.msra.mxu0 0.0
    %502 = vmatprep.subr.mxu0 0.0
    %503 = vmatpush1.msra.mxu0 0.0
    %504 = vmatprep.subr.mxu0 0.0
    %505 = vmatpush1.msra.mxu0 0.0
    %506 = vmatprep.subr.mxu0 0.0
    %507 = vmatpush1.msra.mxu0 0.0
    %508 = vmatprep.subr.mxu0 0.0
    %509 = vmatpush1.msra.mxu0 0.0
    %510 = vmatprep.subr.mxu0 0.0
    %511 = vmatpush1.msra.mxu0 0.0
    %512 = vmatprep.subr.mxu0 0.0
    %513 = vmatpush1.msra.mxu0 0.0
    %514 = vmatprep.subr.mxu0 0.0
    %515 = vmatpush1.msra.mxu0 0.0
    %516 = vmatprep.subr.mxu0 0.0
    %517 = vmatpush1.msra.mxu0 0.0
    %518 = vmatprep.subr.mxu0 0.0
    %519 = vmatpush1.msra.mxu0 0.0
    %520 = vmatprep.subr.mxu0 0.0
    %521 = vmatpush1.msra.mxu0 0.0
    %522 = vmatprep.subr.mxu0 0.0
    %523 = vmatpush1.msra.mxu0 0.0
    %524 = vmatprep.subr.mxu0 0.0
    %525 = vmatpush1.msra.mxu0 0.0
    %526 = vmatprep.subr.mxu0 0.0
    %527 = vmatpush1.msra.mxu0 0.0
    %528 = vmatprep.subr.mxu0 0.0
    %529 = vmatpush1.msra.mxu0 0.0
    %530 = vmatprep.subr.mxu0 0.0
    %531 = vmatpush1.msra.mxu0 0.0
    %532 = vmatprep.subr.mxu0 0.0
    %533 = vmatpush1.msra.mxu0 0.0
    %534 = vmatprep.subr.mxu0 0.0
    %535 = vmatpush1.msra.mxu0 0.0
    %536 = vmatprep.subr.mxu0 0.0
    %537 = vmatpush1.msra.mxu0 0.0
    %538 = vmatprep.subr.mxu0 0.0
    %539 = vmatpush1.msra.mxu0 0.0
    %540 = vmatprep.subr.mxu0 0.0
    %541 = vmatpush1.msra.mxu0 0.0
    %542 = vmatprep.subr.mxu0 0.0
    %543 = vmatpush1.msra.mxu0 0.0
    %544 = vmatprep.subr.mxu0 0.0
    %545 = vmatpush1.msra.mxu0 0.0
    %546 = vmatprep.subr.mxu0 0.0
    %547 = vmatpush1.msra.mxu0 0.0
    %548 = vmatprep.subr.mxu0 0.0
    %549 = vmatpush1.msra.mxu0 0.0
    %550 = vmatprep.mubr.f32.mxu0 0.0
    %551 = vmatmul.mubr.f32.gmra.mrb[0].mxu0 %v381
    %v552 = vpop.f32.mrb[0].mxu0
    %v553 = vadd.f32 0.0, %v552
    %v554 = vpop.f32.mrb[0].mxu0
    %555 = vdwg.mxu0
    %v557 = vsel %vm203, %v485, 0
    %559 = vmatprep.subr.mxu0 0.0
    %560 = vmatpush1.msra.mxu0 %v113
    %561 = vmatprep.subr.mxu0 0.0
    %562 = vmatpush1.msra.mxu0 0.0
    %563 = vmatprep.subr.mxu0 0.0
    %564 = vmatpush1.msra.mxu0 0.0
    %565 = vmatprep.subr.mxu0 0.0
    %566 = vmatpush1.msra.mxu0 0.0
    %567 = vmatprep.subr.mxu0 0.0
    %568 = vmatpush1.msra.mxu0 0.0
    %569 = vmatprep.subr.mxu0 0.0
    %570 = vmatpush1.msra.mxu0 0.0
    %571 = vmatprep.subr.mxu0 0.0
    %572 = vmatpush1.msra.mxu0 0.0
    %573 = vmatprep.subr.mxu0 0.0
    %574 = vmatpush1.msra.mxu0 0.0
    %575 = vmatprep.subr.mxu0 0.0
    %576 = vmatpush1.msra.mxu0 0.0
    %577 = vmatprep.subr.mxu0 0.0
    %578 = vmatpush1.msra.mxu0 0.0
    %579 = vmatprep.subr.mxu0 0.0
    %580 = vmatpush1.msra.mxu0 0.0
    %581 = vmatprep.subr.mxu0 0.0
    %582 = vmatpush1.msra.mxu0 0.0
    %583 = vmatprep.subr.mxu0 0.0
    %584 = vmatpush1.msra.mxu0 0.0
    %585 = vmatprep.subr.mxu0 0.0
    %586 = vmatpush1.msra.mxu0 0.0
    %587 = vmatprep.subr.mxu0 0.0
    %588 = vmatpush1.msra.mxu0 0.0
    %589 = vmatprep.subr.mxu0 0.0
    %590 = vmatpush1.msra.mxu0 0.0
    %591 = vmatprep.subr.mxu0 0.0
    %592 = vmatpush1.msra.mxu0 0.0
    %593 = vmatprep.subr.mxu0 0.0
    %594 = vmatpush1.msra.mxu0 0.0
    %595 = vmatprep.subr.mxu0 0.0
    %596 = vmatpush1.msra.mxu0 0.0
    %597 = vmatprep.subr.mxu0 0.0
    %598 = vmatpush1.msra.mxu0 0.0
    %599 = vmatprep.subr.mxu0 0.0
    %600 = vmatpush1.msra.mxu0 0.0
    %601 = vmatprep.subr.mxu0 0.0
    %602 = vmatpush1.msra.mxu0 0.0
    %603 = vmatprep.subr.mxu0 0.0
    %604 = vmatpush1.msra.mxu0 0.0
    %605 = vmatprep.subr.mxu0 0.0
    %606 = vmatpush1.msra.mxu0 0.0
    %607 = vmatprep.subr.mxu0 0.0
    %608 = vmatpush1.msra.mxu0 0.0
    %609 = vmatprep.subr.mxu0 0.0
    %610 = vmatpush1.msra.mxu0 0.0
    %611 = vmatprep.subr.mxu0 0.0
    %612 = vmatpush1.msra.mxu0 0.0
    %613 = vmatprep.subr.mxu0 0.0
    %614 = vmatpush1.msra.mxu0 0.0
    %615 = vmatprep.subr.mxu0 0.0
    %616 = vmatpush1.msra.mxu0 0.0
    %617 = vmatprep.subr.mxu0 0.0
    %618 = vmatpush1.msra.mxu0 0.0
    %619 = vmatprep.subr.mxu0 0.0
    %620 = vmatpush1.msra.mxu0 0.0
    %621 = vmatprep.subr.mxu0 0.0
    %622 = vmatpush1.msra.mxu0 0.0
    %623 = vmatprep.mubr.f32.mxu0 0.0
    %624 = vmatmul.mubr.f32.gmra.mrb[0].mxu0 %v557
    %v625 = vpop.f32.mrb[0].mxu0
    %v626 = vadd.f32 %v553, %v625
    %v627 = vpop.f32.mrb[0].mxu0
    %628 = vdwg.mxu0
    %v629 = vadd.f32 %v626, %v281
    %v630 = vxor.u32 %v629, 2147483648
    %v631 = vmul.f32 %v630, 1.442695
    %v632 = vpow.pop %v631
    %v633 = vadd.f32 %v632, 1.0
    %v634 = vrcp.pop %v633
    %v635 = vmul.f32 1.0, %v634
    %v636 = vtanh.pop %v629
    %v637 = vmul.f32 %v635, %v301
    %639 = vrot.lane.b32.xlu0 %v636, 64
    %v640 = vpop.permute.xlu0 %639
    %v642 = vmul.f32 %v635, %v640
    %644 = vrot.lane.b32.xlu0 %v642, 32
    %v645 = vpop.permute.xlu0 %644
    %v647 = vadd.f32 %v637, %v645
    %v648 = vtanh.pop %v647
    %650 = vrot.lane.b32.xlu0 %v648, 64
    %v651 = vpop.permute.xlu0 %650
    %v653 = vmul.f32 %v635, %v651
    %655 = vrot.lane.b32.xlu0 %v483, 32
    %v656 = vpop.permute.xlu0 %655
    %v657 = vsel %vm129, %v656, 0
    %659 = vmatprep.subr.mxu0 0.0
    %660 = vmatpush1.msra.mxu0 %v123
    %661 = vmatprep.subr.mxu0 0.0
    %662 = vmatpush1.msra.mxu0 %v124
    %663 = vmatprep.subr.mxu0 0.0
    %664 = vmatpush1.msra.mxu0 %v125
    %665 = vmatprep.subr.mxu0 0.0
    %666 = vmatpush1.msra.mxu0 %v126
    %667 = vmatprep.subr.mxu0 0.0
    %668 = vmatpush1.msra.mxu0 0.0
    %669 = vmatprep.subr.mxu0 0.0
    %670 = vmatpush1.msra.mxu0 0.0
    %671 = vmatprep.subr.mxu0 0.0
    %672 = vmatpush1.msra.mxu0 0.0
    %673 = vmatprep.subr.mxu0 0.0
    %674 = vmatpush1.msra.mxu0 0.0
    %675 = vmatprep.subr.mxu0 0.0
    %676 = vmatpush1.msra.mxu0 0.0
    %677 = vmatprep.subr.mxu0 0.0
    %678 = vmatpush1.msra.mxu0 0.0
    %679 = vmatprep.subr.mxu0 0.0
    %680 = vmatpush1.msra.mxu0 0.0
    %681 = vmatprep.subr.mxu0 0.0
    %682 = vmatpush1.msra.mxu0 0.0
    %683 = vmatprep.subr.mxu0 0.0
    %684 = vmatpush1.msra.mxu0 0.0
    %685 = vmatprep.subr.mxu0 0.0
    %686 = vmatpush1.msra.mxu0 0.0
    %687 = vmatprep.subr.mxu0 0.0
    %688 = vmatpush1.msra.mxu0 0.0
    %689 = vmatprep.subr.mxu0 0.0
    %690 = vmatpush1.msra.mxu0 0.0
    %691 = vmatprep.subr.mxu0 0.0
    %692 = vmatpush1.msra.mxu0 0.0
    %693 = vmatprep.subr.mxu0 0.0
    %694 = vmatpush1.msra.mxu0 0.0
    %695 = vmatprep.subr.mxu0 0.0
    %696 = vmatpush1.msra.mxu0 0.0
    %697 = vmatprep.subr.mxu0 0.0
    %698 = vmatpush1.msra.mxu0 0.0
    %699 = vmatprep.subr.mxu0 0.0
    %700 = vmatpush1.msra.mxu0 0.0
    %701 = vmatprep.subr.mxu0 0.0
    %702 = vmatpush1.msra.mxu0 0.0
    %703 = vmatprep.subr.mxu0 0.0
    %704 = vmatpush1.msra.mxu0 0.0
    %705 = vmatprep.subr.mxu0 0.0
    %706 = vmatpush1.msra.mxu0 0.0
    %707 = vmatprep.subr.mxu0 0.0
    %708 = vmatpush1.msra.mxu0 0.0
    %709 = vmatprep.subr.mxu0 0.0
    %710 = vmatpush1.msra.mxu0 0.0
    %711 = vmatprep.subr.mxu0 0.0
    %712 = vmatpush1.msra.mxu0 0.0
    %713 = vmatprep.subr.mxu0 0.0
    %714 = vmatpush1.msra.mxu0 0.0
    %715 = vmatprep.subr.mxu0 0.0
    %716 = vmatpush1.msra.mxu0 0.0
    %717 = vmatprep.subr.mxu0 0.0
    %718 = vmatpush1.msra.mxu0 0.0
    %719 = vmatprep.subr.mxu0 0.0
    %720 = vmatpush1.msra.mxu0 0.0
    %721 = vmatprep.subr.mxu0 0.0
    %722 = vmatpush1.msra.mxu0 0.0
    %723 = vmatprep.mubr.f32.mxu0 0.0
    %724 = vmatmul.mubr.f32.gmra.mrb[0].mxu0 %v657
    %v725 = vpop.f32.mrb[0].mxu0
    %v726 = vadd.f32 0.0, %v725
    %v727 = vpop.f32.mrb[0].mxu0
    %728 = vdwg.mxu0
    %730 = vrot.lane.b32.xlu0 %v653, 32
    %v731 = vpop.permute.xlu0 %730
    %v732 = vsel %vm129, %v731, 0
    %734 = vmatprep.subr.mxu0 0.0
    %735 = vmatpush1.msra.mxu0 %v119
    %736 = vmatprep.subr.mxu0 0.0
    %737 = vmatpush1.msra.mxu0 %v120
    %738 = vmatprep.subr.mxu0 0.0
    %739 = vmatpush1.msra.mxu0 %v121
    %740 = vmatprep.subr.mxu0 0.0
    %741 = vmatpush1.msra.mxu0 %v122
    %742 = vmatprep.subr.mxu0 0.0
    %743 = vmatpush1.msra.mxu0 0.0
    %744 = vmatprep.subr.mxu0 0.0
    %745 = vmatpush1.msra.mxu0 0.0
    %746 = vmatprep.subr.mxu0 0.0
    %747 = vmatpush1.msra.mxu0 0.0
    %748 = vmatprep.subr.mxu0 0.0
    %749 = vmatpush1.msra.mxu0 0.0
    %750 = vmatprep.subr.mxu0 0.0
    %751 = vmatpush1.msra.mxu0 0.0
    %752 = vmatprep.subr.mxu0 0.0
    %753 = vmatpush1.msra.mxu0 0.0
    %754 = vmatprep.subr.mxu0 0.0
    %755 = vmatpush1.msra.mxu0 0.0
    %756 = vmatprep.subr.mxu0 0.0
    %757 = vmatpush1.msra.mxu0 0.0
    %758 = vmatprep.subr.mxu0 0.0
    %759 = vmatpush1.msra.mxu0 0.0
    %760 = vmatprep.subr.mxu0 0.0
    %761 = vmatpush1.msra.mxu0 0.0
    %762 = vmatprep.subr.mxu0 0.0
    %763 = vmatpush1.msra.mxu0 0.0
    %764 = vmatprep.subr.mxu0 0.0
    %765 = vmatpush1.msra.mxu0 0.0
    %766 = vmatprep.subr.mxu0 0.0
    %767 = vmatpush1.msra.mxu0 0.0
    %768 = vmatprep.subr.mxu0 0.0
    %769 = vmatpush1.msra.mxu0 0.0
    %770 = vmatprep.subr.mxu0 0.0
    %771 = vmatpush1.msra.mxu0 0.0
    %772 = vmatprep.subr.mxu0 0.0
    %773 = vmatpush1.msra.mxu0 0.0
    %774 = vmatprep.subr.mxu0 0.0
    %775 = vmatpush1.msra.mxu0 0.0
    %776 = vmatprep.subr.mxu0 0.0
    %777 = vmatpush1.msra.mxu0 0.0
    %778 = vmatprep.subr.mxu0 0.0
    %779 = vmatpush1.msra.mxu0 0.0
    %780 = vmatprep.subr.mxu0 0.0
    %781 = vmatpush1.msra.mxu0 0.0
    %782 = vmatprep.subr.mxu0 0.0
    %783 = vmatpush1.msra.mxu0 0.0
    %784 = vmatprep.subr.mxu0 0.0
    %785 = vmatpush1.msra.mxu0 0.0
    %786 = vmatprep.subr.mxu0 0.0
    %787 = vmatpush1.msra.mxu0 0.0
    %788 = vmatprep.subr.mxu0 0.0
    %789 = vmatpush1.msra.mxu0 0.0
    %790 = vmatprep.subr.mxu0 0.0
    %791 = vmatpush1.msra.mxu0 0.0
    %792 = vmatprep.subr.mxu0 0.0
    %793 = vmatpush1.msra.mxu0 0.0
    %794 = vmatprep.subr.mxu0 0.0
    %795 = vmatpush1.msra.mxu0 0.0
    %796 = vmatprep.subr.mxu0 0.0
    %797 = vmatpush1.msra.mxu0 0.0
    %798 = vmatprep.mubr.f32.mxu0 0.0
    %799 = vmatmul.mubr.f32.gmra.mrb[0].mxu0 %v732
    %v800 = vpop.f32.mrb[0].mxu0
    %v801 = vadd.f32 %v726, %v800
    %v802 = vpop.f32.mrb[0].mxu0
    %803 = vdwg.mxu0
    %v804 = vadd.f32 %v801, %v457
    %v805 = vxor.u32 %v804, 2147483648
    %v806 = vmul.f32 %v805, 1.442695
    %v807 = vpow.pop %v806
    %v808 = vadd.f32 %v807, 1.0
    %v809 = vrcp.pop %v808
    %v810 = vmul.f32 1.0, %v809
    %v811 = vtanh.pop %v804
    %v812 = vmul.f32 %v810, %v477
    %814 = vrot.lane.b32.xlu0 %v811, 64
    %v815 = vpop.permute.xlu0 %814
    %v817 = vmul.f32 %v810, %v815
    %819 = vrot.lane.b32.xlu0 %v817, 32
    %v820 = vpop.permute.xlu0 %819
    %v822 = vadd.f32 %v812, %v820
    %v823 = vtanh.pop %v822
    %825 = vrot.lane.b32.xlu0 %v823, 64
    %v826 = vpop.permute.xlu0 %825
    %v828 = vmul.f32 %v810, %v826
    %s829 = scalar_lea.vmem [#allocation2], 4
    %v830 = vld [vmem:[%s829] sm:$0x3]
    %831 = vmatprep.subr.mxu0 0.0
    %832 = vmatpush1.msra.mxu0 %v114
    %833 = vmatprep.subr.mxu0 0.0
    %834 = vmatpush1.msra.mxu0 %v115
    %835 = vmatprep.subr.mxu0 0.0
    %836 = vmatpush1.msra.mxu0 %v116
    %837 = vmatprep.subr.mxu0 0.0
    %838 = vmatpush1.msra.mxu0 %v117
    %839 = vmatprep.subr.mxu0 0.0
    %840 = vmatpush1.msra.mxu0 0.0
    %841 = vmatprep.subr.mxu0 0.0
    %842 = vmatpush1.msra.mxu0 0.0
    %843 = vmatprep.subr.mxu0 0.0
    %844 = vmatpush1.msra.mxu0 0.0
    %845 = vmatprep.subr.mxu0 0.0
    %846 = vmatpush1.msra.mxu0 0.0
    %847 = vmatprep.subr.mxu0 0.0
    %848 = vmatpush1.msra.mxu0 0.0
    %849 = vmatprep.subr.mxu0 0.0
    %850 = vmatpush1.msra.mxu0 0.0
    %851 = vmatprep.subr.mxu0 0.0
    %852 = vmatpush1.msra.mxu0 0.0
    %853 = vmatprep.subr.mxu0 0.0
    %854 = vmatpush1.msra.mxu0 0.0
    %855 = vmatprep.subr.mxu0 0.0
    %856 = vmatpush1.msra.mxu0 0.0
    %857 = vmatprep.subr.mxu0 0.0
    %858 = vmatpush1.msra.mxu0 0.0
    %859 = vmatprep.subr.mxu0 0.0
    %860 = vmatpush1.msra.mxu0 0.0
    %861 = vmatprep.subr.mxu0 0.0
    %862 = vmatpush1.msra.mxu0 0.0
    %863 = vmatprep.subr.mxu0 0.0
    %864 = vmatpush1.msra.mxu0 0.0
    %865 = vmatprep.subr.mxu0 0.0
    %866 = vmatpush1.msra.mxu0 0.0
    %867 = vmatprep.subr.mxu0 0.0
    %868 = vmatpush1.msra.mxu0 0.0
    %869 = vmatprep.subr.mxu0 0.0
    %870 = vmatpush1.msra.mxu0 0.0
    %871 = vmatprep.subr.mxu0 0.0
    %872 = vmatpush1.msra.mxu0 0.0
    %873 = vmatprep.subr.mxu0 0.0
    %874 = vmatpush1.msra.mxu0 0.0
    %875 = vmatprep.subr.mxu0 0.0
    %876 = vmatpush1.msra.mxu0 0.0
    %877 = vmatprep.subr.mxu0 0.0
    %878 = vmatpush1.msra.mxu0 0.0
    %879 = vmatprep.subr.mxu0 0.0
    %880 = vmatpush1.msra.mxu0 0.0
    %881 = vmatprep.subr.mxu0 0.0
    %882 = vmatpush1.msra.mxu0 0.0
    %883 = vmatprep.subr.mxu0 0.0
    %884 = vmatpush1.msra.mxu0 0.0
    %885 = vmatprep.subr.mxu0 0.0
    %886 = vmatpush1.msra.mxu0 0.0
    %887 = vmatprep.subr.mxu0 0.0
    %888 = vmatpush1.msra.mxu0 0.0
    %889 = vmatprep.subr.mxu0 0.0
    %890 = vmatpush1.msra.mxu0 0.0
    %891 = vmatprep.subr.mxu0 0.0
    %892 = vmatpush1.msra.mxu0 0.0
    %893 = vmatprep.subr.mxu0 0.0
    %894 = vmatpush1.msra.mxu0 0.0
    %895 = vmatprep.mubr.f32.mxu0 0.0
    %896 = vmatmul.mubr.f32.gmra.mrb[0].mxu0 %v732
    %v897 = vpop.f32.mrb[0].mxu0
    %v898 = vadd.f32 0.0, %v897
    %v899 = vpop.f32.mrb[0].mxu0
    %900 = vdwg.mxu0
    %v902 = vsel %vm203, %v830, 0
    %904 = vmatprep.subr.mxu0 0.0
    %905 = vmatpush1.msra.mxu0 %v113
    %906 = vmatprep.subr.mxu0 0.0
    %907 = vmatpush1.msra.mxu0 0.0
    %908 = vmatprep.subr.mxu0 0.0
    %909 = vmatpush1.msra.mxu0 0.0
    %910 = vmatprep.subr.mxu0 0.0
    %911 = vmatpush1.msra.mxu0 0.0
    %912 = vmatprep.subr.mxu0 0.0
    %913 = vmatpush1.msra.mxu0 0.0
    %914 = vmatprep.subr.mxu0 0.0
    %915 = vmatpush1.msra.mxu0 0.0
    %916 = vmatprep.subr.mxu0 0.0
    %917 = vmatpush1.msra.mxu0 0.0
    %918 = vmatprep.subr.mxu0 0.0
    %919 = vmatpush1.msra.mxu0 0.0
    %920 = vmatprep.subr.mxu0 0.0
    %921 = vmatpush1.msra.mxu0 0.0
    %922 = vmatprep.subr.mxu0 0.0
    %923 = vmatpush1.msra.mxu0 0.0
    %924 = vmatprep.subr.mxu0 0.0
    %925 = vmatpush1.msra.mxu0 0.0
    %926 = vmatprep.subr.mxu0 0.0
    %927 = vmatpush1.msra.mxu0 0.0
    %928 = vmatprep.subr.mxu0 0.0
    %929 = vmatpush1.msra.mxu0 0.0
    %930 = vmatprep.subr.mxu0 0.0
    %931 = vmatpush1.msra.mxu0 0.0
    %932 = vmatprep.subr.mxu0 0.0
    %933 = vmatpush1.msra.mxu0 0.0
    %934 = vmatprep.subr.mxu0 0.0
    %935 = vmatpush1.msra.mxu0 0.0
    %936 = vmatprep.subr.mxu0 0.0
    %937 = vmatpush1.msra.mxu0 0.0
    %938 = vmatprep.subr.mxu0 0.0
    %939 = vmatpush1.msra.mxu0 0.0
    %940 = vmatprep.subr.mxu0 0.0
    %941 = vmatpush1.msra.mxu0 0.0
    %942 = vmatprep.subr.mxu0 0.0
    %943 = vmatpush1.msra.mxu0 0.0
    %944 = vmatprep.subr.mxu0 0.0
    %945 = vmatpush1.msra.mxu0 0.0
    %946 = vmatprep.subr.mxu0 0.0
    %947 = vmatpush1.msra.mxu0 0.0
    %948 = vmatprep.subr.mxu0 0.0
    %949 = vmatpush1.msra.mxu0 0.0
    %950 = vmatprep.subr.mxu0 0.0
    %951 = vmatpush1.msra.mxu0 0.0
    %952 = vmatprep.subr.mxu0 0.0
    %953 = vmatpush1.msra.mxu0 0.0
    %954 = vmatprep.subr.mxu0 0.0
    %955 = vmatpush1.msra.mxu0 0.0
    %956 = vmatprep.subr.mxu0 0.0
    %957 = vmatpush1.msra.mxu0 0.0
    %958 = vmatprep.subr.mxu0 0.0
    %959 = vmatpush1.msra.mxu0 0.0
    %960 = vmatprep.subr.mxu0 0.0
    %961 = vmatpush1.msra.mxu0 0.0
    %962 = vmatprep.subr.mxu0 0.0
    %963 = vmatpush1.msra.mxu0 0.0
    %964 = vmatprep.subr.mxu0 0.0
    %965 = vmatpush1.msra.mxu0 0.0
    %966 = vmatprep.subr.mxu0 0.0
    %967 = vmatpush1.msra.mxu0 0.0
    %968 = vmatprep.mubr.f32.mxu0 0.0
    %969 = vmatmul.mubr.f32.gmra.mrb[0].mxu0 %v902
    %v970 = vpop.f32.mrb[0].mxu0
    %v971 = vadd.f32 %v898, %v970
    %v972 = vpop.f32.mrb[0].mxu0
    %973 = vdwg.mxu0
    %v974 = vadd.f32 %v971, %v281
    %v975 = vxor.u32 %v974, 2147483648
    %v976 = vmul.f32 %v975, 1.442695
    %v977 = vpow.pop %v976
    %v978 = vadd.f32 %v977, 1.0
    %v979 = vrcp.pop %v978
    %v980 = vmul.f32 1.0, %v979
    %v981 = vtanh.pop %v974
    %v982 = vmul.f32 %v980, %v647
    %984 = vrot.lane.b32.xlu0 %v981, 64
    %v985 = vpop.permute.xlu0 %984
    %v987 = vmul.f32 %v980, %v985
    %989 = vrot.lane.b32.xlu0 %v987, 32
    %v990 = vpop.permute.xlu0 %989
    %v992 = vadd.f32 %v982, %v990
    %v993 = vtanh.pop %v992
    %995 = vrot.lane.b32.xlu0 %v993, 64
    %v996 = vpop.permute.xlu0 %995
    %v998 = vmul.f32 %v980, %v996
    %1000 = vrot.lane.b32.xlu0 %v828, 32
    %v1001 = vpop.permute.xlu0 %1000
    %v1002 = vsel %vm129, %v1001, 0
    %1004 = vmatprep.subr.mxu0 0.0
    %1005 = vmatpush1.msra.mxu0 %v123
    %1006 = vmatprep.subr.mxu0 0.0
    %1007 = vmatpush1.msra.mxu0 %v124
    %1008 = vmatprep.subr.mxu0 0.0
    %1009 = vmatpush1.msra.mxu0 %v125
    %1010 = vmatprep.subr.mxu0 0.0
    %1011 = vmatpush1.msra.mxu0 %v126
    %1012 = vmatprep.subr.mxu0 0.0
    %1013 = vmatpush1.msra.mxu0 0.0
    %1014 = vmatprep.subr.mxu0 0.0
    %1015 = vmatpush1.msra.mxu0 0.0
    %1016 = vmatprep.subr.mxu0 0.0
    %1017 = vmatpush1.msra.mxu0 0.0
    %1018 = vmatprep.subr.mxu0 0.0
    %1019 = vmatpush1.msra.mxu0 0.0
    %1020 = vmatprep.subr.mxu0 0.0
    %1021 = vmatpush1.msra.mxu0 0.0
    %1022 = vmatprep.subr.mxu0 0.0
    %1023 = vmatpush1.msra.mxu0 0.0
    %1024 = vmatprep.subr.mxu0 0.0
    %1025 = vmatpush1.msra.mxu0 0.0
    %1026 = vmatprep.subr.mxu0 0.0
    %1027 = vmatpush1.msra.mxu0 0.0
    %1028 = vmatprep.subr.mxu0 0.0
    %1029 = vmatpush1.msra.mxu0 0.0
    %1030 = vmatprep.subr.mxu0 0.0
    %1031 = vmatpush1.msra.mxu0 0.0
    %1032 = vmatprep.subr.mxu0 0.0
    %1033 = vmatpush1.msra.mxu0 0.0
    %1034 = vmatprep.subr.mxu0 0.0
    %1035 = vmatpush1.msra.mxu0 0.0
    %1036 = vmatprep.subr.mxu0 0.0
    %1037 = vmatpush1.msra.mxu0 0.0
    %1038 = vmatprep.subr.mxu0 0.0
    %1039 = vmatpush1.msra.mxu0 0.0
    %1040 = vmatprep.subr.mxu0 0.0
    %1041 = vmatpush1.msra.mxu0 0.0
    %1042 = vmatprep.subr.mxu0 0.0
    %1043 = vmatpush1.msra.mxu0 0.0
    %1044 = vmatprep.subr.mxu0 0.0
    %1045 = vmatpush1.msra.mxu0 0.0
    %1046 = vmatprep.subr.mxu0 0.0
    %1047 = vmatpush1.msra.mxu0 0.0
    %1048 = vmatprep.subr.mxu0 0.0
    %1049 = vmatpush1.msra.mxu0 0.0
    %1050 = vmatprep.subr.mxu0 0.0
    %1051 = vmatpush1.msra.mxu0 0.0
    %1052 = vmatprep.subr.mxu0 0.0
    %1053 = vmatpush1.msra.mxu0 0.0
    %1054 = vmatprep.subr.mxu0 0.0
    %1055 = vmatpush1.msra.mxu0 0.0
    %1056 = vmatprep.subr.mxu0 0.0
    %1057 = vmatpush1.msra.mxu0 0.0
    %1058 = vmatprep.subr.mxu0 0.0
    %1059 = vmatpush1.msra.mxu0 0.0
    %1060 = vmatprep.subr.mxu0 0.0
    %1061 = vmatpush1.msra.mxu0 0.0
    %1062 = vmatprep.subr.mxu0 0.0
    %1063 = vmatpush1.msra.mxu0 0.0
    %1064 = vmatprep.subr.mxu0 0.0
    %1065 = vmatpush1.msra.mxu0 0.0
    %1066 = vmatprep.subr.mxu0 0.0
    %1067 = vmatpush1.msra.mxu0 0.0
    %1068 = vmatprep.mubr.f32.mxu0 0.0
    %1069 = vmatmul.mubr.f32.gmra.mrb[0].mxu0 %v1002
    %v1070 = vpop.f32.mrb[0].mxu0
    %v1071 = vadd.f32 0.0, %v1070
    %v1072 = vpop.f32.mrb[0].mxu0
    %1073 = vdwg.mxu0
    %1075 = vrot.lane.b32.xlu0 %v998, 32
    %v1076 = vpop.permute.xlu0 %1075
    %v1077 = vsel %vm129, %v1076, 0
    %1079 = vmatprep.subr.mxu0 0.0
    %1080 = vmatpush1.msra.mxu0 %v119
    %1081 = vmatprep.subr.mxu0 0.0
    %1082 = vmatpush1.msra.mxu0 %v120
    %1083 = vmatprep.subr.mxu0 0.0
    %1084 = vmatpush1.msra.mxu0 %v121
    %1085 = vmatprep.subr.mxu0 0.0
    %1086 = vmatpush1.msra.mxu0 %v122
    %1087 = vmatprep.subr.mxu0 0.0
    %1088 = vmatpush1.msra.mxu0 0.0
    %1089 = vmatprep.subr.mxu0 0.0
    %1090 = vmatpush1.msra.mxu0 0.0
    %1091 = vmatprep.subr.mxu0 0.0
    %1092 = vmatpush1.msra.mxu0 0.0
    %1093 = vmatprep.subr.mxu0 0.0
    %1094 = vmatpush1.msra.mxu0 0.0
    %1095 = vmatprep.subr.mxu0 0.0
    %1096 = vmatpush1.msra.mxu0 0.0
    %1097 = vmatprep.subr.mxu0 0.0
    %1098 = vmatpush1.msra.mxu0 0.0
    %1099 = vmatprep.subr.mxu0 0.0
    %1100 = vmatpush1.msra.mxu0 0.0
    %1101 = vmatprep.subr.mxu0 0.0
    %1102 = vmatpush1.msra.mxu0 0.0
    %1103 = vmatprep.subr.mxu0 0.0
    %1104 = vmatpush1.msra.mxu0 0.0
    %1105 = vmatprep.subr.mxu0 0.0
    %1106 = vmatpush1.msra.mxu0 0.0
    %1107 = vmatprep.subr.mxu0 0.0
    %1108 = vmatpush1.msra.mxu0 0.0
    %1109 = vmatprep.subr.mxu0 0.0
    %1110 = vmatpush1.msra.mxu0 0.0
    %1111 = vmatprep.subr.mxu0 0.0
    %1112 = vmatpush1.msra.mxu0 0.0
    %1113 = vmatprep.subr.mxu0 0.0
    %1114 = vmatpush1.msra.mxu0 0.0
    %1115 = vmatprep.subr.mxu0 0.0
    %1116 = vmatpush1.msra.mxu0 0.0
    %1117 = vmatprep.subr.mxu0 0.0
    %1118 = vmatpush1.msra.mxu0 0.0
    %1119 = vmatprep.subr.mxu0 0.0
    %1120 = vmatpush1.msra.mxu0 0.0
    %1121 = vmatprep.subr.mxu0 0.0
    %1122 = vmatpush1.msra.mxu0 0.0
    %1123 = vmatprep.subr.mxu0 0.0
    %1124 = vmatpush1.msra.mxu0 0.0
    %1125 = vmatprep.subr.mxu0 0.0
    %1126 = vmatpush1.msra.mxu0 0.0
    %1127 = vmatprep.subr.mxu0 0.0
    %1128 = vmatpush1.msra.mxu0 0.0
    %1129 = vmatprep.subr.mxu0 0.0
    %1130 = vmatpush1.msra.mxu0 0.0
    %1131 = vmatprep.subr.mxu0 0.0
    %1132 = vmatpush1.msra.mxu0 0.0
    %1133 = vmatprep.subr.mxu0 0.0
    %1134 = vmatpush1.msra.mxu0 0.0
    %1135 = vmatprep.subr.mxu0 0.0
    %1136 = vmatpush1.msra.mxu0 0.0
    %1137 = vmatprep.subr.mxu0 0.0
    %1138 = vmatpush1.msra.mxu0 0.0
    %1139 = vmatprep.subr.mxu0 0.0
    %1140 = vmatpush1.msra.mxu0 0.0
    %1141 = vmatprep.subr.mxu0 0.0
    %1142 = vmatpush1.msra.mxu0 0.0
    %1143 = vmatprep.mubr.f32.mxu0 0.0
    %1144 = vmatmul.mubr.f32.gmra.mrb[0].mxu0 %v1077
    %v1145 = vpop.f32.mrb[0].mxu0
    %v1146 = vadd.f32 %v1071, %v1145
    %v1147 = vpop.f32.mrb[0].mxu0
    %1148 = vdwg.mxu0
    %v1149 = vadd.f32 %v1146, %v457
    %v1150 = vxor.u32 %v1149, 2147483648
    %v1151 = vmul.f32 %v1150, 1.442695
    %v1152 = vpow.pop %v1151
    %v1153 = vadd.f32 %v1152, 1.0
    %v1154 = vrcp.pop %v1153
    %v1155 = vmul.f32 1.0, %v1154
    %v1156 = vtanh.pop %v1149
    %v1157 = vmul.f32 %v1155, %v822
    %1159 = vrot.lane.b32.xlu0 %v1156, 64
    %v1160 = vpop.permute.xlu0 %1159
    %v1162 = vmul.f32 %v1155, %v1160
    %1164 = vrot.lane.b32.xlu0 %v1162, 32
    %v1165 = vpop.permute.xlu0 %1164
    %v1167 = vadd.f32 %v1157, %v1165
    %v1168 = vtanh.pop %v1167
    %1170 = vrot.lane.b32.xlu0 %v1168, 64
    %v1171 = vpop.permute.xlu0 %1170
    %v1173 = vmul.f32 %v1155, %v1171
    %s1174 = scalar_lea.vmem [#allocation2], 6
    %v1175 = vld [vmem:[%s1174] sm:$0x3]
    %1176 = vmatprep.subr.mxu0 0.0
    %1177 = vmatpush1.msra.mxu0 %v114
    %1178 = vmatprep.subr.mxu0 0.0
    %1179 = vmatpush1.msra.mxu0 %v115
    %1180 = vmatprep.subr.mxu0 0.0
    %1181 = vmatpush1.msra.mxu0 %v116
    %1182 = vmatprep.subr.mxu0 0.0
    %1183 = vmatpush1.msra.mxu0 %v117
    %1184 = vmatprep.subr.mxu0 0.0
    %1185 = vmatpush1.msra.mxu0 0.0
    %1186 = vmatprep.subr.mxu0 0.0
    %1187 = vmatpush1.msra.mxu0 0.0
    %1188 = vmatprep.subr.mxu0 0.0
    %1189 = vmatpush1.msra.mxu0 0.0
    %1190 = vmatprep.subr.mxu0 0.0
    %1191 = vmatpush1.msra.mxu0 0.0
    %1192 = vmatprep.subr.mxu0 0.0
    %1193 = vmatpush1.msra.mxu0 0.0
    %1194 = vmatprep.subr.mxu0 0.0
    %1195 = vmatpush1.msra.mxu0 0.0
    %1196 = vmatprep.subr.mxu0 0.0
    %1197 = vmatpush1.msra.mxu0 0.0
    %1198 = vmatprep.subr.mxu0 0.0
    %1199 = vmatpush1.msra.mxu0 0.0
    %1200 = vmatprep.subr.mxu0 0.0
    %1201 = vmatpush1.msra.mxu0 0.0
    %1202 = vmatprep.subr.mxu0 0.0
    %1203 = vmatpush1.msra.mxu0 0.0
    %1204 = vmatprep.subr.mxu0 0.0
    %1205 = vmatpush1.msra.mxu0 0.0
    %1206 = vmatprep.subr.mxu0 0.0
    %1207 = vmatpush1.msra.mxu0 0.0
    %1208 = vmatprep.subr.mxu0 0.0
    %1209 = vmatpush1.msra.mxu0 0.0
    %1210 = vmatprep.subr.mxu0 0.0
    %1211 = vmatpush1.msra.mxu0 0.0
    %1212 = vmatprep.subr.mxu0 0.0
    %1213 = vmatpush1.msra.mxu0 0.0
    %1214 = vmatprep.subr.mxu0 0.0
    %1215 = vmatpush1.msra.mxu0 0.0
    %1216 = vmatprep.subr.mxu0 0.0
    %1217 = vmatpush1.msra.mxu0 0.0
    %1218 = vmatprep.subr.mxu0 0.0
    %1219 = vmatpush1.msra.mxu0 0.0
    %1220 = vmatprep.subr.mxu0 0.0
    %1221 = vmatpush1.msra.mxu0 0.0
    %1222 = vmatprep.subr.mxu0 0.0
    %1223 = vmatpush1.msra.mxu0 0.0
    %1224 = vmatprep.subr.mxu0 0.0
    %1225 = vmatpush1.msra.mxu0 0.0
    %1226 = vmatprep.subr.mxu0 0.0
    %1227 = vmatpush1.msra.mxu0 0.0
    %1228 = vmatprep.subr.mxu0 0.0
    %1229 = vmatpush1.msra.mxu0 0.0
    %1230 = vmatprep.subr.mxu0 0.0
    %1231 = vmatpush1.msra.mxu0 0.0
    %1232 = vmatprep.subr.mxu0 0.0
    %1233 = vmatpush1.msra.mxu0 0.0
    %1234 = vmatprep.subr.mxu0 0.0
    %1235 = vmatpush1.msra.mxu0 0.0
    %1236 = vmatprep.subr.mxu0 0.0
    %1237 = vmatpush1.msra.mxu0 0.0
    %1238 = vmatprep.subr.mxu0 0.0
    %1239 = vmatpush1.msra.mxu0 0.0
    %1240 = vmatprep.mubr.f32.mxu0 0.0
    %1241 = vmatmul.mubr.f32.gmra.mrb[0].mxu0 %v1077
    %v1242 = vpop.f32.mrb[0].mxu0
    %v1243 = vadd.f32 0.0, %v1242
    %v1244 = vpop.f32.mrb[0].mxu0
    %1245 = vdwg.mxu0
    %v1247 = vsel %vm203, %v1175, 0
    %1249 = vmatprep.subr.mxu0 0.0
    %1250 = vmatpush1.msra.mxu0 %v113
    %1251 = vmatprep.subr.mxu0 0.0
    %1252 = vmatpush1.msra.mxu0 0.0
    %1253 = vmatprep.subr.mxu0 0.0
    %1254 = vmatpush1.msra.mxu0 0.0
    %1255 = vmatprep.subr.mxu0 0.0
    %1256 = vmatpush1.msra.mxu0 0.0
    %1257 = vmatprep.subr.mxu0 0.0
    %1258 = vmatpush1.msra.mxu0 0.0
    %1259 = vmatprep.subr.mxu0 0.0
    %1260 = vmatpush1.msra.mxu0 0.0
    %1261 = vmatprep.subr.mxu0 0.0
    %1262 = vmatpush1.msra.mxu0 0.0
    %1263 = vmatprep.subr.mxu0 0.0
    %1264 = vmatpush1.msra.mxu0 0.0
    %1265 = vmatprep.subr.mxu0 0.0
    %1266 = vmatpush1.msra.mxu0 0.0
    %1267 = vmatprep.subr.mxu0 0.0
    %1268 = vmatpush1.msra.mxu0 0.0
    %1269 = vmatprep.subr.mxu0 0.0
    %1270 = vmatpush1.msra.mxu0 0.0
    %1271 = vmatprep.subr.mxu0 0.0
    %1272 = vmatpush1.msra.mxu0 0.0
    %1273 = vmatprep.subr.mxu0 0.0
    %1274 = vmatpush1.msra.mxu0 0.0
    %1275 = vmatprep.subr.mxu0 0.0
    %1276 = vmatpush1.msra.mxu0 0.0
    %1277 = vmatprep.subr.mxu0 0.0
    %1278 = vmatpush1.msra.mxu0 0.0
    %1279 = vmatprep.subr.mxu0 0.0
    %1280 = vmatpush1.msra.mxu0 0.0
    %1281 = vmatprep.subr.mxu0 0.0
    %1282 = vmatpush1.msra.mxu0 0.0
    %1283 = vmatprep.subr.mxu0 0.0
    %1284 = vmatpush1.msra.mxu0 0.0
    %1285 = vmatprep.subr.mxu0 0.0
    %1286 = vmatpush1.msra.mxu0 0.0
    %1287 = vmatprep.subr.mxu0 0.0
    %1288 = vmatpush1.msra.mxu0 0.0
    %1289 = vmatprep.subr.mxu0 0.0
    %1290 = vmatpush1.msra.mxu0 0.0
    %1291 = vmatprep.subr.mxu0 0.0
    %1292 = vmatpush1.msra.mxu0 0.0
    %1293 = vmatprep.subr.mxu0 0.0
    %1294 = vmatpush1.msra.mxu0 0.0
    %1295 = vmatprep.subr.mxu0 0.0
    %1296 = vmatpush1.msra.mxu0 0.0
    %1297 = vmatprep.subr.mxu0 0.0
    %1298 = vmatpush1.msra.mxu0 0.0
    %1299 = vmatprep.subr.mxu0 0.0
    %1300 = vmatpush1.msra.mxu0 0.0
    %1301 = vmatprep.subr.mxu0 0.0
    %1302 = vmatpush1.msra.mxu0 0.0
    %1303 = vmatprep.subr.mxu0 0.0
    %1304 = vmatpush1.msra.mxu0 0.0
    %1305 = vmatprep.subr.mxu0 0.0
    %1306 = vmatpush1.msra.mxu0 0.0
    %1307 = vmatprep.subr.mxu0 0.0
    %1308 = vmatpush1.msra.mxu0 0.0
    %1309 = vmatprep.subr.mxu0 0.0
    %1310 = vmatpush1.msra.mxu0 0.0
    %1311 = vmatprep.subr.mxu0 0.0
    %1312 = vmatpush1.msra.mxu0 0.0
    %1313 = vmatprep.mubr.f32.mxu0 0.0
    %1314 = vmatmul.mubr.f32.gmra.mrb[0].mxu0 %v1247
    %v1315 = vpop.f32.mrb[0].mxu0
    %v1316 = vadd.f32 %v1243, %v1315
    %v1317 = vpop.f32.mrb[0].mxu0
    %1318 = vdwg.mxu0
    %v1319 = vadd.f32 %v1316, %v281
    %v1320 = vxor.u32 %v1319, 2147483648
    %v1321 = vmul.f32 %v1320, 1.442695
    %v1322 = vpow.pop %v1321
    %v1323 = vadd.f32 %v1322, 1.0
    %v1324 = vrcp.pop %v1323
    %v1325 = vmul.f32 1.0, %v1324
    %v1326 = vtanh.pop %v1319
    %v1327 = vmul.f32 %v1325, %v992
    %1329 = vrot.lane.b32.xlu0 %v1326, 64
    %v1330 = vpop.permute.xlu0 %1329
    %v1332 = vmul.f32 %v1325, %v1330
    %1334 = vrot.lane.b32.xlu0 %v1332, 32
    %v1335 = vpop.permute.xlu0 %1334
    %v1337 = vadd.f32 %v1327, %v1335
    %v1338 = vtanh.pop %v1337
    %1340 = vrot.lane.b32.xlu0 %v1338, 64
    %v1341 = vpop.permute.xlu0 %1340
    %v1343 = vmul.f32 %v1325, %v1341
    %1345 = vrot.lane.b32.xlu0 %v1173, 32
    %v1346 = vpop.permute.xlu0 %1345
    %v1347 = vsel %vm129, %v1346, 0
    %1349 = vmatprep.subr.mxu0 0.0
    %1350 = vmatpush1.msra.mxu0 %v123
    %1351 = vmatprep.subr.mxu0 0.0
    %1352 = vmatpush1.msra.mxu0 %v124
    %1353 = vmatprep.subr.mxu0 0.0
    %1354 = vmatpush1.msra.mxu0 %v125
    %1355 = vmatprep.subr.mxu0 0.0
    %1356 = vmatpush1.msra.mxu0 %v126
    %1357 = vmatprep.subr.mxu0 0.0
    %1358 = vmatpush1.msra.mxu0 0.0
    %1359 = vmatprep.subr.mxu0 0.0
    %1360 = vmatpush1.msra.mxu0 0.0
    %1361 = vmatprep.subr.mxu0 0.0
    %1362 = vmatpush1.msra.mxu0 0.0
    %1363 = vmatprep.subr.mxu0 0.0
    %1364 = vmatpush1.msra.mxu0 0.0
    %1365 = vmatprep.subr.mxu0 0.0
    %1366 = vmatpush1.msra.mxu0 0.0
    %1367 = vmatprep.subr.mxu0 0.0
    %1368 = vmatpush1.msra.mxu0 0.0
    %1369 = vmatprep.subr.mxu0 0.0
    %1370 = vmatpush1.msra.mxu0 0.0
    %1371 = vmatprep.subr.mxu0 0.0
    %1372 = vmatpush1.msra.mxu0 0.0
    %1373 = vmatprep.subr.mxu0 0.0
    %1374 = vmatpush1.msra.mxu0 0.0
    %1375 = vmatprep.subr.mxu0 0.0
    %1376 = vmatpush1.msra.mxu0 0.0
    %1377 = vmatprep.subr.mxu0 0.0
    %1378 = vmatpush1.msra.mxu0 0.0
    %1379 = vmatprep.subr.mxu0 0.0
    %1380 = vmatpush1.msra.mxu0 0.0
    %1381 = vmatprep.subr.mxu0 0.0
    %1382 = vmatpush1.msra.mxu0 0.0
    %1383 = vmatprep.subr.mxu0 0.0
    %1384 = vmatpush1.msra.mxu0 0.0
    %1385 = vmatprep.subr.mxu0 0.0
    %1386 = vmatpush1.msra.mxu0 0.0
    %1387 = vmatprep.subr.mxu0 0.0
    %1388 = vmatpush1.msra.mxu0 0.0
    %1389 = vmatprep.subr.mxu0 0.0
    %1390 = vmatpush1.msra.mxu0 0.0
    %1391 = vmatprep.subr.mxu0 0.0
    %1392 = vmatpush1.msra.mxu0 0.0
    %1393 = vmatprep.subr.mxu0 0.0
    %1394 = vmatpush1.msra.mxu0 0.0
    %1395 = vmatprep.subr.mxu0 0.0
    %1396 = vmatpush1.msra.mxu0 0.0
    %1397 = vmatprep.subr.mxu0 0.0
    %1398 = vmatpush1.msra.mxu0 0.0
    %1399 = vmatprep.subr.mxu0 0.0
    %1400 = vmatpush1.msra.mxu0 0.0
    %1401 = vmatprep.subr.mxu0 0.0
    %1402 = vmatpush1.msra.mxu0 0.0
    %1403 = vmatprep.subr.mxu0 0.0
    %1404 = vmatpush1.msra.mxu0 0.0
    %1405 = vmatprep.subr.mxu0 0.0
    %1406 = vmatpush1.msra.mxu0 0.0
    %1407 = vmatprep.subr.mxu0 0.0
    %1408 = vmatpush1.msra.mxu0 0.0
    %1409 = vmatprep.subr.mxu0 0.0
    %1410 = vmatpush1.msra.mxu0 0.0
    %1411 = vmatprep.subr.mxu0 0.0
    %1412 = vmatpush1.msra.mxu0 0.0
    %1413 = vmatprep.mubr.f32.mxu0 0.0
    %1414 = vmatmul.mubr.f32.gmra.mrb[0].mxu0 %v1347
    %v1415 = vpop.f32.mrb[0].mxu0
    %v1416 = vadd.f32 0.0, %v1415
    %v1417 = vpop.f32.mrb[0].mxu0
    %1418 = vdwg.mxu0
    %1420 = vrot.lane.b32.xlu0 %v1343, 32
    %v1421 = vpop.permute.xlu0 %1420
    %v1422 = vsel %vm129, %v1421, 0
    %1424 = vmatprep.subr.mxu0 0.0
    %1425 = vmatpush1.msra.mxu0 %v119
    %1426 = vmatprep.subr.mxu0 0.0
    %1427 = vmatpush1.msra.mxu0 %v120
    %1428 = vmatprep.subr.mxu0 0.0
    %1429 = vmatpush1.msra.mxu0 %v121
    %1430 = vmatprep.subr.mxu0 0.0
    %1431 = vmatpush1.msra.mxu0 %v122
    %1432 = vmatprep.subr.mxu0 0.0
    %1433 = vmatpush1.msra.mxu0 0.0
    %1434 = vmatprep.subr.mxu0 0.0
    %1435 = vmatpush1.msra.mxu0 0.0
    %1436 = vmatprep.subr.mxu0 0.0
    %1437 = vmatpush1.msra.mxu0 0.0
    %1438 = vmatprep.subr.mxu0 0.0
    %1439 = vmatpush1.msra.mxu0 0.0
    %1440 = vmatprep.subr.mxu0 0.0
    %1441 = vmatpush1.msra.mxu0 0.0
    %1442 = vmatprep.subr.mxu0 0.0
    %1443 = vmatpush1.msra.mxu0 0.0
    %1444 = vmatprep.subr.mxu0 0.0
    %1445 = vmatpush1.msra.mxu0 0.0
    %1446 = vmatprep.subr.mxu0 0.0
    %1447 = vmatpush1.msra.mxu0 0.0
    %1448 = vmatprep.subr.mxu0 0.0
    %1449 = vmatpush1.msra.mxu0 0.0
    %1450 = vmatprep.subr.mxu0 0.0
    %1451 = vmatpush1.msra.mxu0 0.0
    %1452 = vmatprep.subr.mxu0 0.0
    %1453 = vmatpush1.msra.mxu0 0.0
    %1454 = vmatprep.subr.mxu0 0.0
    %1455 = vmatpush1.msra.mxu0 0.0
    %1456 = vmatprep.subr.mxu0 0.0
    %1457 = vmatpush1.msra.mxu0 0.0
    %1458 = vmatprep.subr.mxu0 0.0
    %1459 = vmatpush1.msra.mxu0 0.0
    %1460 = vmatprep.subr.mxu0 0.0
    %1461 = vmatpush1.msra.mxu0 0.0
    %1462 = vmatprep.subr.mxu0 0.0
    %1463 = vmatpush1.msra.mxu0 0.0
    %1464 = vmatprep.subr.mxu0 0.0
    %1465 = vmatpush1.msra.mxu0 0.0
    %1466 = vmatprep.subr.mxu0 0.0
    %1467 = vmatpush1.msra.mxu0 0.0
    %1468 = vmatprep.subr.mxu0 0.0
    %1469 = vmatpush1.msra.mxu0 0.0
    %1470 = vmatprep.subr.mxu0 0.0
    %1471 = vmatpush1.msra.mxu0 0.0
    %1472 = vmatprep.subr.mxu0 0.0
    %1473 = vmatpush1.msra.mxu0 0.0
    %1474 = vmatprep.subr.mxu0 0.0
    %1475 = vmatpush1.msra.mxu0 0.0
    %1476 = vmatprep.subr.mxu0 0.0
    %1477 = vmatpush1.msra.mxu0 0.0
    %1478 = vmatprep.subr.mxu0 0.0
    %1479 = vmatpush1.msra.mxu0 0.0
    %1480 = vmatprep.subr.mxu0 0.0
    %1481 = vmatpush1.msra.mxu0 0.0
    %1482 = vmatprep.subr.mxu0 0.0
    %1483 = vmatpush1.msra.mxu0 0.0
    %1484 = vmatprep.subr.mxu0 0.0
    %1485 = vmatpush1.msra.mxu0 0.0
    %1486 = vmatprep.subr.mxu0 0.0
    %1487 = vmatpush1.msra.mxu0 0.0
    %1488 = vmatprep.mubr.f32.mxu0 0.0
    %1489 = vmatmul.mubr.f32.gmra.mrb[0].mxu0 %v1422
    %v1490 = vpop.f32.mrb[0].mxu0
    %v1491 = vadd.f32 %v1416, %v1490
    %v1492 = vpop.f32.mrb[0].mxu0
    %1493 = vdwg.mxu0
    %v1494 = vadd.f32 %v1491, %v457
    %v1495 = vxor.u32 %v1494, 2147483648
    %v1496 = vmul.f32 %v1495, 1.442695
    %v1497 = vpow.pop %v1496
    %v1498 = vadd.f32 %v1497, 1.0
    %v1499 = vrcp.pop %v1498
    %v1500 = vmul.f32 1.0, %v1499
    %v1501 = vtanh.pop %v1494
    %v1502 = vmul.f32 %v1500, %v1167
    %1504 = vrot.lane.b32.xlu0 %v1501, 64
    %v1505 = vpop.permute.xlu0 %1504
    %v1507 = vmul.f32 %v1500, %v1505
    %1509 = vrot.lane.b32.xlu0 %v1507, 32
    %v1510 = vpop.permute.xlu0 %1509
    %v1512 = vadd.f32 %v1502, %v1510
    %v1513 = vtanh.pop %v1512
    %1515 = vrot.lane.b32.xlu0 %v1513, 64
    %v1516 = vpop.permute.xlu0 %1515
    %v1518 = vmul.f32 %v1500, %v1516
    %s1519 = scalar_lea.vmem [#allocation2], 8
    %v1520 = vld [vmem:[%s1519] sm:$0x3]
    %1521 = vmatprep.subr.mxu0 0.0
    %1522 = vmatpush1.msra.mxu0 %v114
    %1523 = vmatprep.subr.mxu0 0.0
    %1524 = vmatpush1.msra.mxu0 %v115
    %1525 = vmatprep.subr.mxu0 0.0
    %1526 = vmatpush1.msra.mxu0 %v116
    %1527 = vmatprep.subr.mxu0 0.0
    %1528 = vmatpush1.msra.mxu0 %v117
    %1529 = vmatprep.subr.mxu0 0.0
    %1530 = vmatpush1.msra.mxu0 0.0
    %1531 = vmatprep.subr.mxu0 0.0
    %1532 = vmatpush1.msra.mxu0 0.0
    %1533 = vmatprep.subr.mxu0 0.0
    %1534 = vmatpush1.msra.mxu0 0.0
    %1535 = vmatprep.subr.mxu0 0.0
    %1536 = vmatpush1.msra.mxu0 0.0
    %1537 = vmatprep.subr.mxu0 0.0
    %1538 = vmatpush1.msra.mxu0 0.0
    %1539 = vmatprep.subr.mxu0 0.0
    %1540 = vmatpush1.msra.mxu0 0.0
    %1541 = vmatprep.subr.mxu0 0.0
    %1542 = vmatpush1.msra.mxu0 0.0
    %1543 = vmatprep.subr.mxu0 0.0
    %1544 = vmatpush1.msra.mxu0 0.0
    %1545 = vmatprep.subr.mxu0 0.0
    %1546 = vmatpush1.msra.mxu0 0.0
    %1547 = vmatprep.subr.mxu0 0.0
    %1548 = vmatpush1.msra.mxu0 0.0
    %1549 = vmatprep.subr.mxu0 0.0
    %1550 = vmatpush1.msra.mxu0 0.0
    %1551 = vmatprep.subr.mxu0 0.0
    %1552 = vmatpush1.msra.mxu0 0.0
    %1553 = vmatprep.subr.mxu0 0.0
    %1554 = vmatpush1.msra.mxu0 0.0
    %1555 = vmatprep.subr.mxu0 0.0
    %1556 = vmatpush1.msra.mxu0 0.0
    %1557 = vmatprep.subr.mxu0 0.0
    %1558 = vmatpush1.msra.mxu0 0.0
    %1559 = vmatprep.subr.mxu0 0.0
    %1560 = vmatpush1.msra.mxu0 0.0
    %1561 = vmatprep.subr.mxu0 0.0
    %1562 = vmatpush1.msra.mxu0 0.0
    %1563 = vmatprep.subr.mxu0 0.0
    %1564 = vmatpush1.msra.mxu0 0.0
    %1565 = vmatprep.subr.mxu0 0.0
    %1566 = vmatpush1.msra.mxu0 0.0
    %1567 = vmatprep.subr.mxu0 0.0
    %1568 = vmatpush1.msra.mxu0 0.0
    %1569 = vmatprep.subr.mxu0 0.0
    %1570 = vmatpush1.msra.mxu0 0.0
    %1571 = vmatprep.subr.mxu0 0.0
    %1572 = vmatpush1.msra.mxu0 0.0
    %1573 = vmatprep.subr.mxu0 0.0
    %1574 = vmatpush1.msra.mxu0 0.0
    %1575 = vmatprep.subr.mxu0 0.0
    %1576 = vmatpush1.msra.mxu0 0.0
    %1577 = vmatprep.subr.mxu0 0.0
    %1578 = vmatpush1.msra.mxu0 0.0
    %1579 = vmatprep.subr.mxu0 0.0
    %1580 = vmatpush1.msra.mxu0 0.0
    %1581 = vmatprep.subr.mxu0 0.0
    %1582 = vmatpush1.msra.mxu0 0.0
    %1583 = vmatprep.subr.mxu0 0.0
    %1584 = vmatpush1.msra.mxu0 0.0
    %1585 = vmatprep.mubr.f32.mxu0 0.0
    %1586 = vmatmul.mubr.f32.gmra.mrb[0].mxu0 %v1422
    %v1587 = vpop.f32.mrb[0].mxu0
    %v1588 = vadd.f32 0.0, %v1587
    %v1589 = vpop.f32.mrb[0].mxu0
    %1590 = vdwg.mxu0
    %v1592 = vsel %vm203, %v1520, 0
    %1594 = vmatprep.subr.mxu0 0.0
    %1595 = vmatpush1.msra.mxu0 %v113
    %1596 = vmatprep.subr.mxu0 0.0
    %1597 = vmatpush1.msra.mxu0 0.0
    %1598 = vmatprep.subr.mxu0 0.0
    %1599 = vmatpush1.msra.mxu0 0.0
    %1600 = vmatprep.subr.mxu0 0.0
    %1601 = vmatpush1.msra.mxu0 0.0
    %1602 = vmatprep.subr.mxu0 0.0
    %1603 = vmatpush1.msra.mxu0 0.0
    %1604 = vmatprep.subr.mxu0 0.0
    %1605 = vmatpush1.msra.mxu0 0.0
    %1606 = vmatprep.subr.mxu0 0.0
    %1607 = vmatpush1.msra.mxu0 0.0
    %1608 = vmatprep.subr.mxu0 0.0
    %1609 = vmatpush1.msra.mxu0 0.0
    %1610 = vmatprep.subr.mxu0 0.0
    %1611 = vmatpush1.msra.mxu0 0.0
    %1612 = vmatprep.subr.mxu0 0.0
    %1613 = vmatpush1.msra.mxu0 0.0
    %1614 = vmatprep.subr.mxu0 0.0
    %1615 = vmatpush1.msra.mxu0 0.0
    %1616 = vmatprep.subr.mxu0 0.0
    %1617 = vmatpush1.msra.mxu0 0.0
    %1618 = vmatprep.subr.mxu0 0.0
    %1619 = vmatpush1.msra.mxu0 0.0
    %1620 = vmatprep.subr.mxu0 0.0
    %1621 = vmatpush1.msra.mxu0 0.0
    %1622 = vmatprep.subr.mxu0 0.0
    %1623 = vmatpush1.msra.mxu0 0.0
    %1624 = vmatprep.subr.mxu0 0.0
    %1625 = vmatpush1.msra.mxu0 0.0
    %1626 = vmatprep.subr.mxu0 0.0
    %1627 = vmatpush1.msra.mxu0 0.0
    %1628 = vmatprep.subr.mxu0 0.0
    %1629 = vmatpush1.msra.mxu0 0.0
    %1630 = vmatprep.subr.mxu0 0.0
    %1631 = vmatpush1.msra.mxu0 0.0
    %1632 = vmatprep.subr.mxu0 0.0
    %1633 = vmatpush1.msra.mxu0 0.0
    %1634 = vmatprep.subr.mxu0 0.0
    %1635 = vmatpush1.msra.mxu0 0.0
    %1636 = vmatprep.subr.mxu0 0.0
    %1637 = vmatpush1.msra.mxu0 0.0
    %1638 = vmatprep.subr.mxu0 0.0
    %1639 = vmatpush1.msra.mxu0 0.0
    %1640 = vmatprep.subr.mxu0 0.0
    %1641 = vmatpush1.msra.mxu0 0.0
    %1642 = vmatprep.subr.mxu0 0.0
    %1643 = vmatpush1.msra.mxu0 0.0
    %1644 = vmatprep.subr.mxu0 0.0
    %1645 = vmatpush1.msra.mxu0 0.0
    %1646 = vmatprep.subr.mxu0 0.0
    %1647 = vmatpush1.msra.mxu0 0.0
    %1648 = vmatprep.subr.mxu0 0.0
    %1649 = vmatpush1.msra.mxu0 0.0
    %1650 = vmatprep.subr.mxu0 0.0
    %1651 = vmatpush1.msra.mxu0 0.0
    %1652 = vmatprep.subr.mxu0 0.0
    %1653 = vmatpush1.msra.mxu0 0.0
    %1654 = vmatprep.subr.mxu0 0.0
    %1655 = vmatpush1.msra.mxu0 0.0
    %1656 = vmatprep.subr.mxu0 0.0
    %1657 = vmatpush1.msra.mxu0 0.0
    %1658 = vmatprep.mubr.f32.mxu0 0.0
    %1659 = vmatmul.mubr.f32.gmra.mrb[0].mxu0 %v1592
    %v1660 = vpop.f32.mrb[0].mxu0
    %v1661 = vadd.f32 %v1588, %v1660
    %v1662 = vpop.f32.mrb[0].mxu0
    %1663 = vdwg.mxu0
    %v1664 = vadd.f32 %v1661, %v281
    %v1665 = vxor.u32 %v1664, 2147483648
    %v1666 = vmul.f32 %v1665, 1.442695
    %v1667 = vpow.pop %v1666
    %v1668 = vadd.f32 %v1667, 1.0
    %v1669 = vrcp.pop %v1668
    %v1670 = vmul.f32 1.0, %v1669
    %v1671 = vtanh.pop %v1664
    %v1672 = vmul.f32 %v1670, %v1337
    %1674 = vrot.lane.b32.xlu0 %v1671, 64
    %v1675 = vpop.permute.xlu0 %1674
    %v1677 = vmul.f32 %v1670, %v1675
    %1679 = vrot.lane.b32.xlu0 %v1677, 32
    %v1680 = vpop.permute.xlu0 %1679
    %v1682 = vadd.f32 %v1672, %v1680
    %v1683 = vtanh.pop %v1682
    %1685 = vrot.lane.b32.xlu0 %v1683, 64
    %v1686 = vpop.permute.xlu0 %1685
    %v1688 = vmul.f32 %v1670, %v1686
    %1690 = vrot.lane.b32.xlu0 %v1518, 32
    %v1691 = vpop.permute.xlu0 %1690
    %v1692 = vsel %vm129, %v1691, 0
    %1694 = vmatprep.subr.mxu0 0.0
    %1695 = vmatpush1.msra.mxu0 %v123
    %1696 = vmatprep.subr.mxu0 0.0
    %1697 = vmatpush1.msra.mxu0 %v124
    %1698 = vmatprep.subr.mxu0 0.0
    %1699 = vmatpush1.msra.mxu0 %v125
    %1700 = vmatprep.subr.mxu0 0.0
    %1701 = vmatpush1.msra.mxu0 %v126
    %1702 = vmatprep.subr.mxu0 0.0
    %1703 = vmatpush1.msra.mxu0 0.0
    %1704 = vmatprep.subr.mxu0 0.0
    %1705 = vmatpush1.msra.mxu0 0.0
    %1706 = vmatprep.subr.mxu0 0.0
    %1707 = vmatpush1.msra.mxu0 0.0
    %1708 = vmatprep.subr.mxu0 0.0
    %1709 = vmatpush1.msra.mxu0 0.0
    %1710 = vmatprep.subr.mxu0 0.0
    %1711 = vmatpush1.msra.mxu0 0.0
    %1712 = vmatprep.subr.mxu0 0.0
    %1713 = vmatpush1.msra.mxu0 0.0
    %1714 = vmatprep.subr.mxu0 0.0
    %1715 = vmatpush1.msra.mxu0 0.0
    %1716 = vmatprep.subr.mxu0 0.0
    %1717 = vmatpush1.msra.mxu0 0.0
    %1718 = vmatprep.subr.mxu0 0.0
    %1719 = vmatpush1.msra.mxu0 0.0
    %1720 = vmatprep.subr.mxu0 0.0
    %1721 = vmatpush1.msra.mxu0 0.0
    %1722 = vmatprep.subr.mxu0 0.0
    %1723 = vmatpush1.msra.mxu0 0.0
    %1724 = vmatprep.subr.mxu0 0.0
    %1725 = vmatpush1.msra.mxu0 0.0
    %1726 = vmatprep.subr.mxu0 0.0
    %1727 = vmatpush1.msra.mxu0 0.0
    %1728 = vmatprep.subr.mxu0 0.0
    %1729 = vmatpush1.msra.mxu0 0.0
    %1730 = vmatprep.subr.mxu0 0.0
    %1731 = vmatpush1.msra.mxu0 0.0
    %1732 = vmatprep.subr.mxu0 0.0
    %1733 = vmatpush1.msra.mxu0 0.0
    %1734 = vmatprep.subr.mxu0 0.0
    %1735 = vmatpush1.msra.mxu0 0.0
    %1736 = vmatprep.subr.mxu0 0.0
    %1737 = vmatpush1.msra.mxu0 0.0
    %1738 = vmatprep.subr.mxu0 0.0
    %1739 = vmatpush1.msra.mxu0 0.0
    %1740 = vmatprep.subr.mxu0 0.0
    %1741 = vmatpush1.msra.mxu0 0.0
    %1742 = vmatprep.subr.mxu0 0.0
    %1743 = vmatpush1.msra.mxu0 0.0
    %1744 = vmatprep.subr.mxu0 0.0
    %1745 = vmatpush1.msra.mxu0 0.0
    %1746 = vmatprep.subr.mxu0 0.0
    %1747 = vmatpush1.msra.mxu0 0.0
    %1748 = vmatprep.subr.mxu0 0.0
    %1749 = vmatpush1.msra.mxu0 0.0
    %1750 = vmatprep.subr.mxu0 0.0
    %1751 = vmatpush1.msra.mxu0 0.0
    %1752 = vmatprep.subr.mxu0 0.0
    %1753 = vmatpush1.msra.mxu0 0.0
    %1754 = vmatprep.subr.mxu0 0.0
    %1755 = vmatpush1.msra.mxu0 0.0
    %1756 = vmatprep.subr.mxu0 0.0
    %1757 = vmatpush1.msra.mxu0 0.0
    %1758 = vmatprep.mubr.f32.mxu0 0.0
    %1759 = vmatmul.mubr.f32.gmra.mrb[0].mxu0 %v1692
    %v1760 = vpop.f32.mrb[0].mxu0
    %v1761 = vadd.f32 0.0, %v1760
    %v1762 = vpop.f32.mrb[0].mxu0
    %1763 = vdwg.mxu0
    %1765 = vrot.lane.b32.xlu0 %v1688, 32
    %v1766 = vpop.permute.xlu0 %1765
    %v1767 = vsel %vm129, %v1766, 0
    %1769 = vmatprep.subr.mxu0 0.0
    %1770 = vmatpush1.msra.mxu0 %v119
    %1771 = vmatprep.subr.mxu0 0.0
    %1772 = vmatpush1.msra.mxu0 %v120
    %1773 = vmatprep.subr.mxu0 0.0
    %1774 = vmatpush1.msra.mxu0 %v121
    %1775 = vmatprep.subr.mxu0 0.0
    %1776 = vmatpush1.msra.mxu0 %v122
    %1777 = vmatprep.subr.mxu0 0.0
    %1778 = vmatpush1.msra.mxu0 0.0
    %1779 = vmatprep.subr.mxu0 0.0
    %1780 = vmatpush1.msra.mxu0 0.0
    %1781 = vmatprep.subr.mxu0 0.0
    %1782 = vmatpush1.msra.mxu0 0.0
    %1783 = vmatprep.subr.mxu0 0.0
    %1784 = vmatpush1.msra.mxu0 0.0
    %1785 = vmatprep.subr.mxu0 0.0
    %1786 = vmatpush1.msra.mxu0 0.0
    %1787 = vmatprep.subr.mxu0 0.0
    %1788 = vmatpush1.msra.mxu0 0.0
    %1789 = vmatprep.subr.mxu0 0.0
    %1790 = vmatpush1.msra.mxu0 0.0
    %1791 = vmatprep.subr.mxu0 0.0
    %1792 = vmatpush1.msra.mxu0 0.0
    %1793 = vmatprep.subr.mxu0 0.0
    %1794 = vmatpush1.msra.mxu0 0.0
    %1795 = vmatprep.subr.mxu0 0.0
    %1796 = vmatpush1.msra.mxu0 0.0
    %1797 = vmatprep.subr.mxu0 0.0
    %1798 = vmatpush1.msra.mxu0 0.0
    %1799 = vmatprep.subr.mxu0 0.0
    %1800 = vmatpush1.msra.mxu0 0.0
    %1801 = vmatprep.subr.mxu0 0.0
    %1802 = vmatpush1.msra.mxu0 0.0
    %1803 = vmatprep.subr.mxu0 0.0
    %1804 = vmatpush1.msra.mxu0 0.0
    %1805 = vmatprep.subr.mxu0 0.0
    %1806 = vmatpush1.msra.mxu0 0.0
    %1807 = vmatprep.subr.mxu0 0.0
    %1808 = vmatpush1.msra.mxu0 0.0
    %1809 = vmatprep.subr.mxu0 0.0
    %1810 = vmatpush1.msra.mxu0 0.0
    %1811 = vmatprep.subr.mxu0 0.0
    %1812 = vmatpush1.msra.mxu0 0.0
    %1813 = vmatprep.subr.mxu0 0.0
    %1814 = vmatpush1.msra.mxu0 0.0
    %1815 = vmatprep.subr.mxu0 0.0
    %1816 = vmatpush1.msra.mxu0 0.0
    %1817 = vmatprep.subr.mxu0 0.0
    %1818 = vmatpush1.msra.mxu0 0.0
    %1819 = vmatprep.subr.mxu0 0.0
    %1820 = vmatpush1.msra.mxu0 0.0
    %1821 = vmatprep.subr.mxu0 0.0
    %1822 = vmatpush1.msra.mxu0 0.0
    %1823 = vmatprep.subr.mxu0 0.0
    %1824 = vmatpush1.msra.mxu0 0.0
    %1825 = vmatprep.subr.mxu0 0.0
    %1826 = vmatpush1.msra.mxu0 0.0
    %1827 = vmatprep.subr.mxu0 0.0
    %1828 = vmatpush1.msra.mxu0 0.0
    %1829 = vmatprep.subr.mxu0 0.0
    %1830 = vmatpush1.msra.mxu0 0.0
    %1831 = vmatprep.subr.mxu0 0.0
    %1832 = vmatpush1.msra.mxu0 0.0
    %1833 = vmatprep.mubr.f32.mxu0 0.0
    %1834 = vmatmul.mubr.f32.gmra.mrb[0].mxu0 %v1767
    %v1835 = vpop.f32.mrb[0].mxu0
    %v1836 = vadd.f32 %v1761, %v1835
    %v1837 = vpop.f32.mrb[0].mxu0
    %1838 = vdwg.mxu0
    %v1839 = vadd.f32 %v1836, %v457
    %v1840 = vxor.u32 %v1839, 2147483648
    %v1841 = vmul.f32 %v1840, 1.442695
    %v1842 = vpow.pop %v1841
    %v1843 = vadd.f32 %v1842, 1.0
    %v1844 = vrcp.pop %v1843
    %v1845 = vmul.f32 1.0, %v1844
    %v1846 = vtanh.pop %v1839
    %v1847 = vmul.f32 %v1845, %v1512
    %1849 = vrot.lane.b32.xlu0 %v1846, 64
    %v1850 = vpop.permute.xlu0 %1849
    %v1852 = vmul.f32 %v1845, %v1850
    %1854 = vrot.lane.b32.xlu0 %v1852, 32
    %v1855 = vpop.permute.xlu0 %1854
    %v1857 = vadd.f32 %v1847, %v1855
    %v1858 = vtanh.pop %v1857
    %1860 = vrot.lane.b32.xlu0 %v1858, 64
    %v1861 = vpop.permute.xlu0 %1860
    %v1863 = vmul.f32 %v1845, %v1861
    %s1864 = scalar_lea.vmem [#allocation2], 10
    %v1865 = vld [vmem:[%s1864] sm:$0x3]
    %1866 = vmatprep.subr.mxu0 0.0
    %1867 = vmatpush1.msra.mxu0 %v114
    %1868 = vmatprep.subr.mxu0 0.0
    %1869 = vmatpush1.msra.mxu0 %v115
    %1870 = vmatprep.subr.mxu0 0.0
    %1871 = vmatpush1.msra.mxu0 %v116
    %1872 = vmatprep.subr.mxu0 0.0
    %1873 = vmatpush1.msra.mxu0 %v117
    %1874 = vmatprep.subr.mxu0 0.0
    %1875 = vmatpush1.msra.mxu0 0.0
    %1876 = vmatprep.subr.mxu0 0.0
    %1877 = vmatpush1.msra.mxu0 0.0
    %1878 = vmatprep.subr.mxu0 0.0
    %1879 = vmatpush1.msra.mxu0 0.0
    %1880 = vmatprep.subr.mxu0 0.0
    %1881 = vmatpush1.msra.mxu0 0.0
    %1882 = vmatprep.subr.mxu0 0.0
    %1883 = vmatpush1.msra.mxu0 0.0
    %1884 = vmatprep.subr.mxu0 0.0
    %1885 = vmatpush1.msra.mxu0 0.0
    %1886 = vmatprep.subr.mxu0 0.0
    %1887 = vmatpush1.msra.mxu0 0.0
    %1888 = vmatprep.subr.mxu0 0.0
    %1889 = vmatpush1.msra.mxu0 0.0
    %1890 = vmatprep.subr.mxu0 0.0
    %1891 = vmatpush1.msra.mxu0 0.0
    %1892 = vmatprep.subr.mxu0 0.0
    %1893 = vmatpush1.msra.mxu0 0.0
    %1894 = vmatprep.subr.mxu0 0.0
    %1895 = vmatpush1.msra.mxu0 0.0
    %1896 = vmatprep.subr.mxu0 0.0
    %1897 = vmatpush1.msra.mxu0 0.0
    %1898 = vmatprep.subr.mxu0 0.0
    %1899 = vmatpush1.msra.mxu0 0.0
    %1900 = vmatprep.subr.mxu0 0.0
    %1901 = vmatpush1.msra.mxu0 0.0
    %1902 = vmatprep.subr.mxu0 0.0
    %1903 = vmatpush1.msra.mxu0 0.0
    %1904 = vmatprep.subr.mxu0 0.0
    %1905 = vmatpush1.msra.mxu0 0.0
    %1906 = vmatprep.subr.mxu0 0.0
    %1907 = vmatpush1.msra.mxu0 0.0
    %1908 = vmatprep.subr.mxu0 0.0
    %1909 = vmatpush1.msra.mxu0 0.0
    %1910 = vmatprep.subr.mxu0 0.0
    %1911 = vmatpush1.msra.mxu0 0.0
    %1912 = vmatprep.subr.mxu0 0.0
    %1913 = vmatpush1.msra.mxu0 0.0
    %1914 = vmatprep.subr.mxu0 0.0
    %1915 = vmatpush1.msra.mxu0 0.0
    %1916 = vmatprep.subr.mxu0 0.0
    %1917 = vmatpush1.msra.mxu0 0.0
    %1918 = vmatprep.subr.mxu0 0.0
    %1919 = vmatpush1.msra.mxu0 0.0
    %1920 = vmatprep.subr.mxu0 0.0
    %1921 = vmatpush1.msra.mxu0 0.0
    %1922 = vmatprep.subr.mxu0 0.0
    %1923 = vmatpush1.msra.mxu0 0.0
    %1924 = vmatprep.subr.mxu0 0.0
    %1925 = vmatpush1.msra.mxu0 0.0
    %1926 = vmatprep.subr.mxu0 0.0
    %1927 = vmatpush1.msra.mxu0 0.0
    %1928 = vmatprep.subr.mxu0 0.0
    %1929 = vmatpush1.msra.mxu0 0.0
    %1930 = vmatprep.mubr.f32.mxu0 0.0
    %1931 = vmatmul.mubr.f32.gmra.mrb[0].mxu0 %v1767
    %v1932 = vpop.f32.mrb[0].mxu0
    %v1933 = vadd.f32 0.0, %v1932
    %v1934 = vpop.f32.mrb[0].mxu0
    %1935 = vdwg.mxu0
    %v1937 = vsel %vm203, %v1865, 0
    %1939 = vmatprep.subr.mxu0 0.0
    %1940 = vmatpush1.msra.mxu0 %v113
    %1941 = vmatprep.subr.mxu0 0.0
    %1942 = vmatpush1.msra.mxu0 0.0
    %1943 = vmatprep.subr.mxu0 0.0
    %1944 = vmatpush1.msra.mxu0 0.0
    %1945 = vmatprep.subr.mxu0 0.0
    %1946 = vmatpush1.msra.mxu0 0.0
    %1947 = vmatprep.subr.mxu0 0.0
    %1948 = vmatpush1.msra.mxu0 0.0
    %1949 = vmatprep.subr.mxu0 0.0
    %1950 = vmatpush1.msra.mxu0 0.0
    %1951 = vmatprep.subr.mxu0 0.0
    %1952 = vmatpush1.msra.mxu0 0.0
    %1953 = vmatprep.subr.mxu0 0.0
    %1954 = vmatpush1.msra.mxu0 0.0
    %1955 = vmatprep.subr.mxu0 0.0
    %1956 = vmatpush1.msra.mxu0 0.0
    %1957 = vmatprep.subr.mxu0 0.0
    %1958 = vmatpush1.msra.mxu0 0.0
    %1959 = vmatprep.subr.mxu0 0.0
    %1960 = vmatpush1.msra.mxu0 0.0
    %1961 = vmatprep.subr.mxu0 0.0
    %1962 = vmatpush1.msra.mxu0 0.0
    %1963 = vmatprep.subr.mxu0 0.0
    %1964 = vmatpush1.msra.mxu0 0.0
    %1965 = vmatprep.subr.mxu0 0.0
    %1966 = vmatpush1.msra.mxu0 0.0
    %1967 = vmatprep.subr.mxu0 0.0
    %1968 = vmatpush1.msra.mxu0 0.0
    %1969 = vmatprep.subr.mxu0 0.0
    %1970 = vmatpush1.msra.mxu0 0.0
    %1971 = vmatprep.subr.mxu0 0.0
    %1972 = vmatpush1.msra.mxu0 0.0
    %1973 = vmatprep.subr.mxu0 0.0
    %1974 = vmatpush1.msra.mxu0 0.0
    %1975 = vmatprep.subr.mxu0 0.0
    %1976 = vmatpush1.msra.mxu0 0.0
    %1977 = vmatprep.subr.mxu0 0.0
    %1978 = vmatpush1.msra.mxu0 0.0
    %1979 = vmatprep.subr.mxu0 0.0
    %1980 = vmatpush1.msra.mxu0 0.0
    %1981 = vmatprep.subr.mxu0 0.0
    %1982 = vmatpush1.msra.mxu0 0.0
    %1983 = vmatprep.subr.mxu0 0.0
    %1984 = vmatpush1.msra.mxu0 0.0
    %1985 = vmatprep.subr.mxu0 0.0
    %1986 = vmatpush1.msra.mxu0 0.0
    %1987 = vmatprep.subr.mxu0 0.0
    %1988 = vmatpush1.msra.mxu0 0.0
    %1989 = vmatprep.subr.mxu0 0.0
    %1990 = vmatpush1.msra.mxu0 0.0
    %1991 = vmatprep.subr.mxu0 0.0
    %1992 = vmatpush1.msra.mxu0 0.0
    %1993 = vmatprep.subr.mxu0 0.0
    %1994 = vmatpush1.msra.mxu0 0.0
    %1995 = vmatprep.subr.mxu0 0.0
    %1996 = vmatpush1.msra.mxu0 0.0
    %1997 = vmatprep.subr.mxu0 0.0
    %1998 = vmatpush1.msra.mxu0 0.0
    %1999 = vmatprep.subr.mxu0 0.0
    %2000 = vmatpush1.msra.mxu0 0.0
    %2001 = vmatprep.subr.mxu0 0.0
    %2002 = vmatpush1.msra.mxu0 0.0
    %2003 = vmatprep.mubr.f32.mxu0 0.0
    %2004 = vmatmul.mubr.f32.gmra.mrb[0].mxu0 %v1937
    %v2005 = vpop.f32.mrb[0].mxu0
    %v2006 = vadd.f32 %v1933, %v2005
    %v2007 = vpop.f32.mrb[0].mxu0
    %2008 = vdwg.mxu0
    %v2009 = vadd.f32 %v2006, %v281
    %v2010 = vxor.u32 %v2009, 2147483648
    %v2011 = vmul.f32 %v2010, 1.442695
    %v2012 = vpow.pop %v2011
    %v2013 = vadd.f32 %v2012, 1.0
    %v2014 = vrcp.pop %v2013
    %v2015 = vmul.f32 1.0, %v2014
    %v2016 = vtanh.pop %v2009
    %v2017 = vmul.f32 %v2015, %v1682
    %2019 = vrot.lane.b32.xlu0 %v2016, 64
    %v2020 = vpop.permute.xlu0 %2019
    %v2022 = vmul.f32 %v2015, %v2020
    %2024 = vrot.lane.b32.xlu0 %v2022, 32
    %v2025 = vpop.permute.xlu0 %2024
    %v2027 = vadd.f32 %v2017, %v2025
    %v2028 = vtanh.pop %v2027
    %2030 = vrot.lane.b32.xlu0 %v2028, 64
    %v2031 = vpop.permute.xlu0 %2030
    %v2033 = vmul.f32 %v2015, %v2031
    %2035 = vrot.lane.b32.xlu0 %v1863, 32
    %v2036 = vpop.permute.xlu0 %2035
    %v2037 = vsel %vm129, %v2036, 0
    %2039 = vmatprep.subr.mxu0 0.0
    %2040 = vmatpush1.msra.mxu0 %v123
    %2041 = vmatprep.subr.mxu0 0.0
    %2042 = vmatpush1.msra.mxu0 %v124
    %2043 = vmatprep.subr.mxu0 0.0
    %2044 = vmatpush1.msra.mxu0 %v125
    %2045 = vmatprep.subr.mxu0 0.0
    %2046 = vmatpush1.msra.mxu0 %v126
    %2047 = vmatprep.subr.mxu0 0.0
    %2048 = vmatpush1.msra.mxu0 0.0
    %2049 = vmatprep.subr.mxu0 0.0
    %2050 = vmatpush1.msra.mxu0 0.0
    %2051 = vmatprep.subr.mxu0 0.0
    %2052 = vmatpush1.msra.mxu0 0.0
    %2053 = vmatprep.subr.mxu0 0.0
    %2054 = vmatpush1.msra.mxu0 0.0
    %2055 = vmatprep.subr.mxu0 0.0
    %2056 = vmatpush1.msra.mxu0 0.0
    %2057 = vmatprep.subr.mxu0 0.0
    %2058 = vmatpush1.msra.mxu0 0.0
    %2059 = vmatprep.subr.mxu0 0.0
    %2060 = vmatpush1.msra.mxu0 0.0
    %2061 = vmatprep.subr.mxu0 0.0
    %2062 = vmatpush1.msra.mxu0 0.0
    %2063 = vmatprep.subr.mxu0 0.0
    %2064 = vmatpush1.msra.mxu0 0.0
    %2065 = vmatprep.subr.mxu0 0.0
    %2066 = vmatpush1.msra.mxu0 0.0
    %2067 = vmatprep.subr.mxu0 0.0
    %2068 = vmatpush1.msra.mxu0 0.0
    %2069 = vmatprep.subr.mxu0 0.0
    %2070 = vmatpush1.msra.mxu0 0.0
    %2071 = vmatprep.subr.mxu0 0.0
    %2072 = vmatpush1.msra.mxu0 0.0
    %2073 = vmatprep.subr.mxu0 0.0
    %2074 = vmatpush1.msra.mxu0 0.0
    %2075 = vmatprep.subr.mxu0 0.0
    %2076 = vmatpush1.msra.mxu0 0.0
    %2077 = vmatprep.subr.mxu0 0.0
    %2078 = vmatpush1.msra.mxu0 0.0
    %2079 = vmatprep.subr.mxu0 0.0
    %2080 = vmatpush1.msra.mxu0 0.0
    %2081 = vmatprep.subr.mxu0 0.0
    %2082 = vmatpush1.msra.mxu0 0.0
    %2083 = vmatprep.subr.mxu0 0.0
    %2084 = vmatpush1.msra.mxu0 0.0
    %2085 = vmatprep.subr.mxu0 0.0
    %2086 = vmatpush1.msra.mxu0 0.0
    %2087 = vmatprep.subr.mxu0 0.0
    %2088 = vmatpush1.msra.mxu0 0.0
    %2089 = vmatprep.subr.mxu0 0.0
    %2090 = vmatpush1.msra.mxu0 0.0
    %2091 = vmatprep.subr.mxu0 0.0
    %2092 = vmatpush1.msra.mxu0 0.0
    %2093 = vmatprep.subr.mxu0 0.0
    %2094 = vmatpush1.msra.mxu0 0.0
    %2095 = vmatprep.subr.mxu0 0.0
    %2096 = vmatpush1.msra.mxu0 0.0
    %2097 = vmatprep.subr.mxu0 0.0
    %2098 = vmatpush1.msra.mxu0 0.0
    %2099 = vmatprep.subr.mxu0 0.0
    %2100 = vmatpush1.msra.mxu0 0.0
    %2101 = vmatprep.subr.mxu0 0.0
    %2102 = vmatpush1.msra.mxu0 0.0
    %2103 = vmatprep.mubr.f32.mxu0 0.0
    %2104 = vmatmul.mubr.f32.gmra.mrb[0].mxu0 %v2037
    %v2105 = vpop.f32.mrb[0].mxu0
    %v2106 = vadd.f32 0.0, %v2105
    %v2107 = vpop.f32.mrb[0].mxu0
    %2108 = vdwg.mxu0
    %2110 = vrot.lane.b32.xlu0 %v2033, 32
    %v2111 = vpop.permute.xlu0 %2110
    %v2112 = vsel %vm129, %v2111, 0
    %2114 = vmatprep.subr.mxu0 0.0
    %2115 = vmatpush1.msra.mxu0 %v119
    %2116 = vmatprep.subr.mxu0 0.0
    %2117 = vmatpush1.msra.mxu0 %v120
    %2118 = vmatprep.subr.mxu0 0.0
    %2119 = vmatpush1.msra.mxu0 %v121
    %2120 = vmatprep.subr.mxu0 0.0
    %2121 = vmatpush1.msra.mxu0 %v122
    %2122 = vmatprep.subr.mxu0 0.0
    %2123 = vmatpush1.msra.mxu0 0.0
    %2124 = vmatprep.subr.mxu0 0.0
    %2125 = vmatpush1.msra.mxu0 0.0
    %2126 = vmatprep.subr.mxu0 0.0
    %2127 = vmatpush1.msra.mxu0 0.0
    %2128 = vmatprep.subr.mxu0 0.0
    %2129 = vmatpush1.msra.mxu0 0.0
    %2130 = vmatprep.subr.mxu0 0.0
    %2131 = vmatpush1.msra.mxu0 0.0
    %2132 = vmatprep.subr.mxu0 0.0
    %2133 = vmatpush1.msra.mxu0 0.0
    %2134 = vmatprep.subr.mxu0 0.0
    %2135 = vmatpush1.msra.mxu0 0.0
    %2136 = vmatprep.subr.mxu0 0.0
    %2137 = vmatpush1.msra.mxu0 0.0
    %2138 = vmatprep.subr.mxu0 0.0
    %2139 = vmatpush1.msra.mxu0 0.0
    %2140 = vmatprep.subr.mxu0 0.0
    %2141 = vmatpush1.msra.mxu0 0.0
    %2142 = vmatprep.subr.mxu0 0.0
    %2143 = vmatpush1.msra.mxu0 0.0
    %2144 = vmatprep.subr.mxu0 0.0
    %2145 = vmatpush1.msra.mxu0 0.0
    %2146 = vmatprep.subr.mxu0 0.0
    %2147 = vmatpush1.msra.mxu0 0.0
    %2148 = vmatprep.subr.mxu0 0.0
    %2149 = vmatpush1.msra.mxu0 0.0
    %2150 = vmatprep.subr.mxu0 0.0
    %2151 = vmatpush1.msra.mxu0 0.0
    %2152 = vmatprep.subr.mxu0 0.0
    %2153 = vmatpush1.msra.mxu0 0.0
    %2154 = vmatprep.subr.mxu0 0.0
    %2155 = vmatpush1.msra.mxu0 0.0
    %2156 = vmatprep.subr.mxu0 0.0
    %2157 = vmatpush1.msra.mxu0 0.0
    %2158 = vmatprep.subr.mxu0 0.0
    %2159 = vmatpush1.msra.mxu0 0.0
    %2160 = vmatprep.subr.mxu0 0.0
    %2161 = vmatpush1.msra.mxu0 0.0
    %2162 = vmatprep.subr.mxu0 0.0
    %2163 = vmatpush1.msra.mxu0 0.0
    %2164 = vmatprep.subr.mxu0 0.0
    %2165 = vmatpush1.msra.mxu0 0.0
    %2166 = vmatprep.subr.mxu0 0.0
    %2167 = vmatpush1.msra.mxu0 0.0
    %2168 = vmatprep.subr.mxu0 0.0
    %2169 = vmatpush1.msra.mxu0 0.0
    %2170 = vmatprep.subr.mxu0 0.0
    %2171 = vmatpush1.msra.mxu0 0.0
    %2172 = vmatprep.subr.mxu0 0.0
    %2173 = vmatpush1.msra.mxu0 0.0
    %2174 = vmatprep.subr.mxu0 0.0
    %2175 = vmatpush1.msra.mxu0 0.0
    %2176 = vmatprep.subr.mxu0 0.0
    %2177 = vmatpush1.msra.mxu0 0.0
    %2178 = vmatprep.mubr.f32.mxu0 0.0
    %2179 = vmatmul.mubr.f32.gmra.mrb[0].mxu0 %v2112
    %v2180 = vpop.f32.mrb[0].mxu0
    %v2181 = vadd.f32 %v2106, %v2180
    %v2182 = vpop.f32.mrb[0].mxu0
    %2183 = vdwg.mxu0
    %v2184 = vadd.f32 %v2181, %v457
    %v2185 = vxor.u32 %v2184, 2147483648
    %v2186 = vmul.f32 %v2185, 1.442695
    %v2187 = vpow.pop %v2186
    %v2188 = vadd.f32 %v2187, 1.0
    %v2189 = vrcp.pop %v2188
    %v2190 = vmul.f32 1.0, %v2189
    %v2191 = vtanh.pop %v2184
    %v2192 = vmul.f32 %v2190, %v1857
    %2194 = vrot.lane.b32.xlu0 %v2191, 64
    %v2195 = vpop.permute.xlu0 %2194
    %v2197 = vmul.f32 %v2190, %v2195
    %2199 = vrot.lane.b32.xlu0 %v2197, 32
    %v2200 = vpop.permute.xlu0 %2199
    %v2202 = vadd.f32 %v2192, %v2200
    %v2203 = vtanh.pop %v2202
    %2205 = vrot.lane.b32.xlu0 %v2203, 64
    %v2206 = vpop.permute.xlu0 %2205
    %v2208 = vmul.f32 %v2190, %v2206
    %s2209 = scalar_lea.vmem [#allocation2], 12
    %v2210 = vld [vmem:[%s2209] sm:$0x3]
    %2211 = vmatprep.subr.mxu0 0.0
    %2212 = vmatpush1.msra.mxu0 %v114
    %2213 = vmatprep.subr.mxu0 0.0
    %2214 = vmatpush1.msra.mxu0 %v115
    %2215 = vmatprep.subr.mxu0 0.0
    %2216 = vmatpush1.msra.mxu0 %v116
    %2217 = vmatprep.subr.mxu0 0.0
    %2218 = vmatpush1.msra.mxu0 %v117
    %2219 = vmatprep.subr.mxu0 0.0
    %2220 = vmatpush1.msra.mxu0 0.0
    %2221 = vmatprep.subr.mxu0 0.0
    %2222 = vmatpush1.msra.mxu0 0.0
    %2223 = vmatprep.subr.mxu0 0.0
    %2224 = vmatpush1.msra.mxu0 0.0
    %2225 = vmatprep.subr.mxu0 0.0
    %2226 = vmatpush1.msra.mxu0 0.0
    %2227 = vmatprep.subr.mxu0 0.0
    %2228 = vmatpush1.msra.mxu0 0.0
    %2229 = vmatprep.subr.mxu0 0.0
    %2230 = vmatpush1.msra.mxu0 0.0
    %2231 = vmatprep.subr.mxu0 0.0
    %2232 = vmatpush1.msra.mxu0 0.0
    %2233 = vmatprep.subr.mxu0 0.0
    %2234 = vmatpush1.msra.mxu0 0.0
    %2235 = vmatprep.subr.mxu0 0.0
    %2236 = vmatpush1.msra.mxu0 0.0
    %2237 = vmatprep.subr.mxu0 0.0
    %2238 = vmatpush1.msra.mxu0 0.0
    %2239 = vmatprep.subr.mxu0 0.0
    %2240 = vmatpush1.msra.mxu0 0.0
    %2241 = vmatprep.subr.mxu0 0.0
    %2242 = vmatpush1.msra.mxu0 0.0
    %2243 = vmatprep.subr.mxu0 0.0
    %2244 = vmatpush1.msra.mxu0 0.0
    %2245 = vmatprep.subr.mxu0 0.0
    %2246 = vmatpush1.msra.mxu0 0.0
    %2247 = vmatprep.subr.mxu0 0.0
    %2248 = vmatpush1.msra.mxu0 0.0
    %2249 = vmatprep.subr.mxu0 0.0
    %2250 = vmatpush1.msra.mxu0 0.0
    %2251 = vmatprep.subr.mxu0 0.0
    %2252 = vmatpush1.msra.mxu0 0.0
    %2253 = vmatprep.subr.mxu0 0.0
    %2254 = vmatpush1.msra.mxu0 0.0
    %2255 = vmatprep.subr.mxu0 0.0
    %2256 = vmatpush1.msra.mxu0 0.0
    %2257 = vmatprep.subr.mxu0 0.0
    %2258 = vmatpush1.msra.mxu0 0.0
    %2259 = vmatprep.subr.mxu0 0.0
    %2260 = vmatpush1.msra.mxu0 0.0
    %2261 = vmatprep.subr.mxu0 0.0
    %2262 = vmatpush1.msra.mxu0 0.0
    %2263 = vmatprep.subr.mxu0 0.0
    %2264 = vmatpush1.msra.mxu0 0.0
    %2265 = vmatprep.subr.mxu0 0.0
    %2266 = vmatpush1.msra.mxu0 0.0
    %2267 = vmatprep.subr.mxu0 0.0
    %2268 = vmatpush1.msra.mxu0 0.0
    %2269 = vmatprep.subr.mxu0 0.0
    %2270 = vmatpush1.msra.mxu0 0.0
    %2271 = vmatprep.subr.mxu0 0.0
    %2272 = vmatpush1.msra.mxu0 0.0
    %2273 = vmatprep.subr.mxu0 0.0
    %2274 = vmatpush1.msra.mxu0 0.0
    %2275 = vmatprep.mubr.f32.mxu0 0.0
    %2276 = vmatmul.mubr.f32.gmra.mrb[0].mxu0 %v2112
    %v2277 = vpop.f32.mrb[0].mxu0
    %v2278 = vadd.f32 0.0, %v2277
    %v2279 = vpop.f32.mrb[0].mxu0
    %2280 = vdwg.mxu0
    %v2282 = vsel %vm203, %v2210, 0
    %2284 = vmatprep.subr.mxu0 0.0
    %2285 = vmatpush1.msra.mxu0 %v113
    %2286 = vmatprep.subr.mxu0 0.0
    %2287 = vmatpush1.msra.mxu0 0.0
    %2288 = vmatprep.subr.mxu0 0.0
    %2289 = vmatpush1.msra.mxu0 0.0
    %2290 = vmatprep.subr.mxu0 0.0
    %2291 = vmatpush1.msra.mxu0 0.0
    %2292 = vmatprep.subr.mxu0 0.0
    %2293 = vmatpush1.msra.mxu0 0.0
    %2294 = vmatprep.subr.mxu0 0.0
    %2295 = vmatpush1.msra.mxu0 0.0
    %2296 = vmatprep.subr.mxu0 0.0
    %2297 = vmatpush1.msra.mxu0 0.0
    %2298 = vmatprep.subr.mxu0 0.0
    %2299 = vmatpush1.msra.mxu0 0.0
    %2300 = vmatprep.subr.mxu0 0.0
    %2301 = vmatpush1.msra.mxu0 0.0
    %2302 = vmatprep.subr.mxu0 0.0
    %2303 = vmatpush1.msra.mxu0 0.0
    %2304 = vmatprep.subr.mxu0 0.0
    %2305 = vmatpush1.msra.mxu0 0.0
    %2306 = vmatprep.subr.mxu0 0.0
    %2307 = vmatpush1.msra.mxu0 0.0
    %2308 = vmatprep.subr.mxu0 0.0
    %2309 = vmatpush1.msra.mxu0 0.0
    %2310 = vmatprep.subr.mxu0 0.0
    %2311 = vmatpush1.msra.mxu0 0.0
    %2312 = vmatprep.subr.mxu0 0.0
    %2313 = vmatpush1.msra.mxu0 0.0
    %2314 = vmatprep.subr.mxu0 0.0
    %2315 = vmatpush1.msra.mxu0 0.0
    %2316 = vmatprep.subr.mxu0 0.0
    %2317 = vmatpush1.msra.mxu0 0.0
    %2318 = vmatprep.subr.mxu0 0.0
    %2319 = vmatpush1.msra.mxu0 0.0
    %2320 = vmatprep.subr.mxu0 0.0
    %2321 = vmatpush1.msra.mxu0 0.0
    %2322 = vmatprep.subr.mxu0 0.0
    %2323 = vmatpush1.msra.mxu0 0.0
    %2324 = vmatprep.subr.mxu0 0.0
    %2325 = vmatpush1.msra.mxu0 0.0
    %2326 = vmatprep.subr.mxu0 0.0
    %2327 = vmatpush1.msra.mxu0 0.0
    %2328 = vmatprep.subr.mxu0 0.0
    %2329 = vmatpush1.msra.mxu0 0.0
    %2330 = vmatprep.subr.mxu0 0.0
    %2331 = vmatpush1.msra.mxu0 0.0
    %2332 = vmatprep.subr.mxu0 0.0
    %2333 = vmatpush1.msra.mxu0 0.0
    %2334 = vmatprep.subr.mxu0 0.0
    %2335 = vmatpush1.msra.mxu0 0.0
    %2336 = vmatprep.subr.mxu0 0.0
    %2337 = vmatpush1.msra.mxu0 0.0
    %2338 = vmatprep.subr.mxu0 0.0
    %2339 = vmatpush1.msra.mxu0 0.0
    %2340 = vmatprep.subr.mxu0 0.0
    %2341 = vmatpush1.msra.mxu0 0.0
    %2342 = vmatprep.subr.mxu0 0.0
    %2343 = vmatpush1.msra.mxu0 0.0
    %2344 = vmatprep.subr.mxu0 0.0
    %2345 = vmatpush1.msra.mxu0 0.0
    %2346 = vmatprep.subr.mxu0 0.0
    %2347 = vmatpush1.msra.mxu0 0.0
    %2348 = vmatprep.mubr.f32.mxu0 0.0
    %2349 = vmatmul.mubr.f32.gmra.mrb[0].mxu0 %v2282
    %v2350 = vpop.f32.mrb[0].mxu0
    %v2351 = vadd.f32 %v2278, %v2350
    %v2352 = vpop.f32.mrb[0].mxu0
    %2353 = vdwg.mxu0
    %v2354 = vadd.f32 %v2351, %v281
    %v2355 = vxor.u32 %v2354, 2147483648
    %v2356 = vmul.f32 %v2355, 1.442695
    %v2357 = vpow.pop %v2356
    %v2358 = vadd.f32 %v2357, 1.0
    %v2359 = vrcp.pop %v2358
    %v2360 = vmul.f32 1.0, %v2359
    %v2361 = vtanh.pop %v2354
    %v2362 = vmul.f32 %v2360, %v2027
    %2364 = vrot.lane.b32.xlu0 %v2361, 64
    %v2365 = vpop.permute.xlu0 %2364
    %v2367 = vmul.f32 %v2360, %v2365
    %2369 = vrot.lane.b32.xlu0 %v2367, 32
    %v2370 = vpop.permute.xlu0 %2369
    %v2372 = vadd.f32 %v2362, %v2370
    %v2373 = vtanh.pop %v2372
    %2375 = vrot.lane.b32.xlu0 %v2373, 64
    %v2376 = vpop.permute.xlu0 %2375
    %v2378 = vmul.f32 %v2360, %v2376
    %2380 = vrot.lane.b32.xlu0 %v2208, 32
    %v2381 = vpop.permute.xlu0 %2380
    %v2382 = vsel %vm129, %v2381, 0
    %2384 = vmatprep.subr.mxu0 0.0
    %2385 = vmatpush1.msra.mxu0 %v123
    %2386 = vmatprep.subr.mxu0 0.0
    %2387 = vmatpush1.msra.mxu0 %v124
    %2388 = vmatprep.subr.mxu0 0.0
    %2389 = vmatpush1.msra.mxu0 %v125
    %2390 = vmatprep.subr.mxu0 0.0
    %2391 = vmatpush1.msra.mxu0 %v126
    %2392 = vmatprep.subr.mxu0 0.0
    %2393 = vmatpush1.msra.mxu0 0.0
    %2394 = vmatprep.subr.mxu0 0.0
    %2395 = vmatpush1.msra.mxu0 0.0
    %2396 = vmatprep.subr.mxu0 0.0
    %2397 = vmatpush1.msra.mxu0 0.0
    %2398 = vmatprep.subr.mxu0 0.0
    %2399 = vmatpush1.msra.mxu0 0.0
    %2400 = vmatprep.subr.mxu0 0.0
    %2401 = vmatpush1.msra.mxu0 0.0
    %2402 = vmatprep.subr.mxu0 0.0
    %2403 = vmatpush1.msra.mxu0 0.0
    %2404 = vmatprep.subr.mxu0 0.0
    %2405 = vmatpush1.msra.mxu0 0.0
    %2406 = vmatprep.subr.mxu0 0.0
    %2407 = vmatpush1.msra.mxu0 0.0
    %2408 = vmatprep.subr.mxu0 0.0
    %2409 = vmatpush1.msra.mxu0 0.0
    %2410 = vmatprep.subr.mxu0 0.0
    %2411 = vmatpush1.msra.mxu0 0.0
    %2412 = vmatprep.subr.mxu0 0.0
    %2413 = vmatpush1.msra.mxu0 0.0
    %2414 = vmatprep.subr.mxu0 0.0
    %2415 = vmatpush1.msra.mxu0 0.0
    %2416 = vmatprep.subr.mxu0 0.0
    %2417 = vmatpush1.msra.mxu0 0.0
    %2418 = vmatprep.subr.mxu0 0.0
    %2419 = vmatpush1.msra.mxu0 0.0
    %2420 = vmatprep.subr.mxu0 0.0
    %2421 = vmatpush1.msra.mxu0 0.0
    %2422 = vmatprep.subr.mxu0 0.0
    %2423 = vmatpush1.msra.mxu0 0.0
    %2424 = vmatprep.subr.mxu0 0.0
    %2425 = vmatpush1.msra.mxu0 0.0
    %2426 = vmatprep.subr.mxu0 0.0
    %2427 = vmatpush1.msra.mxu0 0.0
    %2428 = vmatprep.subr.mxu0 0.0
    %2429 = vmatpush1.msra.mxu0 0.0
    %2430 = vmatprep.subr.mxu0 0.0
    %2431 = vmatpush1.msra.mxu0 0.0
    %2432 = vmatprep.subr.mxu0 0.0
    %2433 = vmatpush1.msra.mxu0 0.0
    %2434 = vmatprep.subr.mxu0 0.0
    %2435 = vmatpush1.msra.mxu0 0.0
    %2436 = vmatprep.subr.mxu0 0.0
    %2437 = vmatpush1.msra.mxu0 0.0
    %2438 = vmatprep.subr.mxu0 0.0
    %2439 = vmatpush1.msra.mxu0 0.0
    %2440 = vmatprep.subr.mxu0 0.0
    %2441 = vmatpush1.msra.mxu0 0.0
    %2442 = vmatprep.subr.mxu0 0.0
    %2443 = vmatpush1.msra.mxu0 0.0
    %2444 = vmatprep.subr.mxu0 0.0
    %2445 = vmatpush1.msra.mxu0 0.0
    %2446 = vmatprep.subr.mxu0 0.0
    %2447 = vmatpush1.msra.mxu0 0.0
    %2448 = vmatprep.mubr.f32.mxu0 0.0
    %2449 = vmatmul.mubr.f32.gmra.mrb[0].mxu0 %v2382
    %v2450 = vpop.f32.mrb[0].mxu0
    %v2451 = vadd.f32 0.0, %v2450
    %v2452 = vpop.f32.mrb[0].mxu0
    %2453 = vdwg.mxu0
    %2455 = vrot.lane.b32.xlu0 %v2378, 32
    %v2456 = vpop.permute.xlu0 %2455
    %v2457 = vsel %vm129, %v2456, 0
    %2459 = vmatprep.subr.mxu0 0.0
    %2460 = vmatpush1.msra.mxu0 %v119
    %2461 = vmatprep.subr.mxu0 0.0
    %2462 = vmatpush1.msra.mxu0 %v120
    %2463 = vmatprep.subr.mxu0 0.0
    %2464 = vmatpush1.msra.mxu0 %v121
    %2465 = vmatprep.subr.mxu0 0.0
    %2466 = vmatpush1.msra.mxu0 %v122
    %2467 = vmatprep.subr.mxu0 0.0
    %2468 = vmatpush1.msra.mxu0 0.0
    %2469 = vmatprep.subr.mxu0 0.0
    %2470 = vmatpush1.msra.mxu0 0.0
    %2471 = vmatprep.subr.mxu0 0.0
    %2472 = vmatpush1.msra.mxu0 0.0
    %2473 = vmatprep.subr.mxu0 0.0
    %2474 = vmatpush1.msra.mxu0 0.0
    %2475 = vmatprep.subr.mxu0 0.0
    %2476 = vmatpush1.msra.mxu0 0.0
    %2477 = vmatprep.subr.mxu0 0.0
    %2478 = vmatpush1.msra.mxu0 0.0
    %2479 = vmatprep.subr.mxu0 0.0
    %2480 = vmatpush1.msra.mxu0 0.0
    %2481 = vmatprep.subr.mxu0 0.0
    %2482 = vmatpush1.msra.mxu0 0.0
    %2483 = vmatprep.subr.mxu0 0.0
    %2484 = vmatpush1.msra.mxu0 0.0
    %2485 = vmatprep.subr.mxu0 0.0
    %2486 = vmatpush1.msra.mxu0 0.0
    %2487 = vmatprep.subr.mxu0 0.0
    %2488 = vmatpush1.msra.mxu0 0.0
    %2489 = vmatprep.subr.mxu0 0.0
    %2490 = vmatpush1.msra.mxu0 0.0
    %2491 = vmatprep.subr.mxu0 0.0
    %2492 = vmatpush1.msra.mxu0 0.0
    %2493 = vmatprep.subr.mxu0 0.0
    %2494 = vmatpush1.msra.mxu0 0.0
    %2495 = vmatprep.subr.mxu0 0.0
    %2496 = vmatpush1.msra.mxu0 0.0
    %2497 = vmatprep.subr.mxu0 0.0
    %2498 = vmatpush1.msra.mxu0 0.0
    %2499 = vmatprep.subr.mxu0 0.0
    %2500 = vmatpush1.msra.mxu0 0.0
    %2501 = vmatprep.subr.mxu0 0.0
    %2502 = vmatpush1.msra.mxu0 0.0
    %2503 = vmatprep.subr.mxu0 0.0
    %2504 = vmatpush1.msra.mxu0 0.0
    %2505 = vmatprep.subr.mxu0 0.0
    %2506 = vmatpush1.msra.mxu0 0.0
    %2507 = vmatprep.subr.mxu0 0.0
    %2508 = vmatpush1.msra.mxu0 0.0
    %2509 = vmatprep.subr.mxu0 0.0
    %2510 = vmatpush1.msra.mxu0 0.0
    %2511 = vmatprep.subr.mxu0 0.0
    %2512 = vmatpush1.msra.mxu0 0.0
    %2513 = vmatprep.subr.mxu0 0.0
    %2514 = vmatpush1.msra.mxu0 0.0
    %2515 = vmatprep.subr.mxu0 0.0
    %2516 = vmatpush1.msra.mxu0 0.0
    %2517 = vmatprep.subr.mxu0 0.0
    %2518 = vmatpush1.msra.mxu0 0.0
    %2519 = vmatprep.subr.mxu0 0.0
    %2520 = vmatpush1.msra.mxu0 0.0
    %2521 = vmatprep.subr.mxu0 0.0
    %2522 = vmatpush1.msra.mxu0 0.0
    %2523 = vmatprep.mubr.f32.mxu0 0.0
    %2524 = vmatmul.mubr.f32.gmra.mrb[0].mxu0 %v2457
    %v2525 = vpop.f32.mrb[0].mxu0
    %v2526 = vadd.f32 %v2451, %v2525
    %v2527 = vpop.f32.mrb[0].mxu0
    %2528 = vdwg.mxu0
    %v2529 = vadd.f32 %v2526, %v457
    %v2530 = vxor.u32 %v2529, 2147483648
    %v2531 = vmul.f32 %v2530, 1.442695
    %v2532 = vpow.pop %v2531
    %v2533 = vadd.f32 %v2532, 1.0
    %v2534 = vrcp.pop %v2533
    %v2535 = vmul.f32 1.0, %v2534
    %v2536 = vtanh.pop %v2529
    %v2537 = vmul.f32 %v2535, %v2202
    %2539 = vrot.lane.b32.xlu0 %v2536, 64
    %v2540 = vpop.permute.xlu0 %2539
    %v2542 = vmul.f32 %v2535, %v2540
    %2544 = vrot.lane.b32.xlu0 %v2542, 32
    %v2545 = vpop.permute.xlu0 %2544
    %v2547 = vadd.f32 %v2537, %v2545
    %v2548 = vtanh.pop %v2547
    %2550 = vrot.lane.b32.xlu0 %v2548, 64
    %v2551 = vpop.permute.xlu0 %2550
    %v2553 = vmul.f32 %v2535, %v2551
    %s2554 = scalar_lea.vmem [#allocation2], 14
    %v2555 = vld [vmem:[%s2554] sm:$0x3]
    %2556 = vmatprep.subr.mxu0 0.0
    %2557 = vmatpush1.msra.mxu0 %v114
    %2558 = vmatprep.subr.mxu0 0.0
    %2559 = vmatpush1.msra.mxu0 %v115
    %2560 = vmatprep.subr.mxu0 0.0
    %2561 = vmatpush1.msra.mxu0 %v116
    %2562 = vmatprep.subr.mxu0 0.0
    %2563 = vmatpush1.msra.mxu0 %v117
    %2564 = vmatprep.subr.mxu0 0.0
    %2565 = vmatpush1.msra.mxu0 0.0
    %2566 = vmatprep.subr.mxu0 0.0
    %2567 = vmatpush1.msra.mxu0 0.0
    %2568 = vmatprep.subr.mxu0 0.0
    %2569 = vmatpush1.msra.mxu0 0.0
    %2570 = vmatprep.subr.mxu0 0.0
    %2571 = vmatpush1.msra.mxu0 0.0
    %2572 = vmatprep.subr.mxu0 0.0
    %2573 = vmatpush1.msra.mxu0 0.0
    %2574 = vmatprep.subr.mxu0 0.0
    %2575 = vmatpush1.msra.mxu0 0.0
    %2576 = vmatprep.subr.mxu0 0.0
    %2577 = vmatpush1.msra.mxu0 0.0
    %2578 = vmatprep.subr.mxu0 0.0
    %2579 = vmatpush1.msra.mxu0 0.0
    %2580 = vmatprep.subr.mxu0 0.0
    %2581 = vmatpush1.msra.mxu0 0.0
    %2582 = vmatprep.subr.mxu0 0.0
    %2583 = vmatpush1.msra.mxu0 0.0
    %2584 = vmatprep.subr.mxu0 0.0
    %2585 = vmatpush1.msra.mxu0 0.0
    %2586 = vmatprep.subr.mxu0 0.0
    %2587 = vmatpush1.msra.mxu0 0.0
    %2588 = vmatprep.subr.mxu0 0.0
    %2589 = vmatpush1.msra.mxu0 0.0
    %2590 = vmatprep.subr.mxu0 0.0
    %2591 = vmatpush1.msra.mxu0 0.0
    %2592 = vmatprep.subr.mxu0 0.0
    %2593 = vmatpush1.msra.mxu0 0.0
    %2594 = vmatprep.subr.mxu0 0.0
    %2595 = vmatpush1.msra.mxu0 0.0
    %2596 = vmatprep.subr.mxu0 0.0
    %2597 = vmatpush1.msra.mxu0 0.0
    %2598 = vmatprep.subr.mxu0 0.0
    %2599 = vmatpush1.msra.mxu0 0.0
    %2600 = vmatprep.subr.mxu0 0.0
    %2601 = vmatpush1.msra.mxu0 0.0
    %2602 = vmatprep.subr.mxu0 0.0
    %2603 = vmatpush1.msra.mxu0 0.0
    %2604 = vmatprep.subr.mxu0 0.0
    %2605 = vmatpush1.msra.mxu0 0.0
    %2606 = vmatprep.subr.mxu0 0.0
    %2607 = vmatpush1.msra.mxu0 0.0
    %2608 = vmatprep.subr.mxu0 0.0
    %2609 = vmatpush1.msra.mxu0 0.0
    %2610 = vmatprep.subr.mxu0 0.0
    %2611 = vmatpush1.msra.mxu0 0.0
    %2612 = vmatprep.subr.mxu0 0.0
    %2613 = vmatpush1.msra.mxu0 0.0
    %2614 = vmatprep.subr.mxu0 0.0
    %2615 = vmatpush1.msra.mxu0 0.0
    %2616 = vmatprep.subr.mxu0 0.0
    %2617 = vmatpush1.msra.mxu0 0.0
    %2618 = vmatprep.subr.mxu0 0.0
    %2619 = vmatpush1.msra.mxu0 0.0
    %2620 = vmatprep.mubr.f32.mxu0 0.0
    %2621 = vmatmul.mubr.f32.gmra.mrb[0].mxu0 %v2457
    %v2622 = vpop.f32.mrb[0].mxu0
    %v2623 = vadd.f32 0.0, %v2622
    %v2624 = vpop.f32.mrb[0].mxu0
    %2625 = vdwg.mxu0
    %v2627 = vsel %vm203, %v2555, 0
    %2629 = vmatprep.subr.mxu0 0.0
    %2630 = vmatpush1.msra.mxu0 %v113
    %2631 = vmatprep.subr.mxu0 0.0
    %2632 = vmatpush1.msra.mxu0 0.0
    %2633 = vmatprep.subr.mxu0 0.0
    %2634 = vmatpush1.msra.mxu0 0.0
    %2635 = vmatprep.subr.mxu0 0.0
    %2636 = vmatpush1.msra.mxu0 0.0
    %2637 = vmatprep.subr.mxu0 0.0
    %2638 = vmatpush1.msra.mxu0 0.0
    %2639 = vmatprep.subr.mxu0 0.0
    %2640 = vmatpush1.msra.mxu0 0.0
    %2641 = vmatprep.subr.mxu0 0.0
    %2642 = vmatpush1.msra.mxu0 0.0
    %2643 = vmatprep.subr.mxu0 0.0
    %2644 = vmatpush1.msra.mxu0 0.0
    %2645 = vmatprep.subr.mxu0 0.0
    %2646 = vmatpush1.msra.mxu0 0.0
    %2647 = vmatprep.subr.mxu0 0.0
    %2648 = vmatpush1.msra.mxu0 0.0
    %2649 = vmatprep.subr.mxu0 0.0
    %2650 = vmatpush1.msra.mxu0 0.0
    %2651 = vmatprep.subr.mxu0 0.0
    %2652 = vmatpush1.msra.mxu0 0.0
    %2653 = vmatprep.subr.mxu0 0.0
    %2654 = vmatpush1.msra.mxu0 0.0
    %2655 = vmatprep.subr.mxu0 0.0
    %2656 = vmatpush1.msra.mxu0 0.0
    %2657 = vmatprep.subr.mxu0 0.0
    %2658 = vmatpush1.msra.mxu0 0.0
    %2659 = vmatprep.subr.mxu0 0.0
    %2660 = vmatpush1.msra.mxu0 0.0
    %2661 = vmatprep.subr.mxu0 0.0
    %2662 = vmatpush1.msra.mxu0 0.0
    %2663 = vmatprep.subr.mxu0 0.0
    %2664 = vmatpush1.msra.mxu0 0.0
    %2665 = vmatprep.subr.mxu0 0.0
    %2666 = vmatpush1.msra.mxu0 0.0
    %2667 = vmatprep.subr.mxu0 0.0
    %2668 = vmatpush1.msra.mxu0 0.0
    %2669 = vmatprep.subr.mxu0 0.0
    %2670 = vmatpush1.msra.mxu0 0.0
    %2671 = vmatprep.subr.mxu0 0.0
    %2672 = vmatpush1.msra.mxu0 0.0
    %2673 = vmatprep.subr.mxu0 0.0
    %2674 = vmatpush1.msra.mxu0 0.0
    %2675 = vmatprep.subr.mxu0 0.0
    %2676 = vmatpush1.msra.mxu0 0.0
    %2677 = vmatprep.subr.mxu0 0.0
    %2678 = vmatpush1.msra.mxu0 0.0
    %2679 = vmatprep.subr.mxu0 0.0
    %2680 = vmatpush1.msra.mxu0 0.0
    %2681 = vmatprep.subr.mxu0 0.0
    %2682 = vmatpush1.msra.mxu0 0.0
    %2683 = vmatprep.subr.mxu0 0.0
    %2684 = vmatpush1.msra.mxu0 0.0
    %2685 = vmatprep.subr.mxu0 0.0
    %2686 = vmatpush1.msra.mxu0 0.0
    %2687 = vmatprep.subr.mxu0 0.0
    %2688 = vmatpush1.msra.mxu0 0.0
    %2689 = vmatprep.subr.mxu0 0.0
    %2690 = vmatpush1.msra.mxu0 0.0
    %2691 = vmatprep.subr.mxu0 0.0
    %2692 = vmatpush1.msra.mxu0 0.0
    %2693 = vmatprep.mubr.f32.mxu0 0.0
    %2694 = vmatmul.mubr.f32.gmra.mrb[0].mxu0 %v2627
    %v2695 = vpop.f32.mrb[0].mxu0
    %v2696 = vadd.f32 %v2623, %v2695
    %v2697 = vpop.f32.mrb[0].mxu0
    %2698 = vdwg.mxu0
    %v2699 = vadd.f32 %v2696, %v281
    %v2700 = vxor.u32 %v2699, 2147483648
    %v2701 = vmul.f32 %v2700, 1.442695
    %v2702 = vpow.pop %v2701
    %v2703 = vadd.f32 %v2702, 1.0
    %v2704 = vrcp.pop %v2703
    %v2705 = vmul.f32 1.0, %v2704
    %v2706 = vtanh.pop %v2699
    %v2707 = vmul.f32 %v2705, %v2372
    %2709 = vrot.lane.b32.xlu0 %v2706, 64
    %v2710 = vpop.permute.xlu0 %2709
    %v2712 = vmul.f32 %v2705, %v2710
    %2714 = vrot.lane.b32.xlu0 %v2712, 32
    %v2715 = vpop.permute.xlu0 %2714
    %v2717 = vadd.f32 %v2707, %v2715
    %v2718 = vtanh.pop %v2717
    %2720 = vrot.lane.b32.xlu0 %v2718, 64
    %v2721 = vpop.permute.xlu0 %2720
    %v2723 = vmul.f32 %v2705, %v2721
    %2725 = vrot.lane.b32.xlu0 %v2553, 32
    %v2726 = vpop.permute.xlu0 %2725
    %v2727 = vsel %vm129, %v2726, 0
    %2729 = vmatprep.subr.mxu0 0.0
    %2730 = vmatpush1.msra.mxu0 %v123
    %2731 = vmatprep.subr.mxu0 0.0
    %2732 = vmatpush1.msra.mxu0 %v124
    %2733 = vmatprep.subr.mxu0 0.0
    %2734 = vmatpush1.msra.mxu0 %v125
    %2735 = vmatprep.subr.mxu0 0.0
    %2736 = vmatpush1.msra.mxu0 %v126
    %2737 = vmatprep.subr.mxu0 0.0
    %2738 = vmatpush1.msra.mxu0 0.0
    %2739 = vmatprep.subr.mxu0 0.0
    %2740 = vmatpush1.msra.mxu0 0.0
    %2741 = vmatprep.subr.mxu0 0.0
    %2742 = vmatpush1.msra.mxu0 0.0
    %2743 = vmatprep.subr.mxu0 0.0
    %2744 = vmatpush1.msra.mxu0 0.0
    %2745 = vmatprep.subr.mxu0 0.0
    %2746 = vmatpush1.msra.mxu0 0.0
    %2747 = vmatprep.subr.mxu0 0.0
    %2748 = vmatpush1.msra.mxu0 0.0
    %2749 = vmatprep.subr.mxu0 0.0
    %2750 = vmatpush1.msra.mxu0 0.0
    %2751 = vmatprep.subr.mxu0 0.0
    %2752 = vmatpush1.msra.mxu0 0.0
    %2753 = vmatprep.subr.mxu0 0.0
    %2754 = vmatpush1.msra.mxu0 0.0
    %2755 = vmatprep.subr.mxu0 0.0
    %2756 = vmatpush1.msra.mxu0 0.0
    %2757 = vmatprep.subr.mxu0 0.0
    %2758 = vmatpush1.msra.mxu0 0.0
    %2759 = vmatprep.subr.mxu0 0.0
    %2760 = vmatpush1.msra.mxu0 0.0
    %2761 = vmatprep.subr.mxu0 0.0
    %2762 = vmatpush1.msra.mxu0 0.0
    %2763 = vmatprep.subr.mxu0 0.0
    %2764 = vmatpush1.msra.mxu0 0.0
    %2765 = vmatprep.subr.mxu0 0.0
    %2766 = vmatpush1.msra.mxu0 0.0
    %2767 = vmatprep.subr.mxu0 0.0
    %2768 = vmatpush1.msra.mxu0 0.0
    %2769 = vmatprep.subr.mxu0 0.0
    %2770 = vmatpush1.msra.mxu0 0.0
    %2771 = vmatprep.subr.mxu0 0.0
    %2772 = vmatpush1.msra.mxu0 0.0
    %2773 = vmatprep.subr.mxu0 0.0
    %2774 = vmatpush1.msra.mxu0 0.0
    %2775 = vmatprep.subr.mxu0 0.0
    %2776 = vmatpush1.msra.mxu0 0.0
    %2777 = vmatprep.subr.mxu0 0.0
    %2778 = vmatpush1.msra.mxu0 0.0
    %2779 = vmatprep.subr.mxu0 0.0
    %2780 = vmatpush1.msra.mxu0 0.0
    %2781 = vmatprep.subr.mxu0 0.0
    %2782 = vmatpush1.msra.mxu0 0.0
    %2783 = vmatprep.subr.mxu0 0.0
    %2784 = vmatpush1.msra.mxu0 0.0
    %2785 = vmatprep.subr.mxu0 0.0
    %2786 = vmatpush1.msra.mxu0 0.0
    %2787 = vmatprep.subr.mxu0 0.0
    %2788 = vmatpush1.msra.mxu0 0.0
    %2789 = vmatprep.subr.mxu0 0.0
    %2790 = vmatpush1.msra.mxu0 0.0
    %2791 = vmatprep.subr.mxu0 0.0
    %2792 = vmatpush1.msra.mxu0 0.0
    %2793 = vmatprep.mubr.f32.mxu0 0.0
    %2794 = vmatmul.mubr.f32.gmra.mrb[0].mxu0 %v2727
    %v2795 = vpop.f32.mrb[0].mxu0
    %v2796 = vadd.f32 0.0, %v2795
    %v2797 = vpop.f32.mrb[0].mxu0
    %2798 = vdwg.mxu0
    %2800 = vrot.lane.b32.xlu0 %v2723, 32
    %v2801 = vpop.permute.xlu0 %2800
    %v2802 = vsel %vm129, %v2801, 0
    %2804 = vmatprep.subr.mxu0 0.0
    %2805 = vmatpush1.msra.mxu0 %v119
    %2806 = vmatprep.subr.mxu0 0.0
    %2807 = vmatpush1.msra.mxu0 %v120
    %2808 = vmatprep.subr.mxu0 0.0
    %2809 = vmatpush1.msra.mxu0 %v121
    %2810 = vmatprep.subr.mxu0 0.0
    %2811 = vmatpush1.msra.mxu0 %v122
    %2812 = vmatprep.subr.mxu0 0.0
    %2813 = vmatpush1.msra.mxu0 0.0
    %2814 = vmatprep.subr.mxu0 0.0
    %2815 = vmatpush1.msra.mxu0 0.0
    %2816 = vmatprep.subr.mxu0 0.0
    %2817 = vmatpush1.msra.mxu0 0.0
    %2818 = vmatprep.subr.mxu0 0.0
    %2819 = vmatpush1.msra.mxu0 0.0
    %2820 = vmatprep.subr.mxu0 0.0
    %2821 = vmatpush1.msra.mxu0 0.0
    %2822 = vmatprep.subr.mxu0 0.0
    %2823 = vmatpush1.msra.mxu0 0.0
    %2824 = vmatprep.subr.mxu0 0.0
    %2825 = vmatpush1.msra.mxu0 0.0
    %2826 = vmatprep.subr.mxu0 0.0
    %2827 = vmatpush1.msra.mxu0 0.0
    %2828 = vmatprep.subr.mxu0 0.0
    %2829 = vmatpush1.msra.mxu0 0.0
    %2830 = vmatprep.subr.mxu0 0.0
    %2831 = vmatpush1.msra.mxu0 0.0
    %2832 = vmatprep.subr.mxu0 0.0
    %2833 = vmatpush1.msra.mxu0 0.0
    %2834 = vmatprep.subr.mxu0 0.0
    %2835 = vmatpush1.msra.mxu0 0.0
    %2836 = vmatprep.subr.mxu0 0.0
    %2837 = vmatpush1.msra.mxu0 0.0
    %2838 = vmatprep.subr.mxu0 0.0
    %2839 = vmatpush1.msra.mxu0 0.0
    %2840 = vmatprep.subr.mxu0 0.0
    %2841 = vmatpush1.msra.mxu0 0.0
    %2842 = vmatprep.subr.mxu0 0.0
    %2843 = vmatpush1.msra.mxu0 0.0
    %2844 = vmatprep.subr.mxu0 0.0
    %2845 = vmatpush1.msra.mxu0 0.0
    %2846 = vmatprep.subr.mxu0 0.0
    %2847 = vmatpush1.msra.mxu0 0.0
    %2848 = vmatprep.subr.mxu0 0.0
    %2849 = vmatpush1.msra.mxu0 0.0
    %2850 = vmatprep.subr.mxu0 0.0
    %2851 = vmatpush1.msra.mxu0 0.0
    %2852 = vmatprep.subr.mxu0 0.0
    %2853 = vmatpush1.msra.mxu0 0.0
    %2854 = vmatprep.subr.mxu0 0.0
    %2855 = vmatpush1.msra.mxu0 0.0
    %2856 = vmatprep.subr.mxu0 0.0
    %2857 = vmatpush1.msra.mxu0 0.0
    %2858 = vmatprep.subr.mxu0 0.0
    %2859 = vmatpush1.msra.mxu0 0.0
    %2860 = vmatprep.subr.mxu0 0.0
    %2861 = vmatpush1.msra.mxu0 0.0
    %2862 = vmatprep.subr.mxu0 0.0
    %2863 = vmatpush1.msra.mxu0 0.0
    %2864 = vmatprep.subr.mxu0 0.0
    %2865 = vmatpush1.msra.mxu0 0.0
    %2866 = vmatprep.subr.mxu0 0.0
    %2867 = vmatpush1.msra.mxu0 0.0
    %2868 = vmatprep.mubr.f32.mxu0 0.0
    %2869 = vmatmul.mubr.f32.gmra.mrb[0].mxu0 %v2802
    %v2870 = vpop.f32.mrb[0].mxu0
    %v2871 = vadd.f32 %v2796, %v2870
    %v2872 = vpop.f32.mrb[0].mxu0
    %2873 = vdwg.mxu0
    %v2874 = vadd.f32 %v2871, %v457
    %v2875 = vxor.u32 %v2874, 2147483648
    %v2876 = vmul.f32 %v2875, 1.442695
    %v2877 = vpow.pop %v2876
    %v2878 = vadd.f32 %v2877, 1.0
    %v2879 = vrcp.pop %v2878
    %v2880 = vmul.f32 1.0, %v2879
    %v2881 = vtanh.pop %v2874
    %v2882 = vmul.f32 %v2880, %v2547
    %2884 = vrot.lane.b32.xlu0 %v2881, 64
    %v2885 = vpop.permute.xlu0 %2884
    %v2887 = vmul.f32 %v2880, %v2885
    %2889 = vrot.lane.b32.xlu0 %v2887, 32
    %v2890 = vpop.permute.xlu0 %2889
    %v2892 = vadd.f32 %v2882, %v2890
    %v2893 = vtanh.pop %v2892
    %2895 = vrot.lane.b32.xlu0 %v2893, 64
    %v2896 = vpop.permute.xlu0 %2895
    %v2898 = vmul.f32 %v2880, %v2896
    %v2899 = vld [vmem:[#allocation11] sm:$0xff]
    %v2900 = vld [vmem:[#allocation11 + $0x8] sm:$0xff]
    %v2901 = vld [vmem:[#allocation11 + $0x10] sm:$0xff]
    %v2902 = vld [vmem:[#allocation11 + $0x18] sm:$0xff]
    %v2903 = vld [vmem:[%s8] sm:$0x1]
    %v2905 = vlaneseq
    %v2906 = vshrl.u32 %v2905, 7
    %v2907 = vsub.s32 0, %v2906
    %v2908 = vrot.slane %v2903, %v2907
    %2911 = vrot.lane.b32.xlu0 %v2898, 32
    %v2912 = vpop.permute.xlu0 %2911
    %v2913 = vsel %vm129, %v2912, 0
    %2915 = vmatprep.subr.mxu0 0.0
    %2916 = vmatpush1.msra.mxu0 %v2899
    %2917 = vmatprep.subr.mxu0 0.0
    %2918 = vmatpush1.msra.mxu0 %v2900
    %2919 = vmatprep.subr.mxu0 0.0
    %2920 = vmatpush1.msra.mxu0 %v2901
    %2921 = vmatprep.subr.mxu0 0.0
    %2922 = vmatpush1.msra.mxu0 %v2902
    %2923 = vmatprep.subr.mxu0 0.0
    %2924 = vmatpush1.msra.mxu0 0.0
    %2925 = vmatprep.subr.mxu0 0.0
    %2926 = vmatpush1.msra.mxu0 0.0
    %2927 = vmatprep.subr.mxu0 0.0
    %2928 = vmatpush1.msra.mxu0 0.0
    %2929 = vmatprep.subr.mxu0 0.0
    %2930 = vmatpush1.msra.mxu0 0.0
    %2931 = vmatprep.subr.mxu0 0.0
    %2932 = vmatpush1.msra.mxu0 0.0
    %2933 = vmatprep.subr.mxu0 0.0
    %2934 = vmatpush1.msra.mxu0 0.0
    %2935 = vmatprep.subr.mxu0 0.0
    %2936 = vmatpush1.msra.mxu0 0.0
    %2937 = vmatprep.subr.mxu0 0.0
    %2938 = vmatpush1.msra.mxu0 0.0
    %2939 = vmatprep.subr.mxu0 0.0
    %2940 = vmatpush1.msra.mxu0 0.0
    %2941 = vmatprep.subr.mxu0 0.0
    %2942 = vmatpush1.msra.mxu0 0.0
    %2943 = vmatprep.subr.mxu0 0.0
    %2944 = vmatpush1.msra.mxu0 0.0
    %2945 = vmatprep.subr.mxu0 0.0
    %2946 = vmatpush1.msra.mxu0 0.0
    %2947 = vmatprep.subr.mxu0 0.0
    %2948 = vmatpush1.msra.mxu0 0.0
    %2949 = vmatprep.subr.mxu0 0.0
    %2950 = vmatpush1.msra.mxu0 0.0
    %2951 = vmatprep.subr.mxu0 0.0
    %2952 = vmatpush1.msra.mxu0 0.0
    %2953 = vmatprep.subr.mxu0 0.0
    %2954 = vmatpush1.msra.mxu0 0.0
    %2955 = vmatprep.subr.mxu0 0.0
    %2956 = vmatpush1.msra.mxu0 0.0
    %2957 = vmatprep.subr.mxu0 0.0
    %2958 = vmatpush1.msra.mxu0 0.0
    %2959 = vmatprep.subr.mxu0 0.0
    %2960 = vmatpush1.msra.mxu0 0.0
    %2961 = vmatprep.subr.mxu0 0.0
    %2962 = vmatpush1.msra.mxu0 0.0
    %2963 = vmatprep.subr.mxu0 0.0
    %2964 = vmatpush1.msra.mxu0 0.0
    %2965 = vmatprep.subr.mxu0 0.0
    %2966 = vmatpush1.msra.mxu0 0.0
    %2967 = vmatprep.subr.mxu0 0.0
    %2968 = vmatpush1.msra.mxu0 0.0
    %2969 = vmatprep.subr.mxu0 0.0
    %2970 = vmatpush1.msra.mxu0 0.0
    %2971 = vmatprep.subr.mxu0 0.0
    %2972 = vmatpush1.msra.mxu0 0.0
    %2973 = vmatprep.subr.mxu0 0.0
    %2974 = vmatpush1.msra.mxu0 0.0
    %2975 = vmatprep.subr.mxu0 0.0
    %2976 = vmatpush1.msra.mxu0 0.0
    %2977 = vmatprep.subr.mxu0 0.0
    %2978 = vmatpush1.msra.mxu0 0.0
    %2979 = vmatprep.mubr.f32.mxu0 0.0
    %2980 = vmatmul.mubr.f32.gmra.mrb[0].mxu0 %v2913
    %v2981 = vpop.f32.mrb[0].mxu0
    %v2982 = vadd.f32 %v2908, %v2981
    %v2983 = vpop.f32.mrb[0].mxu0
    %2984 = vdwg.mxu0
    %2985 = vst [vmem:[#allocation13] sm:$0x3] %v2982
    // Predicated region
    $region62: #{tpu_custom_call.1} parent=1 // pred_check
      _
    $region63: #{tpu_custom_call.1} parent=1 // pred_check_branch
      %2987 = sbr.rel (0) target = $region65
    $region64: #{tpu_custom_call.1} parent=1 // pred_region
      %s2989 = ssub.s32 32, 32
      %2990 = vsyncadd [#allocation4], %s2989
      %s2992 = sshll.u32 [#allocation13], 4
      %s2993 = int_to_ptr.vmem [resolvable:$true] %s2992
      %2995 = dma.vmem_to_hbm [thread:$0]  %s2993, 32, %s9, [#allocation4]
    $region65: #{tpu_custom_call.1} parent=1 // pred_fallthru
      _
    // Predicated region
    $region66: #{tpu_custom_call.1} parent=1 // pred_check
      _
    $region67: #{tpu_custom_call.1} parent=1 // pred_check_branch
      %2997 = sbr.rel (0) target = $region69
    $region68: #{tpu_custom_call.1} parent=1 // pred_region
      %2998 = dma.done [#allocation4], 32
    $region69: #{tpu_custom_call.1} parent=1 // pred_fallthru
      _
    %2999 = vsyncpa [#allocation3], 1
    %3000 = vsyncpa [#allocation6], 1
    %3001 = vsyncpa [#allocation9], 1
    %3002 = vsyncpa [#allocation12], 1
    %3003 = vsyncpa [#allocation4], 1

</llo_original>
